<compile_context>
chip_gen: v7x
topology: tpu7x:2x2x1
jax: 0.10.0
libtpu: 0.0.40
codegen_flags: <defaults>
</compile_context>

<pallas_src>
import jax
import jax.numpy as jnp
from jax.experimental import pallas as pl
from jax.experimental.pallas import tpu as pltpu


def _round_up(n, m):
    return ((n + m - 1) // m) * m


# ------------------------------ LayerNorm helpers ------------------------------

def _layernorm(x, g, b, eps=1e-5):
    """Plain f32 LayerNorm (nn.LayerNorm, eps=1e-5) — used by the f32 reference."""
    mu = jnp.mean(x, axis=-1, keepdims=True)
    xc = x - mu
    var = jnp.mean(xc * xc, axis=-1, keepdims=True)
    return xc * jax.lax.rsqrt(var + eps) * g + b


def _lane_mask(d_pad, d_real, dtype=jnp.float32):
    if d_real == d_pad:
        return None
    return (jax.lax.broadcasted_iota(jnp.int32, (1, d_pad), 1) < d_real).astype(dtype)


def _masked_ln(x, g, b, mask, inv_d, eps=1e-5):
    """LayerNorm over the first `1/inv_d` lanes of a zero-padded last axis (exact).

    Padded lanes of x are zero by construction, so the plain sum already equals the sum over real
    lanes; only the centered value needs masking before the variance.  gamma/beta are zero in padded
    lanes so the output stays zero there.
    """
    mu = jnp.sum(x, axis=-1, keepdims=True) * inv_d
    xc = x - mu
    if mask is not None:
        xc = xc * mask
    var = jnp.sum(xc * xc, axis=-1, keepdims=True) * inv_d
    return xc * jax.lax.rsqrt(var + eps) * g + b


# ------------------------------ kernel ------------------------------

def _make_kernel(num_layers, d_real, dm2_real, dm4_real):
    f32, bf16 = jnp.float32, jnp.bfloat16
    inv_d, inv_2, inv_4 = 1.0 / d_real, 1.0 / dm2_real, 1.0 / dm4_real

    def kernel(x_ref, w_in_ref, hv_ref,
               w_att_ref, ln_ref, wf1_ref, bf1_ref, wf2_ref,
               wc1_ref, h1_ref, wc2_ref, h2_ref, wc3_ref, bc3_ref,
               out_ref):
        # lane masks for the true (unpadded) feature widths; hoisted out of the layer loop
        mask_d = _lane_mask(hv_ref.shape[1], d_real)
        mask_2 = _lane_mask(h1_ref.shape[1], dm2_real)
        mask_4 = _lane_mask(h2_ref.shape[1], dm4_real)

        # input_proj: Linear + LayerNorm, then add positional encoding (seq_len == 1)
        hv = hv_ref[...]  # rows: [b_in, g_in, be_in, pos]
        h = jnp.dot(x_ref[...], w_in_ref[...], preferred_element_type=f32) + hv[0:1]
        h = _masked_ln(h, hv[1:2], hv[2:3], mask_d, inv_d) + hv[3:4]

        def layer(h, w_att, ln, wf1, bf1, wf2):
            # ln rows: [b_att, g1, b1, bf2, g2, b2]
            # folded self-attention (exact for one token): attn = out_proj(V) = h @ (Wv Wo) + b_att
            attn = jnp.dot(h.astype(bf16), w_att, preferred_element_type=f32) + ln[0:1]
            h2_ = _masked_ln(h + attn, ln[1:2], ln[2:3], mask_d, inv_d)
            # feed-forward (ReLU, post-norm, dropout = identity at inference)
            ff = jnp.maximum(
                jnp.dot(h2_.astype(bf16), wf1, preferred_element_type=f32) + bf1, 0.0)
            ff = jnp.dot(ff.astype(bf16), wf2, preferred_element_type=f32) + ln[3:4]
            return _masked_ln(h2_ + ff, ln[4:5], ln[5:6], mask_d, inv_d)

        if num_layers <= 4:
            # shallow stack: static unroll, all layer weights VMEM-resident
            for l in range(num_layers):
                h = layer(h, w_att_ref[l], ln_ref[l], wf1_ref[l], bf1_ref[l], wf2_ref[l])
        else:
            # deep stack: single scheduled body, dynamic leading-axis indexing bounds live ranges
            h = jax.lax.fori_loop(
                0, num_layers,
                lambda l, hh: layer(hh, w_att_ref[l], ln_ref[l], wf1_ref[l],
                                    bf1_ref[l], wf2_ref[l]),
                h)

        # mean over seq dim (length 1) is identity; classifier head
        h1 = h1_ref[...]  # rows: [bc1, gc1, bec1]
        h2 = h2_ref[...]  # rows: [bc2, gc2, bec2]
        c = jnp.dot(h.astype(bf16), wc1_ref[...], preferred_element_type=f32) + h1[0:1]
        c = jnp.maximum(_masked_ln(c, h1[1:2], h1[2:3], mask_2, inv_2), 0.0)
        c = jnp.dot(c.astype(bf16), wc2_ref[...], preferred_element_type=f32) + h2[0:1]
        c = jnp.maximum(_masked_ln(c, h2[1:2], h2[2:3], mask_4, inv_4), 0.0)
        out_ref[...] = (jnp.dot(c.astype(bf16), wc3_ref[...], preferred_element_type=f32)
                        + bc3_ref[...])

    return kernel


# ------------------------------ parameter preparation ------------------------------

def prepare_params(params, compute_dtype=jnp.bfloat16):
    """Fold attention, pad all feature axes to 128 lanes (exact, masked-LN aware),
    stack tiny bias/LN vectors, cast matmul weights to bf16."""
    (w_in, b_in, g_in, be_in, pos,
     wv, bv, wo, bo, g1, b1, wf1, bf1, wf2, bf2, g2, b2,
     wc1, bc1, gc1, bec1, wc2, bc2, gc2, bec2, wc3, bc3) = params

    L, d, _ = wv.shape
    ff = wf1.shape[2]
    d_in = w_in.shape[0]
    dm2, dm4, C = wc1.shape[1], wc2.shape[1], wc3.shape[1]

    d_in_p, d_p, ff_p = _round_up(d_in, 128), _round_up(d, 128), _round_up(ff, 128)
    dm2_p, dm4_p, c_p = _round_up(dm2, 128), _round_up(dm4, 128), _round_up(C, 128)

    def pad2(a, r, c):
        return jnp.zeros((r, c), a.dtype).at[:a.shape[0], :a.shape[1]].set(a)

    def pad3(a, r, c):
        return jnp.zeros((a.shape[0], r, c), a.dtype).at[:, :a.shape[1], :a.shape[2]].set(a)

    # algebraic attention fold (exact for seq_len == 1): attn = (h Wv + bv) Wo + bo
    w_att = jnp.einsum("lij,ljk->lik", wv, wo)
    b_att = jnp.einsum("lij,ljk->lik", bv, wo) + bo

    wdt = compute_dtype
    prepared = [
        pad2(w_in, d_in_p, d_p).astype(wdt),                               # (d_in_p, d_p) bf16
        jnp.concatenate([pad2(b_in, 1, d_p), pad2(g_in, 1, d_p),
                         pad2(be_in, 1, d_p), pad2(pos, 1, d_p)], axis=0), # (4, d_p) f32
        pad3(w_att, d_p, d_p).astype(wdt),                                 # (L, d_p, d_p) bf16
        jnp.concatenate([pad3(b_att, 1, d_p), pad3(g1, 1, d_p), pad3(b1, 1, d_p),
                         pad3(bf2, 1, d_p), pad3(g2, 1, d_p), pad3(b2, 1, d_p)],
                        axis=1),                                           # (L, 6, d_p) f32
        pad3(wf1, d_p, ff_p).astype(wdt),                                  # (L, d_p, ff_p) bf16
        pad3(bf1, 1, ff_p),                                                # (L, 1, ff_p) f32
        pad3(wf2, ff_p, d_p).astype(wdt),                                  # (L, ff_p, d_p) bf16
        pad2(wc1, d_p, dm2_p).astype(wdt),                                 # (d_p, dm2_p) bf16
        jnp.concatenate([pad2(bc1, 1, dm2_p), pad2(gc1, 1, dm2_p),
                         pad2(bec1, 1, dm2_p)], axis=0),                   # (3, dm2_p) f32
        pad2(wc2, dm2_p, dm4_p).astype(wdt),                               # (dm2_p, dm4_p) bf16
        jnp.concatenate([pad2(bc2, 1, dm4_p), pad2(gc2, 1, dm4_p),
                         pad2(bec2, 1, dm4_p)], axis=0),                   # (3, dm4_p) f32
        pad2(wc3, dm4_p, c_p).astype(wdt),                                 # (dm4_p, c_p) bf16
        pad2(bc3, 1, c_p),                                                 # (1, c_p) f32
    ]
    meta = dict(num_layers=L, d_model=d, dm2=dm2, dm4=dm4, num_classes=C, input_dim=d_in)
    return prepared, meta


# ------------------------------ tiling / VMEM policy ------------------------------

def _vmem_limit_bytes(frac=0.72, floor=32 << 20, ceil=96 << 20):
    """Generation-aware VMEM budget: ~72% of physical (128 MiB v5e/v6e, 64 MiB/TC v7x), clamped."""
    try:
        cap = getattr(pltpu.get_tpu_info(), "vmem_capacity_bytes", None)
        if cap:
            return int(max(floor, min(ceil, frac * cap)))
    except Exception:
        pass
    return 48 << 20


def _choose_batch_tiling(B, cap=512, min_steps=2, scan=8):
    """Pick (tile_b, b_pad): 16-row aligned tiles (bf16 sublane packing), tiles capped at `cap`,
    >= min_steps grid steps when B allows it (so both v7x TensorCores get a tile under
    dimension_semantics=('parallel',)), with minimal padded rows."""
    b16 = _round_up(max(B, 1), 16)
    want_steps = min_steps if b16 >= min_steps * 16 else 1
    lo = max(want_steps, pl.cdiv(b16, cap))
    best = None  # (waste, steps, tile, b_pad)
    for steps in range(lo, lo + scan):
        tile = min(cap, _round_up(pl.cdiv(b16, steps), 16))
        b_pad = steps * tile
        if b_pad < b16:
            continue
        cand = (b_pad - B, steps, tile, b_pad)
        if best is None or cand[:2] < best[:2]:
            best = cand
    if best is None:
        tile = cap
        return tile, _round_up(b16, tile)
    return best[2], best[3]


# ------------------------------ wrapper ------------------------------

def enhanced_transformer(x, prepared, meta, compute_dtype=jnp.bfloat16):
    B, d_in = x.shape
    d_in_pad = prepared[0].shape[0]
    c_pad = prepared[-1].shape[1]

    tile_b, b_pad = _choose_batch_tiling(B)
    # Padded batch rows are all-zero: LayerNorm sees var=0 -> finite rsqrt(eps); rows sliced off below.
    x_p = jnp.zeros((b_pad, d_in_pad), compute_dtype).at[:B, :d_in].set(x.astype(compute_dtype))

    vmem_limit = _vmem_limit_bytes()
    resident = sum(int(p.size) * p.dtype.itemsize for p in prepared)       # single-buffered weights
    act = 2 * tile_b * (2 * d_in_pad + 4 * c_pad)                          # double-buffered x / out
    if resident + act > 0.6 * vmem_limit:
        # TODO(synk): stream wf1/wf2 (the dominant ~8*d_model^2 bytes/layer) over a second
        # "arbitrary" layer grid axis or pltpu.emit_pipeline instead of keeping them resident.
        raise ValueError(
            f"resident weights ({resident / 2**20:.1f} MiB) + activation tiles exceed the VMEM "
            f"budget ({vmem_limit / 2**20:.1f} MiB); reduce d_model/num_layers or stream layers.")

    kernel = _make_kernel(meta["num_layers"], meta["d_model"], meta["dm2"], meta["dm4"])

    def _run(weight_buffers):
        def const_spec(arr):
            n = arr.ndim
            idx = lambda i, n=n: (0,) * n   # same block every grid step -> no re-DMA
            if weight_buffers is None:
                return pl.BlockSpec(arr.shape, idx)
            return pl.BlockSpec(arr.shape, idx, pipeline_mode=pl.Buffered(weight_buffers))

        in_specs = [pl.BlockSpec((tile_b, d_in_pad), lambda i: (i, 0))]
        in_specs += [const_spec(p) for p in prepared]
        out_spec = pl.BlockSpec((tile_b, c_pad), lambda i: (i, 0))

        return pl.pallas_call(
            kernel,
            out_shape=jax.ShapeDtypeStruct((b_pad, c_pad), jnp.float32),
            grid=(b_pad // tile_b,),
            in_specs=in_specs,
            out_specs=out_spec,
            compiler_params=pltpu.CompilerParams(
                dimension_semantics=("parallel",),       # megacore-shardable batch axis on v7x
                vmem_limit_bytes=vmem_limit,
            ),
        )(x_p, *prepared)

    try:
        # Single-buffer the VMEM-resident weights (review: the second pipeline copy is dead VMEM).
        out = jax.block_until_ready(_run(1))
    except Exception:
        # Installed JAX rejects Buffered(1) on constant specs -> default double buffering.
        out = _run(None)
    return out[:B, :meta["num_classes"]]


# ------------------------------ parameter init & references ------------------------------

def init_params(key, input_dim, num_classes, d_model, num_layers):
    dm2, dm4, ff = d_model // 2, d_model // 4, d_model * 4
    ks = iter(jax.random.split(key, 32))

    def rnd(shape, scale=0.05):
        return (scale * jax.random.normal(next(ks), shape)).astype(jnp.float32)

    ones = lambda s: jnp.ones(s, jnp.float32)
    zeros = lambda s: jnp.zeros(s, jnp.float32)

    return [
        # input_proj + pos_encoder
        rnd((input_dim, d_model)), rnd((1, d_model)), ones((1, d_model)), zeros((1, d_model)),
        zeros((1, d_model)),  # pos_encoder initialized to zeros (as in the PyTorch module)
        # per-layer stacks (V / out_proj / LN1 / FFN / LN2)
        rnd((num_layers, d_model, d_model)), rnd((num_layers, 1, d_model)),
        rnd((num_layers, d_model, d_model)), rnd((num_layers, 1, d_model)),
        ones((num_layers, 1, d_model)), zeros((num_layers, 1, d_model)),
        rnd((num_layers, d_model, ff)), rnd((num_layers, 1, ff)),
        rnd((num_layers, ff, d_model)), rnd((num_layers, 1, d_model)),
        ones((num_layers, 1, d_model)), zeros((num_layers, 1, d_model)),
        # classifier head
        rnd((d_model, dm2)), rnd((1, dm2)), ones((1, dm2)), zeros((1, dm2)),
        rnd((dm2, dm4)), rnd((1, dm4)), ones((1, dm4)), zeros((1, dm4)),
        rnd((dm4, num_classes)), rnd((1, num_classes)),
    ]


def reference_forward_prepared(x, prepared, meta, compute_dtype=jnp.bfloat16):
    """Pure-JAX mirror of the kernel math (same fold / padding / masked LN / bf16 cast points)."""
    (w_in, hv, w_att, ln_l, wf1, bf1, wf2, wc1, h1, wc2, h2, wc3, bc3) = prepared
    cd, f32 = compute_dtype, jnp.float32
    d_real, dm2_real, dm4_real = meta["d_model"], meta["dm2"], meta["dm4"]
    inv_d, inv_2, inv_4 = 1.0 / d_real, 1.0 / dm2_real, 1.0 / dm4_real
    mask_d = _lane_mask(hv.shape[1], d_real)
    mask_2 = _lane_mask(h1.shape[1], dm2_real)
    mask_4 = _lane_mask(h2.shape[1], dm4_real)

    d_in = x.shape[1]
    xp = jnp.zeros((x.shape[0], w_in.shape[0]), cd).at[:, :d_in].set(x.astype(cd))
    h = jnp.dot(xp, w_in, preferred_element_type=f32) + hv[0:1]
    h = _masked_ln(h, hv[1:2], hv[2:3], mask_d, inv_d) + hv[3:4]
    for l in range(meta["num_layers"]):
        ln = ln_l[l]
        attn = jnp.dot(h.astype(cd), w_att[l], preferred_element_type=f32) + ln[0:1]
        h = _masked_ln(h + attn, ln[1:2], ln[2:3], mask_d, inv_d)
        ffh = jnp.maximum(jnp.dot(h.astype(cd), wf1[l], preferred_element_type=f32) + bf1[l], 0.0)
        ffh = jnp.dot(ffh.astype(cd), wf2[l], preferred_element_type=f32) + ln[3:4]
        h = _masked_ln(h + ffh, ln[4:5], ln[5:6], mask_d, inv_d)
    c = jnp.dot(h.astype(cd), wc1, preferred_element_type=f32) + h1[0:1]
    c = jnp.maximum(_masked_ln(c, h1[1:2], h1[2:3], mask_2, inv_2), 0.0)
    c = jnp.dot(c.astype(cd), wc2, preferred_element_type=f32) + h2[0:1]
    c = jnp.maximum(_masked_ln(c, h2[1:2], h2[2:3], mask_4, inv_4), 0.0)
    out = jnp.dot(c.astype(cd), wc3, preferred_element_type=f32) + bc3
    return out[:, :meta["num_classes"]]


def reference_forward_f32(x, params):
    """Full-f32, unfolded, unpadded math of the original PyTorch module (inference)."""
    (w_in, b_in, g_in, be_in, pos,
     wv, bv, wo, bo, g1, b1, wf1, bf1, wf2, bf2, g2, b2,
     wc1, bc1, gc1, bec1, wc2, bc2, gc2, bec2, wc3, bc3) = params
    h = _layernorm(x @ w_in + b_in, g_in, be_in) + pos
    for l in range(wv.shape[0]):
        attn = (h @ wv[l] + bv[l]) @ wo[l] + bo[l]   # softmax over 1 key == 1
        h = _layernorm(h + attn, g1[l], b1[l])
        ffh = jnp.maximum(h @ wf1[l] + bf1[l], 0.0) @ wf2[l] + bf2[l]
        h = _layernorm(h + ffh, g2[l], b2[l])
    c = jnp.maximum(_layernorm(h @ wc1 + bc1, gc1, bec1), 0.0)
    c = jnp.maximum(_layernorm(c @ wc2 + bc2, gc2, bec2), 0.0)
    return c @ wc3 + bc3


if __name__ == "__main__":
    B, input_dim, num_classes = 2, 16, 10
    d_model, num_layers = 32, 2  # nhead is mathematically irrelevant for seq_len == 1

    key = jax.random.PRNGKey(0)
    kx, kp = jax.random.split(key)
    x = jax.random.normal(kx, (B, input_dim), dtype=jnp.float32)
    params = init_params(kp, input_dim, num_classes, d_model, num_layers)

    prepared, meta = prepare_params(params)
    out = enhanced_transformer(x, prepared, meta)
    out = jax.block_until_ready(out)
    assert out.shape == (B, num_classes)

    # tight check against a precision-matched pure-JAX mirror of the kernel
    ref = reference_forward_prepared(x, prepared, meta)
    assert jnp.allclose(out, ref, atol=2e-3, rtol=2e-3), (out, ref)

    # loose check against the full-f32 unfolded/unpadded module math (bf16 rounding tolerance)
    ref32 = reference_forward_f32(x, params)
    assert jnp.allclose(out, ref32, atol=3e-2, rtol=3e-2), (out, ref32)

    print("KERNEL_OK")
</pallas_src>

<mosaic_0001>
module attributes {stable_mosaic.version = 11 : i64} {
  func.func @kernel(%arg0: i32, %arg1: memref<16x128xbf16, #tpu.memory_space<vmem>>, %arg2: memref<128x128xbf16, #tpu.memory_space<vmem>>, %arg3: memref<4x128xf32, #tpu.memory_space<vmem>>, %arg4: memref<2x128x128xbf16, #tpu.memory_space<vmem>>, %arg5: memref<2x6x128xf32, #tpu.memory_space<vmem>>, %arg6: memref<2x128x128xbf16, #tpu.memory_space<vmem>>, %arg7: memref<2x1x128xf32, #tpu.memory_space<vmem>>, %arg8: memref<2x128x128xbf16, #tpu.memory_space<vmem>>, %arg9: memref<128x128xbf16, #tpu.memory_space<vmem>>, %arg10: memref<3x128xf32, #tpu.memory_space<vmem>>, %arg11: memref<128x128xbf16, #tpu.memory_space<vmem>>, %arg12: memref<3x128xf32, #tpu.memory_space<vmem>>, %arg13: memref<128x128xbf16, #tpu.memory_space<vmem>>, %arg14: memref<1x128xf32, #tpu.memory_space<vmem>>, %arg15: memref<16x128xf32, #tpu.memory_space<vmem>>) attributes {dimension_semantics = [#tpu.dimension_semantics<parallel>], iteration_bounds = array<i64: 1>, scalar_prefetch = 0 : i64, scratch_operands = 0 : i64, tpu.core_type = #tpu.core_type<tc>, window_params = [{transform_indices = @transform_0, window_bounds = array<i64: 16, 128>}, {pipeline_mode = #tpu.pipeline_mode<synchronous>, transform_indices = @transform_1, window_bounds = array<i64: 128, 128>}, {pipeline_mode = #tpu.pipeline_mode<synchronous>, transform_indices = @transform_2, window_bounds = array<i64: 4, 128>}, {pipeline_mode = #tpu.pipeline_mode<synchronous>, transform_indices = @transform_3, window_bounds = array<i64: 2, 128, 128>}, {pipeline_mode = #tpu.pipeline_mode<synchronous>, transform_indices = @transform_4, window_bounds = array<i64: 2, 6, 128>}, {pipeline_mode = #tpu.pipeline_mode<synchronous>, transform_indices = @transform_5, window_bounds = array<i64: 2, 128, 128>}, {pipeline_mode = #tpu.pipeline_mode<synchronous>, transform_indices = @transform_6, window_bounds = array<i64: 2, 1, 128>}, {pipeline_mode = #tpu.pipeline_mode<synchronous>, transform_indices = @transform_7, window_bounds = array<i64: 2, 128, 128>}, {pipeline_mode = #tpu.pipeline_mode<synchronous>, transform_indices = @transform_8, window_bounds = array<i64: 128, 128>}, {pipeline_mode = #tpu.pipeline_mode<synchronous>, transform_indices = @transform_9, window_bounds = array<i64: 3, 128>}, {pipeline_mode = #tpu.pipeline_mode<synchronous>, transform_indices = @transform_10, window_bounds = array<i64: 128, 128>}, {pipeline_mode = #tpu.pipeline_mode<synchronous>, transform_indices = @transform_11, window_bounds = array<i64: 3, 128>}, {pipeline_mode = #tpu.pipeline_mode<synchronous>, transform_indices = @transform_12, window_bounds = array<i64: 128, 128>}, {pipeline_mode = #tpu.pipeline_mode<synchronous>, transform_indices = @transform_13, window_bounds = array<i64: 1, 128>}, {transform_indices = @transform_14, window_bounds = array<i64: 16, 128>}]} {
    %0 = tpu.iota {dimensions = array<i32: 1>} : vector<1x128xi32>
    %c32_i32 = arith.constant 32 : i32
    %1 = vector.broadcast %c32_i32 : i32 to vector<1x128xi32>
    %2 = arith.cmpi slt, %0, %1 : vector<1x128xi32>
    %3 = arith.extui %2 : vector<1x128xi1> to vector<1x128xi32>
    %4 = arith.sitofp %3 : vector<1x128xi32> to vector<1x128xf32>
    %5 = tpu.iota {dimensions = array<i32: 1>} : vector<1x128xi32>
    %c16_i32 = arith.constant 16 : i32
    %6 = vector.broadcast %c16_i32 : i32 to vector<1x128xi32>
    %7 = arith.cmpi slt, %5, %6 : vector<1x128xi32>
    %8 = arith.extui %7 : vector<1x128xi1> to vector<1x128xi32>
    %9 = arith.sitofp %8 : vector<1x128xi32> to vector<1x128xf32>
    %10 = tpu.iota {dimensions = array<i32: 1>} : vector<1x128xi32>
    %c8_i32 = arith.constant 8 : i32
    %11 = vector.broadcast %c8_i32 : i32 to vector<1x128xi32>
    %12 = arith.cmpi slt, %10, %11 : vector<1x128xi32>
    %13 = arith.extui %12 : vector<1x128xi1> to vector<1x128xi32>
    %14 = arith.sitofp %13 : vector<1x128xi32> to vector<1x128xf32>
    %c0 = arith.constant 0 : index
    %c0_0 = arith.constant 0 : index
    %15 = vector.load %arg3[%c0, %c0_0] : memref<4x128xf32, #tpu.memory_space<vmem>>, vector<4x128xf32>
    %c0_1 = arith.constant 0 : index
    %c0_2 = arith.constant 0 : index
    %16 = vector.load %arg1[%c0_1, %c0_2] : memref<16x128xbf16, #tpu.memory_space<vmem>>, vector<16x128xbf16>
    %c0_3 = arith.constant 0 : index
    %c0_4 = arith.constant 0 : index
    %17 = vector.load %arg2[%c0_3, %c0_4] : memref<128x128xbf16, #tpu.memory_space<vmem>>, vector<128x128xbf16>
    %cst = arith.constant dense<0.000000e+00> : vector<16x128xf32>
    %18 = tpu.matmul %16, %17, %cst {dimension_numbers = #tpu.dot_dimension_numbers<[1], [0], [0], [1], [0, 0, 1, 1], [], []>} : vector<16x128xbf16>, vector<128x128xbf16>, vector<16x128xf32> -> vector<16x128xf32>
    %19 = vector.extract_strided_slice %15 {offsets = [0, 0], sizes = [1, 128], strides = [1, 1]} : vector<4x128xf32> to vector<1x128xf32>
    %20 = vector.broadcast %19 : vector<1x128xf32> to vector<16x128xf32>
    %21 = arith.addf %18, %20 : vector<16x128xf32>
    %22 = vector.extract_strided_slice %15 {offsets = [1, 0], sizes = [1, 128], strides = [1, 1]} : vector<4x128xf32> to vector<1x128xf32>
    %23 = vector.extract_strided_slice %15 {offsets = [2, 0], sizes = [1, 128], strides = [1, 1]} : vector<4x128xf32> to vector<1x128xf32>
    %cst_5 = arith.constant dense<0.000000e+00> : vector<16xf32>
    %24 = vector.multi_reduction <add>, %21, %cst_5 [1] : vector<16x128xf32> to vector<16xf32>
    %25 = vector.shape_cast %24 : vector<16xf32> to vector<16x1xf32>
    %cst_6 = arith.constant 3.125000e-02 : f32
    %26 = vector.broadcast %cst_6 : f32 to vector<16x1xf32>
    %27 = arith.mulf %25, %26 : vector<16x1xf32>
    %28 = vector.broadcast %27 : vector<16x1xf32> to vector<16x128xf32>
    %29 = arith.subf %21, %28 : vector<16x128xf32>
    %30 = vector.broadcast %4 : vector<1x128xf32> to vector<16x128xf32>
    %31 = arith.mulf %29, %30 : vector<16x128xf32>
    %32 = arith.mulf %31, %31 : vector<16x128xf32>
    %cst_7 = arith.constant dense<0.000000e+00> : vector<16xf32>
    %33 = vector.multi_reduction <add>, %32, %cst_7 [1] : vector<16x128xf32> to vector<16xf32>
    %34 = vector.shape_cast %33 : vector<16xf32> to vector<16x1xf32>
    %cst_8 = arith.constant 3.125000e-02 : f32
    %35 = vector.broadcast %cst_8 : f32 to vector<16x1xf32>
    %36 = arith.mulf %34, %35 : vector<16x1xf32>
    %cst_9 = arith.constant 9.99999974E-6 : f32
    %37 = vector.broadcast %cst_9 : f32 to vector<16x1xf32>
    %38 = arith.addf %36, %37 : vector<16x1xf32>
    %39 = math.rsqrt %38 : vector<16x1xf32>
    %40 = vector.broadcast %39 : vector<16x1xf32> to vector<16x128xf32>
    %41 = arith.mulf %31, %40 : vector<16x128xf32>
    %42 = vector.broadcast %22 : vector<1x128xf32> to vector<16x128xf32>
    %43 = arith.mulf %41, %42 : vector<16x128xf32>
    %44 = vector.broadcast %23 : vector<1x128xf32> to vector<16x128xf32>
    %45 = arith.addf %43, %44 : vector<16x128xf32>
    %46 = vector.extract_strided_slice %15 {offsets = [3, 0], sizes = [1, 128], strides = [1, 1]} : vector<4x128xf32> to vector<1x128xf32>
    %47 = vector.broadcast %46 : vector<1x128xf32> to vector<16x128xf32>
    %48 = arith.addf %45, %47 : vector<16x128xf32>
    %c0_10 = arith.constant 0 : index
    %c0_11 = arith.constant 0 : index
    %c0_12 = arith.constant 0 : index
    %49 = vector.load %arg4[%c0_10, %c0_11, %c0_12] : memref<2x128x128xbf16, #tpu.memory_space<vmem>>, vector<1x128x128xbf16>
    %50 = vector.shape_cast %49 : vector<1x128x128xbf16> to vector<128x128xbf16>
    %c0_13 = arith.constant 0 : index
    %c0_14 = arith.constant 0 : index
    %c0_15 = arith.constant 0 : index
    %51 = vector.load %arg5[%c0_13, %c0_14, %c0_15] : memref<2x6x128xf32, #tpu.memory_space<vmem>>, vector<1x6x128xf32>
    %52 = vector.shape_cast %51 : vector<1x6x128xf32> to vector<6x128xf32>
    %c0_16 = arith.constant 0 : index
    %c0_17 = arith.constant 0 : index
    %c0_18 = arith.constant 0 : index
    %53 = vector.load %arg6[%c0_16, %c0_17, %c0_18] : memref<2x128x128xbf16, #tpu.memory_space<vmem>>, vector<1x128x128xbf16>
    %54 = vector.shape_cast %53 : vector<1x128x128xbf16> to vector<128x128xbf16>
    %c0_19 = arith.constant 0 : index
    %c0_20 = arith.constant 0 : index
    %c0_21 = arith.constant 0 : index
    %55 = vector.load %arg7[%c0_19, %c0_20, %c0_21] : memref<2x1x128xf32, #tpu.memory_space<vmem>>, vector<1x1x128xf32>
    %56 = vector.shape_cast %55 : vector<1x1x128xf32> to vector<1x128xf32>
    %c0_22 = arith.constant 0 : index
    %c0_23 = arith.constant 0 : index
    %c0_24 = arith.constant 0 : index
    %57 = vector.load %arg8[%c0_22, %c0_23, %c0_24] : memref<2x128x128xbf16, #tpu.memory_space<vmem>>, vector<1x128x128xbf16>
    %58 = vector.shape_cast %57 : vector<1x128x128xbf16> to vector<128x128xbf16>
    %59 = arith.truncf %48 : vector<16x128xf32> to vector<16x128xbf16>
    %cst_25 = arith.constant dense<0.000000e+00> : vector<16x128xf32>
    %60 = tpu.matmul %59, %50, %cst_25 {dimension_numbers = #tpu.dot_dimension_numbers<[1], [0], [0], [1], [0, 0, 1, 1], [], []>} : vector<16x128xbf16>, vector<128x128xbf16>, vector<16x128xf32> -> vector<16x128xf32>
    %61 = vector.extract_strided_slice %52 {offsets = [0, 0], sizes = [1, 128], strides = [1, 1]} : vector<6x128xf32> to vector<1x128xf32>
    %62 = vector.broadcast %61 : vector<1x128xf32> to vector<16x128xf32>
    %63 = arith.addf %60, %62 : vector<16x128xf32>
    %64 = arith.addf %48, %63 : vector<16x128xf32>
    %65 = vector.extract_strided_slice %52 {offsets = [1, 0], sizes = [1, 128], strides = [1, 1]} : vector<6x128xf32> to vector<1x128xf32>
    %66 = vector.extract_strided_slice %52 {offsets = [2, 0], sizes = [1, 128], strides = [1, 1]} : vector<6x128xf32> to vector<1x128xf32>
    %cst_26 = arith.constant dense<0.000000e+00> : vector<16xf32>
    %67 = vector.multi_reduction <add>, %64, %cst_26 [1] : vector<16x128xf32> to vector<16xf32>
    %68 = vector.shape_cast %67 : vector<16xf32> to vector<16x1xf32>
    %cst_27 = arith.constant 3.125000e-02 : f32
    %69 = vector.broadcast %cst_27 : f32 to vector<16x1xf32>
    %70 = arith.mulf %68, %69 : vector<16x1xf32>
    %71 = vector.broadcast %70 : vector<16x1xf32> to vector<16x128xf32>
    %72 = arith.subf %64, %71 : vector<16x128xf32>
    %73 = vector.broadcast %4 : vector<1x128xf32> to vector<16x128xf32>
    %74 = arith.mulf %72, %73 : vector<16x128xf32>
    %75 = arith.mulf %74, %74 : vector<16x128xf32>
    %cst_28 = arith.constant dense<0.000000e+00> : vector<16xf32>
    %76 = vector.multi_reduction <add>, %75, %cst_28 [1] : vector<16x128xf32> to vector<16xf32>
    %77 = vector.shape_cast %76 : vector<16xf32> to vector<16x1xf32>
    %cst_29 = arith.constant 3.125000e-02 : f32
    %78 = vector.broadcast %cst_29 : f32 to vector<16x1xf32>
    %79 = arith.mulf %77, %78 : vector<16x1xf32>
    %cst_30 = arith.constant 9.99999974E-6 : f32
    %80 = vector.broadcast %cst_30 : f32 to vector<16x1xf32>
    %81 = arith.addf %79, %80 : vector<16x1xf32>
    %82 = math.rsqrt %81 : vector<16x1xf32>
    %83 = vector.broadcast %82 : vector<16x1xf32> to vector<16x128xf32>
    %84 = arith.mulf %74, %83 : vector<16x128xf32>
    %85 = vector.broadcast %65 : vector<1x128xf32> to vector<16x128xf32>
    %86 = arith.mulf %84, %85 : vector<16x128xf32>
    %87 = vector.broadcast %66 : vector<1x128xf32> to vector<16x128xf32>
    %88 = arith.addf %86, %87 : vector<16x128xf32>
    %89 = arith.truncf %88 : vector<16x128xf32> to vector<16x128xbf16>
    %cst_31 = arith.constant dense<0.000000e+00> : vector<16x128xf32>
    %90 = tpu.matmul %89, %54, %cst_31 {dimension_numbers = #tpu.dot_dimension_numbers<[1], [0], [0], [1], [0, 0, 1, 1], [], []>} : vector<16x128xbf16>, vector<128x128xbf16>, vector<16x128xf32> -> vector<16x128xf32>
    %91 = vector.broadcast %56 : vector<1x128xf32> to vector<16x128xf32>
    %92 = arith.addf %90, %91 : vector<16x128xf32>
    %cst_32 = arith.constant 0.000000e+00 : f32
    %93 = vector.broadcast %cst_32 : f32 to vector<16x128xf32>
    %94 = arith.maximumf %92, %93 : vector<16x128xf32>
    %95 = arith.truncf %94 : vector<16x128xf32> to vector<16x128xbf16>
    %cst_33 = arith.constant dense<0.000000e+00> : vector<16x128xf32>
    %96 = tpu.matmul %95, %58, %cst_33 {dimension_numbers = #tpu.dot_dimension_numbers<[1], [0], [0], [1], [0, 0, 1, 1], [], []>} : vector<16x128xbf16>, vector<128x128xbf16>, vector<16x128xf32> -> vector<16x128xf32>
    %97 = vector.extract_strided_slice %52 {offsets = [3, 0], sizes = [1, 128], strides = [1, 1]} : vector<6x128xf32> to vector<1x128xf32>
    %98 = vector.broadcast %97 : vector<1x128xf32> to vector<16x128xf32>
    %99 = arith.addf %96, %98 : vector<16x128xf32>
    %100 = arith.addf %88, %99 : vector<16x128xf32>
    %101 = vector.extract_strided_slice %52 {offsets = [4, 0], sizes = [1, 128], strides = [1, 1]} : vector<6x128xf32> to vector<1x128xf32>
    %102 = vector.extract_strided_slice %52 {offsets = [5, 0], sizes = [1, 128], strides = [1, 1]} : vector<6x128xf32> to vector<1x128xf32>
    %cst_34 = arith.constant dense<0.000000e+00> : vector<16xf32>
    %103 = vector.multi_reduction <add>, %100, %cst_34 [1] : vector<16x128xf32> to vector<16xf32>
    %104 = vector.shape_cast %103 : vector<16xf32> to vector<16x1xf32>
    %cst_35 = arith.constant 3.125000e-02 : f32
    %105 = vector.broadcast %cst_35 : f32 to vector<16x1xf32>
    %106 = arith.mulf %104, %105 : vector<16x1xf32>
    %107 = vector.broadcast %106 : vector<16x1xf32> to vector<16x128xf32>
    %108 = arith.subf %100, %107 : vector<16x128xf32>
    %109 = vector.broadcast %4 : vector<1x128xf32> to vector<16x128xf32>
    %110 = arith.mulf %108, %109 : vector<16x128xf32>
    %111 = arith.mulf %110, %110 : vector<16x128xf32>
    %cst_36 = arith.constant dense<0.000000e+00> : vector<16xf32>
    %112 = vector.multi_reduction <add>, %111, %cst_36 [1] : vector<16x128xf32> to vector<16xf32>
    %113 = vector.shape_cast %112 : vector<16xf32> to vector<16x1xf32>
    %cst_37 = arith.constant 3.125000e-02 : f32
    %114 = vector.broadcast %cst_37 : f32 to vector<16x1xf32>
    %115 = arith.mulf %113, %114 : vector<16x1xf32>
    %cst_38 = arith.constant 9.99999974E-6 : f32
    %116 = vector.broadcast %cst_38 : f32 to vector<16x1xf32>
    %117 = arith.addf %115, %116 : vector<16x1xf32>
    %118 = math.rsqrt %117 : vector<16x1xf32>
    %119 = vector.broadcast %118 : vector<16x1xf32> to vector<16x128xf32>
    %120 = arith.mulf %110, %119 : vector<16x128xf32>
    %121 = vector.broadcast %101 : vector<1x128xf32> to vector<16x128xf32>
    %122 = arith.mulf %120, %121 : vector<16x128xf32>
    %123 = vector.broadcast %102 : vector<1x128xf32> to vector<16x128xf32>
    %124 = arith.addf %122, %123 : vector<16x128xf32>
    %c1 = arith.constant 1 : index
    %c0_39 = arith.constant 0 : index
    %c0_40 = arith.constant 0 : index
    %125 = vector.load %arg4[%c1, %c0_39, %c0_40] : memref<2x128x128xbf16, #tpu.memory_space<vmem>>, vector<1x128x128xbf16>
    %126 = vector.shape_cast %125 : vector<1x128x128xbf16> to vector<128x128xbf16>
    %c1_41 = arith.constant 1 : index
    %c0_42 = arith.constant 0 : index
    %c0_43 = arith.constant 0 : index
    %127 = vector.load %arg5[%c1_41, %c0_42, %c0_43] : memref<2x6x128xf32, #tpu.memory_space<vmem>>, vector<1x6x128xf32>
    %128 = vector.shape_cast %127 : vector<1x6x128xf32> to vector<6x128xf32>
    %c1_44 = arith.constant 1 : index
    %c0_45 = arith.constant 0 : index
    %c0_46 = arith.constant 0 : index
    %129 = vector.load %arg6[%c1_44, %c0_45, %c0_46] : memref<2x128x128xbf16, #tpu.memory_space<vmem>>, vector<1x128x128xbf16>
    %130 = vector.shape_cast %129 : vector<1x128x128xbf16> to vector<128x128xbf16>
    %c1_47 = arith.constant 1 : index
    %c0_48 = arith.constant 0 : index
    %c0_49 = arith.constant 0 : index
    %131 = vector.load %arg7[%c1_47, %c0_48, %c0_49] : memref<2x1x128xf32, #tpu.memory_space<vmem>>, vector<1x1x128xf32>
    %132 = vector.shape_cast %131 : vector<1x1x128xf32> to vector<1x128xf32>
    %c1_50 = arith.constant 1 : index
    %c0_51 = arith.constant 0 : index
    %c0_52 = arith.constant 0 : index
    %133 = vector.load %arg8[%c1_50, %c0_51, %c0_52] : memref<2x128x128xbf16, #tpu.memory_space<vmem>>, vector<1x128x128xbf16>
    %134 = vector.shape_cast %133 : vector<1x128x128xbf16> to vector<128x128xbf16>
    %135 = arith.truncf %124 : vector<16x128xf32> to vector<16x128xbf16>
    %cst_53 = arith.constant dense<0.000000e+00> : vector<16x128xf32>
    %136 = tpu.matmul %135, %126, %cst_53 {dimension_numbers = #tpu.dot_dimension_numbers<[1], [0], [0], [1], [0, 0, 1, 1], [], []>} : vector<16x128xbf16>, vector<128x128xbf16>, vector<16x128xf32> -> vector<16x128xf32>
    %137 = vector.extract_strided_slice %128 {offsets = [0, 0], sizes = [1, 128], strides = [1, 1]} : vector<6x128xf32> to vector<1x128xf32>
    %138 = vector.broadcast %137 : vector<1x128xf32> to vector<16x128xf32>
    %139 = arith.addf %136, %138 : vector<16x128xf32>
    %140 = arith.addf %124, %139 : vector<16x128xf32>
    %141 = vector.extract_strided_slice %128 {offsets = [1, 0], sizes = [1, 128], strides = [1, 1]} : vector<6x128xf32> to vector<1x128xf32>
    %142 = vector.extract_strided_slice %128 {offsets = [2, 0], sizes = [1, 128], strides = [1, 1]} : vector<6x128xf32> to vector<1x128xf32>
    %cst_54 = arith.constant dense<0.000000e+00> : vector<16xf32>
    %143 = vector.multi_reduction <add>, %140, %cst_54 [1] : vector<16x128xf32> to vector<16xf32>
    %144 = vector.shape_cast %143 : vector<16xf32> to vector<16x1xf32>
    %cst_55 = arith.constant 3.125000e-02 : f32
    %145 = vector.broadcast %cst_55 : f32 to vector<16x1xf32>
    %146 = arith.mulf %144, %145 : vector<16x1xf32>
    %147 = vector.broadcast %146 : vector<16x1xf32> to vector<16x128xf32>
    %148 = arith.subf %140, %147 : vector<16x128xf32>
    %149 = vector.broadcast %4 : vector<1x128xf32> to vector<16x128xf32>
    %150 = arith.mulf %148, %149 : vector<16x128xf32>
    %151 = arith.mulf %150, %150 : vector<16x128xf32>
    %cst_56 = arith.constant dense<0.000000e+00> : vector<16xf32>
    %152 = vector.multi_reduction <add>, %151, %cst_56 [1] : vector<16x128xf32> to vector<16xf32>
    %153 = vector.shape_cast %152 : vector<16xf32> to vector<16x1xf32>
    %cst_57 = arith.constant 3.125000e-02 : f32
    %154 = vector.broadcast %cst_57 : f32 to vector<16x1xf32>
    %155 = arith.mulf %153, %154 : vector<16x1xf32>
    %cst_58 = arith.constant 9.99999974E-6 : f32
    %156 = vector.broadcast %cst_58 : f32 to vector<16x1xf32>
    %157 = arith.addf %155, %156 : vector<16x1xf32>
    %158 = math.rsqrt %157 : vector<16x1xf32>
    %159 = vector.broadcast %158 : vector<16x1xf32> to vector<16x128xf32>
    %160 = arith.mulf %150, %159 : vector<16x128xf32>
    %161 = vector.broadcast %141 : vector<1x128xf32> to vector<16x128xf32>
    %162 = arith.mulf %160, %161 : vector<16x128xf32>
    %163 = vector.broadcast %142 : vector<1x128xf32> to vector<16x128xf32>
    %164 = arith.addf %162, %163 : vector<16x128xf32>
    %165 = arith.truncf %164 : vector<16x128xf32> to vector<16x128xbf16>
    %cst_59 = arith.constant dense<0.000000e+00> : vector<16x128xf32>
    %166 = tpu.matmul %165, %130, %cst_59 {dimension_numbers = #tpu.dot_dimension_numbers<[1], [0], [0], [1], [0, 0, 1, 1], [], []>} : vector<16x128xbf16>, vector<128x128xbf16>, vector<16x128xf32> -> vector<16x128xf32>
    %167 = vector.broadcast %132 : vector<1x128xf32> to vector<16x128xf32>
    %168 = arith.addf %166, %167 : vector<16x128xf32>
    %cst_60 = arith.constant 0.000000e+00 : f32
    %169 = vector.broadcast %cst_60 : f32 to vector<16x128xf32>
    %170 = arith.maximumf %168, %169 : vector<16x128xf32>
    %171 = arith.truncf %170 : vector<16x128xf32> to vector<16x128xbf16>
    %cst_61 = arith.constant dense<0.000000e+00> : vector<16x128xf32>
    %172 = tpu.matmul %171, %134, %cst_61 {dimension_numbers = #tpu.dot_dimension_numbers<[1], [0], [0], [1], [0, 0, 1, 1], [], []>} : vector<16x128xbf16>, vector<128x128xbf16>, vector<16x128xf32> -> vector<16x128xf32>
    %173 = vector.extract_strided_slice %128 {offsets = [3, 0], sizes = [1, 128], strides = [1, 1]} : vector<6x128xf32> to vector<1x128xf32>
    %174 = vector.broadcast %173 : vector<1x128xf32> to vector<16x128xf32>
    %175 = arith.addf %172, %174 : vector<16x128xf32>
    %176 = arith.addf %164, %175 : vector<16x128xf32>
    %177 = vector.extract_strided_slice %128 {offsets = [4, 0], sizes = [1, 128], strides = [1, 1]} : vector<6x128xf32> to vector<1x128xf32>
    %178 = vector.extract_strided_slice %128 {offsets = [5, 0], sizes = [1, 128], strides = [1, 1]} : vector<6x128xf32> to vector<1x128xf32>
    %cst_62 = arith.constant dense<0.000000e+00> : vector<16xf32>
    %179 = vector.multi_reduction <add>, %176, %cst_62 [1] : vector<16x128xf32> to vector<16xf32>
    %180 = vector.shape_cast %179 : vector<16xf32> to vector<16x1xf32>
    %cst_63 = arith.constant 3.125000e-02 : f32
    %181 = vector.broadcast %cst_63 : f32 to vector<16x1xf32>
    %182 = arith.mulf %180, %181 : vector<16x1xf32>
    %183 = vector.broadcast %182 : vector<16x1xf32> to vector<16x128xf32>
    %184 = arith.subf %176, %183 : vector<16x128xf32>
    %185 = vector.broadcast %4 : vector<1x128xf32> to vector<16x128xf32>
    %186 = arith.mulf %184, %185 : vector<16x128xf32>
    %187 = arith.mulf %186, %186 : vector<16x128xf32>
    %cst_64 = arith.constant dense<0.000000e+00> : vector<16xf32>
    %188 = vector.multi_reduction <add>, %187, %cst_64 [1] : vector<16x128xf32> to vector<16xf32>
    %189 = vector.shape_cast %188 : vector<16xf32> to vector<16x1xf32>
    %cst_65 = arith.constant 3.125000e-02 : f32
    %190 = vector.broadcast %cst_65 : f32 to vector<16x1xf32>
    %191 = arith.mulf %189, %190 : vector<16x1xf32>
    %cst_66 = arith.constant 9.99999974E-6 : f32
    %192 = vector.broadcast %cst_66 : f32 to vector<16x1xf32>
    %193 = arith.addf %191, %192 : vector<16x1xf32>
    %194 = math.rsqrt %193 : vector<16x1xf32>
    %195 = vector.broadcast %194 : vector<16x1xf32> to vector<16x128xf32>
    %196 = arith.mulf %186, %195 : vector<16x128xf32>
    %197 = vector.broadcast %177 : vector<1x128xf32> to vector<16x128xf32>
    %198 = arith.mulf %196, %197 : vector<16x128xf32>
    %199 = vector.broadcast %178 : vector<1x128xf32> to vector<16x128xf32>
    %200 = arith.addf %198, %199 : vector<16x128xf32>
    %c0_67 = arith.constant 0 : index
    %c0_68 = arith.constant 0 : index
    %201 = vector.load %arg10[%c0_67, %c0_68] : memref<3x128xf32, #tpu.memory_space<vmem>>, vector<3x128xf32>
    %c0_69 = arith.constant 0 : index
    %c0_70 = arith.constant 0 : index
    %202 = vector.load %arg12[%c0_69, %c0_70] : memref<3x128xf32, #tpu.memory_space<vmem>>, vector<3x128xf32>
    %203 = arith.truncf %200 : vector<16x128xf32> to vector<16x128xbf16>
    %c0_71 = arith.constant 0 : index
    %c0_72 = arith.constant 0 : index
    %204 = vector.load %arg9[%c0_71, %c0_72] : memref<128x128xbf16, #tpu.memory_space<vmem>>, vector<128x128xbf16>
    %cst_73 = arith.constant dense<0.000000e+00> : vector<16x128xf32>
    %205 = tpu.matmul %203, %204, %cst_73 {dimension_numbers = #tpu.dot_dimension_numbers<[1], [0], [0], [1], [0, 0, 1, 1], [], []>} : vector<16x128xbf16>, vector<128x128xbf16>, vector<16x128xf32> -> vector<16x128xf32>
    %206 = vector.extract_strided_slice %201 {offsets = [0, 0], sizes = [1, 128], strides = [1, 1]} : vector<3x128xf32> to vector<1x128xf32>
    %207 = vector.broadcast %206 : vector<1x128xf32> to vector<16x128xf32>
    %208 = arith.addf %205, %207 : vector<16x128xf32>
    %209 = vector.extract_strided_slice %201 {offsets = [1, 0], sizes = [1, 128], strides = [1, 1]} : vector<3x128xf32> to vector<1x128xf32>
    %210 = vector.extract_strided_slice %201 {offsets = [2, 0], sizes = [1, 128], strides = [1, 1]} : vector<3x128xf32> to vector<1x128xf32>
    %cst_74 = arith.constant dense<0.000000e+00> : vector<16xf32>
    %211 = vector.multi_reduction <add>, %208, %cst_74 [1] : vector<16x128xf32> to vector<16xf32>
    %212 = vector.shape_cast %211 : vector<16xf32> to vector<16x1xf32>
    %cst_75 = arith.constant 6.250000e-02 : f32
    %213 = vector.broadcast %cst_75 : f32 to vector<16x1xf32>
    %214 = arith.mulf %212, %213 : vector<16x1xf32>
    %215 = vector.broadcast %214 : vector<16x1xf32> to vector<16x128xf32>
    %216 = arith.subf %208, %215 : vector<16x128xf32>
    %217 = vector.broadcast %9 : vector<1x128xf32> to vector<16x128xf32>
    %218 = arith.mulf %216, %217 : vector<16x128xf32>
    %219 = arith.mulf %218, %218 : vector<16x128xf32>
    %cst_76 = arith.constant dense<0.000000e+00> : vector<16xf32>
    %220 = vector.multi_reduction <add>, %219, %cst_76 [1] : vector<16x128xf32> to vector<16xf32>
    %221 = vector.shape_cast %220 : vector<16xf32> to vector<16x1xf32>
    %cst_77 = arith.constant 6.250000e-02 : f32
    %222 = vector.broadcast %cst_77 : f32 to vector<16x1xf32>
    %223 = arith.mulf %221, %222 : vector<16x1xf32>
    %cst_78 = arith.constant 9.99999974E-6 : f32
    %224 = vector.broadcast %cst_78 : f32 to vector<16x1xf32>
    %225 = arith.addf %223, %224 : vector<16x1xf32>
    %226 = math.rsqrt %225 : vector<16x1xf32>
    %227 = vector.broadcast %226 : vector<16x1xf32> to vector<16x128xf32>
    %228 = arith.mulf %218, %227 : vector<16x128xf32>
    %229 = vector.broadcast %209 : vector<1x128xf32> to vector<16x128xf32>
    %230 = arith.mulf %228, %229 : vector<16x128xf32>
    %231 = vector.broadcast %210 : vector<1x128xf32> to vector<16x128xf32>
    %232 = arith.addf %230, %231 : vector<16x128xf32>
    %cst_79 = arith.constant 0.000000e+00 : f32
    %233 = vector.broadcast %cst_79 : f32 to vector<16x128xf32>
    %234 = arith.maximumf %232, %233 : vector<16x128xf32>
    %235 = arith.truncf %234 : vector<16x128xf32> to vector<16x128xbf16>
    %c0_80 = arith.constant 0 : index
    %c0_81 = arith.constant 0 : index
    %236 = vector.load %arg11[%c0_80, %c0_81] : memref<128x128xbf16, #tpu.memory_space<vmem>>, vector<128x128xbf16>
    %cst_82 = arith.constant dense<0.000000e+00> : vector<16x128xf32>
    %237 = tpu.matmul %235, %236, %cst_82 {dimension_numbers = #tpu.dot_dimension_numbers<[1], [0], [0], [1], [0, 0, 1, 1], [], []>} : vector<16x128xbf16>, vector<128x128xbf16>, vector<16x128xf32> -> vector<16x128xf32>
    %238 = vector.extract_strided_slice %202 {offsets = [0, 0], sizes = [1, 128], strides = [1, 1]} : vector<3x128xf32> to vector<1x128xf32>
    %239 = vector.broadcast %238 : vector<1x128xf32> to vector<16x128xf32>
    %240 = arith.addf %237, %239 : vector<16x128xf32>
    %241 = vector.extract_strided_slice %202 {offsets = [1, 0], sizes = [1, 128], strides = [1, 1]} : vector<3x128xf32> to vector<1x128xf32>
    %242 = vector.extract_strided_slice %202 {offsets = [2, 0], sizes = [1, 128], strides = [1, 1]} : vector<3x128xf32> to vector<1x128xf32>
    %cst_83 = arith.constant dense<0.000000e+00> : vector<16xf32>
    %243 = vector.multi_reduction <add>, %240, %cst_83 [1] : vector<16x128xf32> to vector<16xf32>
    %244 = vector.shape_cast %243 : vector<16xf32> to vector<16x1xf32>
    %cst_84 = arith.constant 1.250000e-01 : f32
    %245 = vector.broadcast %cst_84 : f32 to vector<16x1xf32>
    %246 = arith.mulf %244, %245 : vector<16x1xf32>
    %247 = vector.broadcast %246 : vector<16x1xf32> to vector<16x128xf32>
    %248 = arith.subf %240, %247 : vector<16x128xf32>
    %249 = vector.broadcast %14 : vector<1x128xf32> to vector<16x128xf32>
    %250 = arith.mulf %248, %249 : vector<16x128xf32>
    %251 = arith.mulf %250, %250 : vector<16x128xf32>
    %cst_85 = arith.constant dense<0.000000e+00> : vector<16xf32>
    %252 = vector.multi_reduction <add>, %251, %cst_85 [1] : vector<16x128xf32> to vector<16xf32>
    %253 = vector.shape_cast %252 : vector<16xf32> to vector<16x1xf32>
    %cst_86 = arith.constant 1.250000e-01 : f32
    %254 = vector.broadcast %cst_86 : f32 to vector<16x1xf32>
    %255 = arith.mulf %253, %254 : vector<16x1xf32>
    %cst_87 = arith.constant 9.99999974E-6 : f32
    %256 = vector.broadcast %cst_87 : f32 to vector<16x1xf32>
    %257 = arith.addf %255, %256 : vector<16x1xf32>
    %258 = math.rsqrt %257 : vector<16x1xf32>
    %259 = vector.broadcast %258 : vector<16x1xf32> to vector<16x128xf32>
    %260 = arith.mulf %250, %259 : vector<16x128xf32>
    %261 = vector.broadcast %241 : vector<1x128xf32> to vector<16x128xf32>
    %262 = arith.mulf %260, %261 : vector<16x128xf32>
    %263 = vector.broadcast %242 : vector<1x128xf32> to vector<16x128xf32>
    %264 = arith.addf %262, %263 : vector<16x128xf32>
    %cst_88 = arith.constant 0.000000e+00 : f32
    %265 = vector.broadcast %cst_88 : f32 to vector<16x128xf32>
    %266 = arith.maximumf %264, %265 : vector<16x128xf32>
    %267 = arith.truncf %266 : vector<16x128xf32> to vector<16x128xbf16>
    %c0_89 = arith.constant 0 : index
    %c0_90 = arith.constant 0 : index
    %268 = vector.load %arg13[%c0_89, %c0_90] : memref<128x128xbf16, #tpu.memory_space<vmem>>, vector<128x128xbf16>
    %cst_91 = arith.constant dense<0.000000e+00> : vector<16x128xf32>
    %269 = tpu.matmul %267, %268, %cst_91 {dimension_numbers = #tpu.dot_dimension_numbers<[1], [0], [0], [1], [0, 0, 1, 1], [], []>} : vector<16x128xbf16>, vector<128x128xbf16>, vector<16x128xf32> -> vector<16x128xf32>
    %c0_92 = arith.constant 0 : index
    %c0_93 = arith.constant 0 : index
    %270 = vector.load %arg14[%c0_92, %c0_93] : memref<1x128xf32, #tpu.memory_space<vmem>>, vector<1x128xf32>
    %271 = vector.broadcast %270 : vector<1x128xf32> to vector<16x128xf32>
    %272 = arith.addf %269, %271 : vector<16x128xf32>
    %c0_94 = arith.constant 0 : index
    %c0_95 = arith.constant 0 : index
    %273 = vector.load %arg15[%c0_94, %c0_95] : memref<16x128xf32, #tpu.memory_space<vmem>>, vector<16x128xf32>
    tpu.vector_store %arg15[%c0_94, %c0_95], %272 {strides = array<i32>} : memref<16x128xf32, #tpu.memory_space<vmem>>, vector<16x128xf32>,
    return
  }
  func.func @transform_0(%arg0: i32) -> (i32, i32) {
    %c0_i32 = arith.constant 0 : i32
    %c0_i32_0 = arith.constant 0 : i32
    return %arg0, %c0_i32 : i32, i32
  }
  func.func @transform_1(%arg0: i32) -> (i32, i32) {
    %c0_i32 = arith.constant 0 : i32
    %c0_i32_0 = arith.constant 0 : i32
    %c0_i32_1 = arith.constant 0 : i32
    return %c0_i32, %c0_i32_0 : i32, i32
  }
  func.func @transform_2(%arg0: i32) -> (i32, i32) {
    %c0_i32 = arith.constant 0 : i32
    %c0_i32_0 = arith.constant 0 : i32
    %c0_i32_1 = arith.constant 0 : i32
    return %c0_i32, %c0_i32_0 : i32, i32
  }
  func.func @transform_3(%arg0: i32) -> (i32, i32, i32) {
    %c0_i32 = arith.constant 0 : i32
    %c0_i32_0 = arith.constant 0 : i32
    %c0_i32_1 = arith.constant 0 : i32
    %c0_i32_2 = arith.constant 0 : i32
    return %c0_i32, %c0_i32_0, %c0_i32_1 : i32, i32, i32
  }
  func.func @transform_4(%arg0: i32) -> (i32, i32, i32) {
    %c0_i32 = arith.constant 0 : i32
    %c0_i32_0 = arith.constant 0 : i32
    %c0_i32_1 = arith.constant 0 : i32
    %c0_i32_2 = arith.constant 0 : i32
    return %c0_i32, %c0_i32_0, %c0_i32_1 : i32, i32, i32
  }
  func.func @transform_5(%arg0: i32) -> (i32, i32, i32) {
    %c0_i32 = arith.constant 0 : i32
    %c0_i32_0 = arith.constant 0 : i32
    %c0_i32_1 = arith.constant 0 : i32
    %c0_i32_2 = arith.constant 0 : i32
    return %c0_i32, %c0_i32_0, %c0_i32_1 : i32, i32, i32
  }
  func.func @transform_6(%arg0: i32) -> (i32, i32, i32) {
    %c0_i32 = arith.constant 0 : i32
    %c0_i32_0 = arith.constant 0 : i32
    %c0_i32_1 = arith.constant 0 : i32
    %c0_i32_2 = arith.constant 0 : i32
    return %c0_i32, %c0_i32_0, %c0_i32_1 : i32, i32, i32
  }
  func.func @transform_7(%arg0: i32) -> (i32, i32, i32) {
    %c0_i32 = arith.constant 0 : i32
    %c0_i32_0 = arith.constant 0 : i32
    %c0_i32_1 = arith.constant 0 : i32
    %c0_i32_2 = arith.constant 0 : i32
    return %c0_i32, %c0_i32_0, %c0_i32_1 : i32, i32, i32
  }
  func.func @transform_8(%arg0: i32) -> (i32, i32) {
    %c0_i32 = arith.constant 0 : i32
    %c0_i32_0 = arith.constant 0 : i32
    %c0_i32_1 = arith.constant 0 : i32
    return %c0_i32, %c0_i32_0 : i32, i32
  }
  func.func @transform_9(%arg0: i32) -> (i32, i32) {
    %c0_i32 = arith.constant 0 : i32
    %c0_i32_0 = arith.constant 0 : i32
    %c0_i32_1 = arith.constant 0 : i32
    return %c0_i32, %c0_i32_0 : i32, i32
  }
  func.func @transform_10(%arg0: i32) -> (i32, i32) {
    %c0_i32 = arith.constant 0 : i32
    %c0_i32_0 = arith.constant 0 : i32
    %c0_i32_1 = arith.constant 0 : i32
    return %c0_i32, %c0_i32_0 : i32, i32
  }
  func.func @transform_11(%arg0: i32) -> (i32, i32) {
    %c0_i32 = arith.constant 0 : i32
    %c0_i32_0 = arith.constant 0 : i32
    %c0_i32_1 = arith.constant 0 : i32
    return %c0_i32, %c0_i32_0 : i32, i32
  }
  func.func @transform_12(%arg0: i32) -> (i32, i32) {
    %c0_i32 = arith.constant 0 : i32
    %c0_i32_0 = arith.constant 0 : i32
    %c0_i32_1 = arith.constant 0 : i32
    return %c0_i32, %c0_i32_0 : i32, i32
  }
  func.func @transform_13(%arg0: i32) -> (i32, i32) {
    %c0_i32 = arith.constant 0 : i32
    %c0_i32_0 = arith.constant 0 : i32
    %c0_i32_1 = arith.constant 0 : i32
    return %c0_i32, %c0_i32_0 : i32, i32
  }
  func.func @transform_14(%arg0: i32) -> (i32, i32) {
    %c0_i32 = arith.constant 0 : i32
    %c0_i32_0 = arith.constant 0 : i32
    return %arg0, %c0_i32 : i32, i32
  }
}

module attributes {stable_mosaic.version = 11 : i64} {
  func.func @kernel(%arg0: i32, %arg1: memref<16x128xbf16, #tpu.memory_space<vmem>>, %arg2: memref<128x128xbf16, #tpu.memory_space<vmem>>, %arg3: memref<4x128xf32, #tpu.memory_space<vmem>>, %arg4: memref<2x128x128xbf16, #tpu.memory_space<vmem>>, %arg5: memref<2x6x128xf32, #tpu.memory_space<vmem>>, %arg6: memref<2x128x128xbf16, #tpu.memory_space<vmem>>, %arg7: memref<2x1x128xf32, #tpu.memory_space<vmem>>, %arg8: memref<2x128x128xbf16, #tpu.memory_space<vmem>>, %arg9: memref<128x128xbf16, #tpu.memory_space<vmem>>, %arg10: memref<3x128xf32, #tpu.memory_space<vmem>>, %arg11: memref<128x128xbf16, #tpu.memory_space<vmem>>, %arg12: memref<3x128xf32, #tpu.memory_space<vmem>>, %arg13: memref<128x128xbf16, #tpu.memory_space<vmem>>, %arg14: memref<1x128xf32, #tpu.memory_space<vmem>>, %arg15: memref<16x128xf32, #tpu.memory_space<vmem>>) attributes {dimension_semantics = [#tpu.dimension_semantics<parallel>], iteration_bounds = array<i64: 1>, scalar_prefetch = 0 : i64, scratch_operands = 0 : i64, tpu.core_type = #tpu.core_type<tc>, window_params = [{transform_indices = @transform_0, window_bounds = array<i64: 16, 128>}, {pipeline_mode = #tpu.pipeline_mode<synchronous>, transform_indices = @transform_1, window_bounds = array<i64: 128, 128>}, {pipeline_mode = #tpu.pipeline_mode<synchronous>, transform_indices = @transform_2, window_bounds = array<i64: 4, 128>}, {pipeline_mode = #tpu.pipeline_mode<synchronous>, transform_indices = @transform_3, window_bounds = array<i64: 2, 128, 128>}, {pipeline_mode = #tpu.pipeline_mode<synchronous>, transform_indices = @transform_4, window_bounds = array<i64: 2, 6, 128>}, {pipeline_mode = #tpu.pipeline_mode<synchronous>, transform_indices = @transform_5, window_bounds = array<i64: 2, 128, 128>}, {pipeline_mode = #tpu.pipeline_mode<synchronous>, transform_indices = @transform_6, window_bounds = array<i64: 2, 1, 128>}, {pipeline_mode = #tpu.pipeline_mode<synchronous>, transform_indices = @transform_7, window_bounds = array<i64: 2, 128, 128>}, {pipeline_mode = #tpu.pipeline_mode<synchronous>, transform_indices = @transform_8, window_bounds = array<i64: 128, 128>}, {pipeline_mode = #tpu.pipeline_mode<synchronous>, transform_indices = @transform_9, window_bounds = array<i64: 3, 128>}, {pipeline_mode = #tpu.pipeline_mode<synchronous>, transform_indices = @transform_10, window_bounds = array<i64: 128, 128>}, {pipeline_mode = #tpu.pipeline_mode<synchronous>, transform_indices = @transform_11, window_bounds = array<i64: 3, 128>}, {pipeline_mode = #tpu.pipeline_mode<synchronous>, transform_indices = @transform_12, window_bounds = array<i64: 128, 128>}, {pipeline_mode = #tpu.pipeline_mode<synchronous>, transform_indices = @transform_13, window_bounds = array<i64: 1, 128>}, {transform_indices = @transform_14, window_bounds = array<i64: 16, 128>}]} {
    %0 = tpu.iota {dimensions = array<i32: 1>} : vector<1x128xi32>
    %c32_i32 = arith.constant 32 : i32
    %1 = vector.broadcast %c32_i32 : i32 to vector<1x128xi32>
    %2 = arith.cmpi slt, %0, %1 : vector<1x128xi32>
    %3 = arith.extui %2 : vector<1x128xi1> to vector<1x128xi32>
    %4 = arith.sitofp %3 : vector<1x128xi32> to vector<1x128xf32>
    %5 = tpu.iota {dimensions = array<i32: 1>} : vector<1x128xi32>
    %c16_i32 = arith.constant 16 : i32
    %6 = vector.broadcast %c16_i32 : i32 to vector<1x128xi32>
    %7 = arith.cmpi slt, %5, %6 : vector<1x128xi32>
    %8 = arith.extui %7 : vector<1x128xi1> to vector<1x128xi32>
    %9 = arith.sitofp %8 : vector<1x128xi32> to vector<1x128xf32>
    %10 = tpu.iota {dimensions = array<i32: 1>} : vector<1x128xi32>
    %c8_i32 = arith.constant 8 : i32
    %11 = vector.broadcast %c8_i32 : i32 to vector<1x128xi32>
    %12 = arith.cmpi slt, %10, %11 : vector<1x128xi32>
    %13 = arith.extui %12 : vector<1x128xi1> to vector<1x128xi32>
    %14 = arith.sitofp %13 : vector<1x128xi32> to vector<1x128xf32>
    %c0 = arith.constant 0 : index
    %c0_0 = arith.constant 0 : index
    %15 = vector.load %arg3[%c0, %c0_0] : memref<4x128xf32, #tpu.memory_space<vmem>>, vector<4x128xf32>
    %c0_1 = arith.constant 0 : index
    %c0_2 = arith.constant 0 : index
    %16 = vector.load %arg1[%c0_1, %c0_2] : memref<16x128xbf16, #tpu.memory_space<vmem>>, vector<16x128xbf16>
    %c0_3 = arith.constant 0 : index
    %c0_4 = arith.constant 0 : index
    %17 = vector.load %arg2[%c0_3, %c0_4] : memref<128x128xbf16, #tpu.memory_space<vmem>>, vector<128x128xbf16>
    %cst = arith.constant dense<0.000000e+00> : vector<16x128xf32>
    %18 = tpu.matmul %16, %17, %cst {dimension_numbers = #tpu.dot_dimension_numbers<[1], [0], [0], [1], [0, 0, 1, 1], [], []>} : vector<16x128xbf16>, vector<128x128xbf16>, vector<16x128xf32> -> vector<16x128xf32>
    %19 = vector.extract_strided_slice %15 {offsets = [0, 0], sizes = [1, 128], strides = [1, 1]} : vector<4x128xf32> to vector<1x128xf32>
    %20 = vector.broadcast %19 : vector<1x128xf32> to vector<16x128xf32>
    %21 = arith.addf %18, %20 : vector<16x128xf32>
    %22 = vector.extract_strided_slice %15 {offsets = [1, 0], sizes = [1, 128], strides = [1, 1]} : vector<4x128xf32> to vector<1x128xf32>
    %23 = vector.extract_strided_slice %15 {offsets = [2, 0], sizes = [1, 128], strides = [1, 1]} : vector<4x128xf32> to vector<1x128xf32>
    %cst_5 = arith.constant dense<0.000000e+00> : vector<16xf32>
    %24 = vector.multi_reduction <add>, %21, %cst_5 [1] : vector<16x128xf32> to vector<16xf32>
    %25 = vector.shape_cast %24 : vector<16xf32> to vector<16x1xf32>
    %cst_6 = arith.constant 3.125000e-02 : f32
    %26 = vector.broadcast %cst_6 : f32 to vector<16x1xf32>
    %27 = arith.mulf %25, %26 : vector<16x1xf32>
    %28 = vector.broadcast %27 : vector<16x1xf32> to vector<16x128xf32>
    %29 = arith.subf %21, %28 : vector<16x128xf32>
    %30 = vector.broadcast %4 : vector<1x128xf32> to vector<16x128xf32>
    %31 = arith.mulf %29, %30 : vector<16x128xf32>
    %32 = arith.mulf %31, %31 : vector<16x128xf32>
    %cst_7 = arith.constant dense<0.000000e+00> : vector<16xf32>
    %33 = vector.multi_reduction <add>, %32, %cst_7 [1] : vector<16x128xf32> to vector<16xf32>
    %34 = vector.shape_cast %33 : vector<16xf32> to vector<16x1xf32>
    %cst_8 = arith.constant 3.125000e-02 : f32
    %35 = vector.broadcast %cst_8 : f32 to vector<16x1xf32>
    %36 = arith.mulf %34, %35 : vector<16x1xf32>
    %cst_9 = arith.constant 9.99999974E-6 : f32
    %37 = vector.broadcast %cst_9 : f32 to vector<16x1xf32>
    %38 = arith.addf %36, %37 : vector<16x1xf32>
    %39 = math.rsqrt %38 : vector<16x1xf32>
    %40 = vector.broadcast %39 : vector<16x1xf32> to vector<16x128xf32>
    %41 = arith.mulf %31, %40 : vector<16x128xf32>
    %42 = vector.broadcast %22 : vector<1x128xf32> to vector<16x128xf32>
    %43 = arith.mulf %41, %42 : vector<16x128xf32>
    %44 = vector.broadcast %23 : vector<1x128xf32> to vector<16x128xf32>
    %45 = arith.addf %43, %44 : vector<16x128xf32>
    %46 = vector.extract_strided_slice %15 {offsets = [3, 0], sizes = [1, 128], strides = [1, 1]} : vector<4x128xf32> to vector<1x128xf32>
    %47 = vector.broadcast %46 : vector<1x128xf32> to vector<16x128xf32>
    %48 = arith.addf %45, %47 : vector<16x128xf32>
    %c0_10 = arith.constant 0 : index
    %c0_11 = arith.constant 0 : index
    %c0_12 = arith.constant 0 : index
    %49 = vector.load %arg4[%c0_10, %c0_11, %c0_12] : memref<2x128x128xbf16, #tpu.memory_space<vmem>>, vector<1x128x128xbf16>
    %50 = vector.shape_cast %49 : vector<1x128x128xbf16> to vector<128x128xbf16>
    %c0_13 = arith.constant 0 : index
    %c0_14 = arith.constant 0 : index
    %c0_15 = arith.constant 0 : index
    %51 = vector.load %arg5[%c0_13, %c0_14, %c0_15] : memref<2x6x128xf32, #tpu.memory_space<vmem>>, vector<1x6x128xf32>
    %52 = vector.shape_cast %51 : vector<1x6x128xf32> to vector<6x128xf32>
    %c0_16 = arith.constant 0 : index
    %c0_17 = arith.constant 0 : index
    %c0_18 = arith.constant 0 : index
    %53 = vector.load %arg6[%c0_16, %c0_17, %c0_18] : memref<2x128x128xbf16, #tpu.memory_space<vmem>>, vector<1x128x128xbf16>
    %54 = vector.shape_cast %53 : vector<1x128x128xbf16> to vector<128x128xbf16>
    %c0_19 = arith.constant 0 : index
    %c0_20 = arith.constant 0 : index
    %c0_21 = arith.constant 0 : index
    %55 = vector.load %arg7[%c0_19, %c0_20, %c0_21] : memref<2x1x128xf32, #tpu.memory_space<vmem>>, vector<1x1x128xf32>
    %56 = vector.shape_cast %55 : vector<1x1x128xf32> to vector<1x128xf32>
    %c0_22 = arith.constant 0 : index
    %c0_23 = arith.constant 0 : index
    %c0_24 = arith.constant 0 : index
    %57 = vector.load %arg8[%c0_22, %c0_23, %c0_24] : memref<2x128x128xbf16, #tpu.memory_space<vmem>>, vector<1x128x128xbf16>
    %58 = vector.shape_cast %57 : vector<1x128x128xbf16> to vector<128x128xbf16>
    %59 = arith.truncf %48 : vector<16x128xf32> to vector<16x128xbf16>
    %cst_25 = arith.constant dense<0.000000e+00> : vector<16x128xf32>
    %60 = tpu.matmul %59, %50, %cst_25 {dimension_numbers = #tpu.dot_dimension_numbers<[1], [0], [0], [1], [0, 0, 1, 1], [], []>} : vector<16x128xbf16>, vector<128x128xbf16>, vector<16x128xf32> -> vector<16x128xf32>
    %61 = vector.extract_strided_slice %52 {offsets = [0, 0], sizes = [1, 128], strides = [1, 1]} : vector<6x128xf32> to vector<1x128xf32>
    %62 = vector.broadcast %61 : vector<1x128xf32> to vector<16x128xf32>
    %63 = arith.addf %60, %62 : vector<16x128xf32>
    %64 = arith.addf %48, %63 : vector<16x128xf32>
    %65 = vector.extract_strided_slice %52 {offsets = [1, 0], sizes = [1, 128], strides = [1, 1]} : vector<6x128xf32> to vector<1x128xf32>
    %66 = vector.extract_strided_slice %52 {offsets = [2, 0], sizes = [1, 128], strides = [1, 1]} : vector<6x128xf32> to vector<1x128xf32>
    %cst_26 = arith.constant dense<0.000000e+00> : vector<16xf32>
    %67 = vector.multi_reduction <add>, %64, %cst_26 [1] : vector<16x128xf32> to vector<16xf32>
    %68 = vector.shape_cast %67 : vector<16xf32> to vector<16x1xf32>
    %cst_27 = arith.constant 3.125000e-02 : f32
    %69 = vector.broadcast %cst_27 : f32 to vector<16x1xf32>
    %70 = arith.mulf %68, %69 : vector<16x1xf32>
    %71 = vector.broadcast %70 : vector<16x1xf32> to vector<16x128xf32>
    %72 = arith.subf %64, %71 : vector<16x128xf32>
    %73 = vector.broadcast %4 : vector<1x128xf32> to vector<16x128xf32>
    %74 = arith.mulf %72, %73 : vector<16x128xf32>
    %75 = arith.mulf %74, %74 : vector<16x128xf32>
    %cst_28 = arith.constant dense<0.000000e+00> : vector<16xf32>
    %76 = vector.multi_reduction <add>, %75, %cst_28 [1] : vector<16x128xf32> to vector<16xf32>
    %77 = vector.shape_cast %76 : vector<16xf32> to vector<16x1xf32>
    %cst_29 = arith.constant 3.125000e-02 : f32
    %78 = vector.broadcast %cst_29 : f32 to vector<16x1xf32>
    %79 = arith.mulf %77, %78 : vector<16x1xf32>
    %cst_30 = arith.constant 9.99999974E-6 : f32
    %80 = vector.broadcast %cst_30 : f32 to vector<16x1xf32>
    %81 = arith.addf %79, %80 : vector<16x1xf32>
    %82 = math.rsqrt %81 : vector<16x1xf32>
    %83 = vector.broadcast %82 : vector<16x1xf32> to vector<16x128xf32>
    %84 = arith.mulf %74, %83 : vector<16x128xf32>
    %85 = vector.broadcast %65 : vector<1x128xf32> to vector<16x128xf32>
    %86 = arith.mulf %84, %85 : vector<16x128xf32>
    %87 = vector.broadcast %66 : vector<1x128xf32> to vector<16x128xf32>
    %88 = arith.addf %86, %87 : vector<16x128xf32>
    %89 = arith.truncf %88 : vector<16x128xf32> to vector<16x128xbf16>
    %cst_31 = arith.constant dense<0.000000e+00> : vector<16x128xf32>
    %90 = tpu.matmul %89, %54, %cst_31 {dimension_numbers = #tpu.dot_dimension_numbers<[1], [0], [0], [1], [0, 0, 1, 1], [], []>} : vector<16x128xbf16>, vector<128x128xbf16>, vector<16x128xf32> -> vector<16x128xf32>
    %91 = vector.broadcast %56 : vector<1x128xf32> to vector<16x128xf32>
    %92 = arith.addf %90, %91 : vector<16x128xf32>
    %cst_32 = arith.constant 0.000000e+00 : f32
    %93 = vector.broadcast %cst_32 : f32 to vector<16x128xf32>
    %94 = arith.maximumf %92, %93 : vector<16x128xf32>
    %95 = arith.truncf %94 : vector<16x128xf32> to vector<16x128xbf16>
    %cst_33 = arith.constant dense<0.000000e+00> : vector<16x128xf32>
    %96 = tpu.matmul %95, %58, %cst_33 {dimension_numbers = #tpu.dot_dimension_numbers<[1], [0], [0], [1], [0, 0, 1, 1], [], []>} : vector<16x128xbf16>, vector<128x128xbf16>, vector<16x128xf32> -> vector<16x128xf32>
    %97 = vector.extract_strided_slice %52 {offsets = [3, 0], sizes = [1, 128], strides = [1, 1]} : vector<6x128xf32> to vector<1x128xf32>
    %98 = vector.broadcast %97 : vector<1x128xf32> to vector<16x128xf32>
    %99 = arith.addf %96, %98 : vector<16x128xf32>
    %100 = arith.addf %88, %99 : vector<16x128xf32>
    %101 = vector.extract_strided_slice %52 {offsets = [4, 0], sizes = [1, 128], strides = [1, 1]} : vector<6x128xf32> to vector<1x128xf32>
    %102 = vector.extract_strided_slice %52 {offsets = [5, 0], sizes = [1, 128], strides = [1, 1]} : vector<6x128xf32> to vector<1x128xf32>
    %cst_34 = arith.constant dense<0.000000e+00> : vector<16xf32>
    %103 = vector.multi_reduction <add>, %100, %cst_34 [1] : vector<16x128xf32> to vector<16xf32>
    %104 = vector.shape_cast %103 : vector<16xf32> to vector<16x1xf32>
    %cst_35 = arith.constant 3.125000e-02 : f32
    %105 = vector.broadcast %cst_35 : f32 to vector<16x1xf32>
    %106 = arith.mulf %104, %105 : vector<16x1xf32>
    %107 = vector.broadcast %106 : vector<16x1xf32> to vector<16x128xf32>
    %108 = arith.subf %100, %107 : vector<16x128xf32>
    %109 = vector.broadcast %4 : vector<1x128xf32> to vector<16x128xf32>
    %110 = arith.mulf %108, %109 : vector<16x128xf32>
    %111 = arith.mulf %110, %110 : vector<16x128xf32>
    %cst_36 = arith.constant dense<0.000000e+00> : vector<16xf32>
    %112 = vector.multi_reduction <add>, %111, %cst_36 [1] : vector<16x128xf32> to vector<16xf32>
    %113 = vector.shape_cast %112 : vector<16xf32> to vector<16x1xf32>
    %cst_37 = arith.constant 3.125000e-02 : f32
    %114 = vector.broadcast %cst_37 : f32 to vector<16x1xf32>
    %115 = arith.mulf %113, %114 : vector<16x1xf32>
    %cst_38 = arith.constant 9.99999974E-6 : f32
    %116 = vector.broadcast %cst_38 : f32 to vector<16x1xf32>
    %117 = arith.addf %115, %116 : vector<16x1xf32>
    %118 = math.rsqrt %117 : vector<16x1xf32>
    %119 = vector.broadcast %118 : vector<16x1xf32> to vector<16x128xf32>
    %120 = arith.mulf %110, %119 : vector<16x128xf32>
    %121 = vector.broadcast %101 : vector<1x128xf32> to vector<16x128xf32>
    %122 = arith.mulf %120, %121 : vector<16x128xf32>
    %123 = vector.broadcast %102 : vector<1x128xf32> to vector<16x128xf32>
    %124 = arith.addf %122, %123 : vector<16x128xf32>
    %c1 = arith.constant 1 : index
    %c0_39 = arith.constant 0 : index
    %c0_40 = arith.constant 0 : index
    %125 = vector.load %arg4[%c1, %c0_39, %c0_40] : memref<2x128x128xbf16, #tpu.memory_space<vmem>>, vector<1x128x128xbf16>
    %126 = vector.shape_cast %125 : vector<1x128x128xbf16> to vector<128x128xbf16>
    %c1_41 = arith.constant 1 : index
    %c0_42 = arith.constant 0 : index
    %c0_43 = arith.constant 0 : index
    %127 = vector.load %arg5[%c1_41, %c0_42, %c0_43] : memref<2x6x128xf32, #tpu.memory_space<vmem>>, vector<1x6x128xf32>
    %128 = vector.shape_cast %127 : vector<1x6x128xf32> to vector<6x128xf32>
    %c1_44 = arith.constant 1 : index
    %c0_45 = arith.constant 0 : index
    %c0_46 = arith.constant 0 : index
    %129 = vector.load %arg6[%c1_44, %c0_45, %c0_46] : memref<2x128x128xbf16, #tpu.memory_space<vmem>>, vector<1x128x128xbf16>
    %130 = vector.shape_cast %129 : vector<1x128x128xbf16> to vector<128x128xbf16>
    %c1_47 = arith.constant 1 : index
    %c0_48 = arith.constant 0 : index
    %c0_49 = arith.constant 0 : index
    %131 = vector.load %arg7[%c1_47, %c0_48, %c0_49] : memref<2x1x128xf32, #tpu.memory_space<vmem>>, vector<1x1x128xf32>
    %132 = vector.shape_cast %131 : vector<1x1x128xf32> to vector<1x128xf32>
    %c1_50 = arith.constant 1 : index
    %c0_51 = arith.constant 0 : index
    %c0_52 = arith.constant 0 : index
    %133 = vector.load %arg8[%c1_50, %c0_51, %c0_52] : memref<2x128x128xbf16, #tpu.memory_space<vmem>>, vector<1x128x128xbf16>
    %134 = vector.shape_cast %133 : vector<1x128x128xbf16> to vector<128x128xbf16>
    %135 = arith.truncf %124 : vector<16x128xf32> to vector<16x128xbf16>
    %cst_53 = arith.constant dense<0.000000e+00> : vector<16x128xf32>
    %136 = tpu.matmul %135, %126, %cst_53 {dimension_numbers = #tpu.dot_dimension_numbers<[1], [0], [0], [1], [0, 0, 1, 1], [], []>} : vector<16x128xbf16>, vector<128x128xbf16>, vector<16x128xf32> -> vector<16x128xf32>
    %137 = vector.extract_strided_slice %128 {offsets = [0, 0], sizes = [1, 128], strides = [1, 1]} : vector<6x128xf32> to vector<1x128xf32>
    %138 = vector.broadcast %137 : vector<1x128xf32> to vector<16x128xf32>
    %139 = arith.addf %136, %138 : vector<16x128xf32>
    %140 = arith.addf %124, %139 : vector<16x128xf32>
    %141 = vector.extract_strided_slice %128 {offsets = [1, 0], sizes = [1, 128], strides = [1, 1]} : vector<6x128xf32> to vector<1x128xf32>
    %142 = vector.extract_strided_slice %128 {offsets = [2, 0], sizes = [1, 128], strides = [1, 1]} : vector<6x128xf32> to vector<1x128xf32>
    %cst_54 = arith.constant dense<0.000000e+00> : vector<16xf32>
    %143 = vector.multi_reduction <add>, %140, %cst_54 [1] : vector<16x128xf32> to vector<16xf32>
    %144 = vector.shape_cast %143 : vector<16xf32> to vector<16x1xf32>
    %cst_55 = arith.constant 3.125000e-02 : f32
    %145 = vector.broadcast %cst_55 : f32 to vector<16x1xf32>
    %146 = arith.mulf %144, %145 : vector<16x1xf32>
    %147 = vector.broadcast %146 : vector<16x1xf32> to vector<16x128xf32>
    %148 = arith.subf %140, %147 : vector<16x128xf32>
    %149 = vector.broadcast %4 : vector<1x128xf32> to vector<16x128xf32>
    %150 = arith.mulf %148, %149 : vector<16x128xf32>
    %151 = arith.mulf %150, %150 : vector<16x128xf32>
    %cst_56 = arith.constant dense<0.000000e+00> : vector<16xf32>
    %152 = vector.multi_reduction <add>, %151, %cst_56 [1] : vector<16x128xf32> to vector<16xf32>
    %153 = vector.shape_cast %152 : vector<16xf32> to vector<16x1xf32>
    %cst_57 = arith.constant 3.125000e-02 : f32
    %154 = vector.broadcast %cst_57 : f32 to vector<16x1xf32>
    %155 = arith.mulf %153, %154 : vector<16x1xf32>
    %cst_58 = arith.constant 9.99999974E-6 : f32
    %156 = vector.broadcast %cst_58 : f32 to vector<16x1xf32>
    %157 = arith.addf %155, %156 : vector<16x1xf32>
    %158 = math.rsqrt %157 : vector<16x1xf32>
    %159 = vector.broadcast %158 : vector<16x1xf32> to vector<16x128xf32>
    %160 = arith.mulf %150, %159 : vector<16x128xf32>
    %161 = vector.broadcast %141 : vector<1x128xf32> to vector<16x128xf32>
    %162 = arith.mulf %160, %161 : vector<16x128xf32>
    %163 = vector.broadcast %142 : vector<1x128xf32> to vector<16x128xf32>
    %164 = arith.addf %162, %163 : vector<16x128xf32>
    %165 = arith.truncf %164 : vector<16x128xf32> to vector<16x128xbf16>
    %cst_59 = arith.constant dense<0.000000e+00> : vector<16x128xf32>
    %166 = tpu.matmul %165, %130, %cst_59 {dimension_numbers = #tpu.dot_dimension_numbers<[1], [0], [0], [1], [0, 0, 1, 1], [], []>} : vector<16x128xbf16>, vector<128x128xbf16>, vector<16x128xf32> -> vector<16x128xf32>
    %167 = vector.broadcast %132 : vector<1x128xf32> to vector<16x128xf32>
    %168 = arith.addf %166, %167 : vector<16x128xf32>
    %cst_60 = arith.constant 0.000000e+00 : f32
    %169 = vector.broadcast %cst_60 : f32 to vector<16x128xf32>
    %170 = arith.maximumf %168, %169 : vector<16x128xf32>
    %171 = arith.truncf %170 : vector<16x128xf32> to vector<16x128xbf16>
    %cst_61 = arith.constant dense<0.000000e+00> : vector<16x128xf32>
    %172 = tpu.matmul %171, %134, %cst_61 {dimension_numbers = #tpu.dot_dimension_numbers<[1], [0], [0], [1], [0, 0, 1, 1], [], []>} : vector<16x128xbf16>, vector<128x128xbf16>, vector<16x128xf32> -> vector<16x128xf32>
    %173 = vector.extract_strided_slice %128 {offsets = [3, 0], sizes = [1, 128], strides = [1, 1]} : vector<6x128xf32> to vector<1x128xf32>
    %174 = vector.broadcast %173 : vector<1x128xf32> to vector<16x128xf32>
    %175 = arith.addf %172, %174 : vector<16x128xf32>
    %176 = arith.addf %164, %175 : vector<16x128xf32>
    %177 = vector.extract_strided_slice %128 {offsets = [4, 0], sizes = [1, 128], strides = [1, 1]} : vector<6x128xf32> to vector<1x128xf32>
    %178 = vector.extract_strided_slice %128 {offsets = [5, 0], sizes = [1, 128], strides = [1, 1]} : vector<6x128xf32> to vector<1x128xf32>
    %cst_62 = arith.constant dense<0.000000e+00> : vector<16xf32>
    %179 = vector.multi_reduction <add>, %176, %cst_62 [1] : vector<16x128xf32> to vector<16xf32>
    %180 = vector.shape_cast %179 : vector<16xf32> to vector<16x1xf32>
    %cst_63 = arith.constant 3.125000e-02 : f32
    %181 = vector.broadcast %cst_63 : f32 to vector<16x1xf32>
    %182 = arith.mulf %180, %181 : vector<16x1xf32>
    %183 = vector.broadcast %182 : vector<16x1xf32> to vector<16x128xf32>
    %184 = arith.subf %176, %183 : vector<16x128xf32>
    %185 = vector.broadcast %4 : vector<1x128xf32> to vector<16x128xf32>
    %186 = arith.mulf %184, %185 : vector<16x128xf32>
    %187 = arith.mulf %186, %186 : vector<16x128xf32>
    %cst_64 = arith.constant dense<0.000000e+00> : vector<16xf32>
    %188 = vector.multi_reduction <add>, %187, %cst_64 [1] : vector<16x128xf32> to vector<16xf32>
    %189 = vector.shape_cast %188 : vector<16xf32> to vector<16x1xf32>
    %cst_65 = arith.constant 3.125000e-02 : f32
    %190 = vector.broadcast %cst_65 : f32 to vector<16x1xf32>
    %191 = arith.mulf %189, %190 : vector<16x1xf32>
    %cst_66 = arith.constant 9.99999974E-6 : f32
    %192 = vector.broadcast %cst_66 : f32 to vector<16x1xf32>
    %193 = arith.addf %191, %192 : vector<16x1xf32>
    %194 = math.rsqrt %193 : vector<16x1xf32>
    %195 = vector.broadcast %194 : vector<16x1xf32> to vector<16x128xf32>
    %196 = arith.mulf %186, %195 : vector<16x128xf32>
    %197 = vector.broadcast %177 : vector<1x128xf32> to vector<16x128xf32>
    %198 = arith.mulf %196, %197 : vector<16x128xf32>
    %199 = vector.broadcast %178 : vector<1x128xf32> to vector<16x128xf32>
    %200 = arith.addf %198, %199 : vector<16x128xf32>
    %c0_67 = arith.constant 0 : index
    %c0_68 = arith.constant 0 : index
    %201 = vector.load %arg10[%c0_67, %c0_68] : memref<3x128xf32, #tpu.memory_space<vmem>>, vector<3x128xf32>
    %c0_69 = arith.constant 0 : index
    %c0_70 = arith.constant 0 : index
    %202 = vector.load %arg12[%c0_69, %c0_70] : memref<3x128xf32, #tpu.memory_space<vmem>>, vector<3x128xf32>
    %203 = arith.truncf %200 : vector<16x128xf32> to vector<16x128xbf16>
    %c0_71 = arith.constant 0 : index
    %c0_72 = arith.constant 0 : index
    %204 = vector.load %arg9[%c0_71, %c0_72] : memref<128x128xbf16, #tpu.memory_space<vmem>>, vector<128x128xbf16>
    %cst_73 = arith.constant dense<0.000000e+00> : vector<16x128xf32>
    %205 = tpu.matmul %203, %204, %cst_73 {dimension_numbers = #tpu.dot_dimension_numbers<[1], [0], [0], [1], [0, 0, 1, 1], [], []>} : vector<16x128xbf16>, vector<128x128xbf16>, vector<16x128xf32> -> vector<16x128xf32>
    %206 = vector.extract_strided_slice %201 {offsets = [0, 0], sizes = [1, 128], strides = [1, 1]} : vector<3x128xf32> to vector<1x128xf32>
    %207 = vector.broadcast %206 : vector<1x128xf32> to vector<16x128xf32>
    %208 = arith.addf %205, %207 : vector<16x128xf32>
    %209 = vector.extract_strided_slice %201 {offsets = [1, 0], sizes = [1, 128], strides = [1, 1]} : vector<3x128xf32> to vector<1x128xf32>
    %210 = vector.extract_strided_slice %201 {offsets = [2, 0], sizes = [1, 128], strides = [1, 1]} : vector<3x128xf32> to vector<1x128xf32>
    %cst_74 = arith.constant dense<0.000000e+00> : vector<16xf32>
    %211 = vector.multi_reduction <add>, %208, %cst_74 [1] : vector<16x128xf32> to vector<16xf32>
    %212 = vector.shape_cast %211 : vector<16xf32> to vector<16x1xf32>
    %cst_75 = arith.constant 6.250000e-02 : f32
    %213 = vector.broadcast %cst_75 : f32 to vector<16x1xf32>
    %214 = arith.mulf %212, %213 : vector<16x1xf32>
    %215 = vector.broadcast %214 : vector<16x1xf32> to vector<16x128xf32>
    %216 = arith.subf %208, %215 : vector<16x128xf32>
    %217 = vector.broadcast %9 : vector<1x128xf32> to vector<16x128xf32>
    %218 = arith.mulf %216, %217 : vector<16x128xf32>
    %219 = arith.mulf %218, %218 : vector<16x128xf32>
    %cst_76 = arith.constant dense<0.000000e+00> : vector<16xf32>
    %220 = vector.multi_reduction <add>, %219, %cst_76 [1] : vector<16x128xf32> to vector<16xf32>
    %221 = vector.shape_cast %220 : vector<16xf32> to vector<16x1xf32>
    %cst_77 = arith.constant 6.250000e-02 : f32
    %222 = vector.broadcast %cst_77 : f32 to vector<16x1xf32>
    %223 = arith.mulf %221, %222 : vector<16x1xf32>
    %cst_78 = arith.constant 9.99999974E-6 : f32
    %224 = vector.broadcast %cst_78 : f32 to vector<16x1xf32>
    %225 = arith.addf %223, %224 : vector<16x1xf32>
    %226 = math.rsqrt %225 : vector<16x1xf32>
    %227 = vector.broadcast %226 : vector<16x1xf32> to vector<16x128xf32>
    %228 = arith.mulf %218, %227 : vector<16x128xf32>
    %229 = vector.broadcast %209 : vector<1x128xf32> to vector<16x128xf32>
    %230 = arith.mulf %228, %229 : vector<16x128xf32>
    %231 = vector.broadcast %210 : vector<1x128xf32> to vector<16x128xf32>
    %232 = arith.addf %230, %231 : vector<16x128xf32>
    %cst_79 = arith.constant 0.000000e+00 : f32
    %233 = vector.broadcast %cst_79 : f32 to vector<16x128xf32>
    %234 = arith.maximumf %232, %233 : vector<16x128xf32>
    %235 = arith.truncf %234 : vector<16x128xf32> to vector<16x128xbf16>
    %c0_80 = arith.constant 0 : index
    %c0_81 = arith.constant 0 : index
    %236 = vector.load %arg11[%c0_80, %c0_81] : memref<128x128xbf16, #tpu.memory_space<vmem>>, vector<128x128xbf16>
    %cst_82 = arith.constant dense<0.000000e+00> : vector<16x128xf32>
    %237 = tpu.matmul %235, %236, %cst_82 {dimension_numbers = #tpu.dot_dimension_numbers<[1], [0], [0], [1], [0, 0, 1, 1], [], []>} : vector<16x128xbf16>, vector<128x128xbf16>, vector<16x128xf32> -> vector<16x128xf32>
    %238 = vector.extract_strided_slice %202 {offsets = [0, 0], sizes = [1, 128], strides = [1, 1]} : vector<3x128xf32> to vector<1x128xf32>
    %239 = vector.broadcast %238 : vector<1x128xf32> to vector<16x128xf32>
    %240 = arith.addf %237, %239 : vector<16x128xf32>
    %241 = vector.extract_strided_slice %202 {offsets = [1, 0], sizes = [1, 128], strides = [1, 1]} : vector<3x128xf32> to vector<1x128xf32>
    %242 = vector.extract_strided_slice %202 {offsets = [2, 0], sizes = [1, 128], strides = [1, 1]} : vector<3x128xf32> to vector<1x128xf32>
    %cst_83 = arith.constant dense<0.000000e+00> : vector<16xf32>
    %243 = vector.multi_reduction <add>, %240, %cst_83 [1] : vector<16x128xf32> to vector<16xf32>
    %244 = vector.shape_cast %243 : vector<16xf32> to vector<16x1xf32>
    %cst_84 = arith.constant 1.250000e-01 : f32
    %245 = vector.broadcast %cst_84 : f32 to vector<16x1xf32>
    %246 = arith.mulf %244, %245 : vector<16x1xf32>
    %247 = vector.broadcast %246 : vector<16x1xf32> to vector<16x128xf32>
    %248 = arith.subf %240, %247 : vector<16x128xf32>
    %249 = vector.broadcast %14 : vector<1x128xf32> to vector<16x128xf32>
    %250 = arith.mulf %248, %249 : vector<16x128xf32>
    %251 = arith.mulf %250, %250 : vector<16x128xf32>
    %cst_85 = arith.constant dense<0.000000e+00> : vector<16xf32>
    %252 = vector.multi_reduction <add>, %251, %cst_85 [1] : vector<16x128xf32> to vector<16xf32>
    %253 = vector.shape_cast %252 : vector<16xf32> to vector<16x1xf32>
    %cst_86 = arith.constant 1.250000e-01 : f32
    %254 = vector.broadcast %cst_86 : f32 to vector<16x1xf32>
    %255 = arith.mulf %253, %254 : vector<16x1xf32>
    %cst_87 = arith.constant 9.99999974E-6 : f32
    %256 = vector.broadcast %cst_87 : f32 to vector<16x1xf32>
    %257 = arith.addf %255, %256 : vector<16x1xf32>
    %258 = math.rsqrt %257 : vector<16x1xf32>
    %259 = vector.broadcast %258 : vector<16x1xf32> to vector<16x128xf32>
    %260 = arith.mulf %250, %259 : vector<16x128xf32>
    %261 = vector.broadcast %241 : vector<1x128xf32> to vector<16x128xf32>
    %262 = arith.mulf %260, %261 : vector<16x128xf32>
    %263 = vector.broadcast %242 : vector<1x128xf32> to vector<16x128xf32>
    %264 = arith.addf %262, %263 : vector<16x128xf32>
    %cst_88 = arith.constant 0.000000e+00 : f32
    %265 = vector.broadcast %cst_88 : f32 to vector<16x128xf32>
    %266 = arith.maximumf %264, %265 : vector<16x128xf32>
    %267 = arith.truncf %266 : vector<16x128xf32> to vector<16x128xbf16>
    %c0_89 = arith.constant 0 : index
    %c0_90 = arith.constant 0 : index
    %268 = vector.load %arg13[%c0_89, %c0_90] : memref<128x128xbf16, #tpu.memory_space<vmem>>, vector<128x128xbf16>
    %cst_91 = arith.constant dense<0.000000e+00> : vector<16x128xf32>
    %269 = tpu.matmul %267, %268, %cst_91 {dimension_numbers = #tpu.dot_dimension_numbers<[1], [0], [0], [1], [0, 0, 1, 1], [], []>} : vector<16x128xbf16>, vector<128x128xbf16>, vector<16x128xf32> -> vector<16x128xf32>
    %c0_92 = arith.constant 0 : index
    %c0_93 = arith.constant 0 : index
    %270 = vector.load %arg14[%c0_92, %c0_93] : memref<1x128xf32, #tpu.memory_space<vmem>>, vector<1x128xf32>
    %271 = vector.broadcast %270 : vector<1x128xf32> to vector<16x128xf32>
    %272 = arith.addf %269, %271 : vector<16x128xf32>
    %c0_94 = arith.constant 0 : index
    %c0_95 = arith.constant 0 : index
    %273 = vector.load %arg15[%c0_94, %c0_95] : memref<16x128xf32, #tpu.memory_space<vmem>>, vector<16x128xf32>
    tpu.vector_store %arg15[%c0_94, %c0_95], %272 {strides = array<i32>} : memref<16x128xf32, #tpu.memory_space<vmem>>, vector<16x128xf32>,
    return
  }
  func.func @transform_0(%arg0: i32) -> (i32, i32) {
    %c0_i32 = arith.constant 0 : i32
    %c0_i32_0 = arith.constant 0 : i32
    return %arg0, %c0_i32 : i32, i32
  }
  func.func @transform_1(%arg0: i32) -> (i32, i32) {
    %c0_i32 = arith.constant 0 : i32
    %c0_i32_0 = arith.constant 0 : i32
    %c0_i32_1 = arith.constant 0 : i32
    return %c0_i32, %c0_i32_0 : i32, i32
  }
  func.func @transform_2(%arg0: i32) -> (i32, i32) {
    %c0_i32 = arith.constant 0 : i32
    %c0_i32_0 = arith.constant 0 : i32
    %c0_i32_1 = arith.constant 0 : i32
    return %c0_i32, %c0_i32_0 : i32, i32
  }
  func.func @transform_3(%arg0: i32) -> (i32, i32, i32) {
    %c0_i32 = arith.constant 0 : i32
    %c0_i32_0 = arith.constant 0 : i32
    %c0_i32_1 = arith.constant 0 : i32
    %c0_i32_2 = arith.constant 0 : i32
    return %c0_i32, %c0_i32_0, %c0_i32_1 : i32, i32, i32
  }
  func.func @transform_4(%arg0: i32) -> (i32, i32, i32) {
    %c0_i32 = arith.constant 0 : i32
    %c0_i32_0 = arith.constant 0 : i32
    %c0_i32_1 = arith.constant 0 : i32
    %c0_i32_2 = arith.constant 0 : i32
    return %c0_i32, %c0_i32_0, %c0_i32_1 : i32, i32, i32
  }
  func.func @transform_5(%arg0: i32) -> (i32, i32, i32) {
    %c0_i32 = arith.constant 0 : i32
    %c0_i32_0 = arith.constant 0 : i32
    %c0_i32_1 = arith.constant 0 : i32
    %c0_i32_2 = arith.constant 0 : i32
    return %c0_i32, %c0_i32_0, %c0_i32_1 : i32, i32, i32
  }
  func.func @transform_6(%arg0: i32) -> (i32, i32, i32) {
    %c0_i32 = arith.constant 0 : i32
    %c0_i32_0 = arith.constant 0 : i32
    %c0_i32_1 = arith.constant 0 : i32
    %c0_i32_2 = arith.constant 0 : i32
    return %c0_i32, %c0_i32_0, %c0_i32_1 : i32, i32, i32
  }
  func.func @transform_7(%arg0: i32) -> (i32, i32, i32) {
    %c0_i32 = arith.constant 0 : i32
    %c0_i32_0 = arith.constant 0 : i32
    %c0_i32_1 = arith.constant 0 : i32
    %c0_i32_2 = arith.constant 0 : i32
    return %c0_i32, %c0_i32_0, %c0_i32_1 : i32, i32, i32
  }
  func.func @transform_8(%arg0: i32) -> (i32, i32) {
    %c0_i32 = arith.constant 0 : i32
    %c0_i32_0 = arith.constant 0 : i32
    %c0_i32_1 = arith.constant 0 : i32
    return %c0_i32, %c0_i32_0 : i32, i32
  }
  func.func @transform_9(%arg0: i32) -> (i32, i32) {
    %c0_i32 = arith.constant 0 : i32
    %c0_i32_0 = arith.constant 0 : i32
    %c0_i32_1 = arith.constant 0 : i32
    return %c0_i32, %c0_i32_0 : i32, i32
  }
  func.func @transform_10(%arg0: i32) -> (i32, i32) {
    %c0_i32 = arith.constant 0 : i32
    %c0_i32_0 = arith.constant 0 : i32
    %c0_i32_1 = arith.constant 0 : i32
    return %c0_i32, %c0_i32_0 : i32, i32
  }
  func.func @transform_11(%arg0: i32) -> (i32, i32) {
    %c0_i32 = arith.constant 0 : i32
    %c0_i32_0 = arith.constant 0 : i32
    %c0_i32_1 = arith.constant 0 : i32
    return %c0_i32, %c0_i32_0 : i32, i32
  }
  func.func @transform_12(%arg0: i32) -> (i32, i32) {
    %c0_i32 = arith.constant 0 : i32
    %c0_i32_0 = arith.constant 0 : i32
    %c0_i32_1 = arith.constant 0 : i32
    return %c0_i32, %c0_i32_0 : i32, i32
  }
  func.func @transform_13(%arg0: i32) -> (i32, i32) {
    %c0_i32 = arith.constant 0 : i32
    %c0_i32_0 = arith.constant 0 : i32
    %c0_i32_1 = arith.constant 0 : i32
    return %c0_i32, %c0_i32_0 : i32, i32
  }
  func.func @transform_14(%arg0: i32) -> (i32, i32) {
    %c0_i32 = arith.constant 0 : i32
    %c0_i32_0 = arith.constant 0 : i32
    return %arg0, %c0_i32 : i32, i32
  }
}

</mosaic_0001>

<llo_original>
// kernel: tpu_custom_call.1
$region0: #{tpu_custom_call.1}
  #allocation0 [shape = 'u32[]', space=smem, size = 0x4, offset = 0x4, fixed_abs, tag = 'smem constant byte address 0x4 - core index']
  #allocation1 [shape = 'u32[144,128]{1,0:T(1,128)}', space=vmem, size = 0x12000, scoped, tag = 'internal scratch']
  %s0 = inlined_call_operand.hbm [shape: bf16[16,128], index: 0, kind: input, shape index: {}]
  %s1 = inlined_call_operand.hbm [shape: bf16[128,128], index: 1, kind: input, shape index: {}]
  %s2 = inlined_call_operand.hbm [shape: f32[4,128], index: 2, kind: input, shape index: {}]
  %s3 = inlined_call_operand.hbm [shape: bf16[2,128,128], index: 3, kind: input, shape index: {}]
  %s4 = inlined_call_operand.vmem [shape: f32[2,6,128], index: 4, kind: input, shape index: {}]
  %s5 = inlined_call_operand.hbm [shape: bf16[2,128,128], index: 5, kind: input, shape index: {}]
  %s6 = inlined_call_operand.hbm [shape: f32[2,1,128], index: 6, kind: input, shape index: {}]
  %s7 = inlined_call_operand.hbm [shape: bf16[2,128,128], index: 7, kind: input, shape index: {}]
  %s8 = inlined_call_operand.hbm [shape: bf16[128,128], index: 8, kind: input, shape index: {}]
  %s9 = inlined_call_operand.hbm [shape: f32[3,128], index: 9, kind: input, shape index: {}]
  %s10 = inlined_call_operand.vmem [shape: bf16[128,128], index: 10, kind: input, shape index: {}]
  %s11 = inlined_call_operand.vmem [shape: f32[3,128], index: 11, kind: input, shape index: {}]
  %s12 = inlined_call_operand.hbm [shape: bf16[128,128], index: 12, kind: input, shape index: {}]
  %s13 = inlined_call_operand.vmem [shape: f32[1,128], index: 13, kind: input, shape index: {}]
  %s14 = inlined_call_operand.hbm [shape: f32[16,128], index: 14, kind: output, shape index: {}]
  %s15 = sld [smem:[#allocation0]]
  $region106: #{tpu_custom_call.1} parent=0
    _
  %s17 = ssub.s32 1, %s15
  %s18 = scalar_select 0, %s17, %s15
  $region1: #{tpu_custom_call.1} parent=0
    #allocation2 [shape = 'u8[4096]{0}', space=vmem, size = 0x1000, scoped, tag = 'input window, operand 0, single buffered']
    #allocation3 [shape = 's32[1]{0}', space=sflag, size = 0x4, scoped, tag = 'scoped memory for tpu_custom_call.1']
    #allocation4 [shape = 's32[1]{0}', space=sflag, size = 0x4, scoped, tag = 'scoped memory for tpu_custom_call.1']
    #allocation5 [shape = 'u8[32768]{0}', space=vmem, size = 0x8000, scoped, tag = 'input window, operand 1, single buffered']
    #allocation6 [shape = 's32[1]{0}', space=sflag, size = 0x4, scoped, tag = 'scoped memory for tpu_custom_call.1']
    #allocation7 [shape = 'u8[2048]{0}', space=vmem, size = 0x800, scoped, tag = 'input window, operand 2, single buffered']
    #allocation8 [shape = 'u8[65536]{0}', space=vmem, size = 0x10000, scoped, tag = 'input window, operand 3, single buffered']
    #allocation9 [shape = 's32[1]{0}', space=sflag, size = 0x4, scoped, tag = 'scoped memory for tpu_custom_call.1']
    #allocation10 [shape = 'u8[65536]{0}', space=vmem, size = 0x10000, scoped, tag = 'input window, operand 5, single buffered']
    #allocation11 [shape = 'u8[1024]{0}', space=vmem, size = 0x400, scoped, tag = 'input window, operand 6, single buffered']
    #allocation12 [shape = 's32[1]{0}', space=sflag, size = 0x4, scoped, tag = 'scoped memory for tpu_custom_call.1']
    #allocation13 [shape = 'u8[65536]{0}', space=vmem, size = 0x10000, scoped, tag = 'input window, operand 7, single buffered']
    #allocation14 [shape = 'u8[32768]{0}', space=vmem, size = 0x8000, scoped, tag = 'input window, operand 8, single buffered']
    #allocation15 [shape = 's32[1]{0}', space=sflag, size = 0x4, scoped, tag = 'scoped memory for tpu_custom_call.1']
    #allocation16 [shape = 'u8[2048]{0}', space=vmem, size = 0x800, scoped, tag = 'input window, operand 9, single buffered']
    #allocation17 [shape = 'u8[32768]{0}', space=vmem, size = 0x8000, scoped, tag = 'input window, operand 12, single buffered']
    #allocation18 [shape = 's32[1]{0}', space=sflag, size = 0x4, scoped, tag = 'scoped memory for tpu_custom_call.1']
    #allocation19 [shape = 'u8[8192]{0}', space=vmem, size = 0x2000, scoped, tag = 'output window, operand 0, single buffered']
    %19 = vsyncpa [#allocation3], 0
    %20 = vsyncpa [#allocation6], 0
    %21 = vsyncpa [#allocation9], 0
    %22 = vsyncpa [#allocation12], 0
    %23 = vsyncpa [#allocation15], 0
    %24 = vsyncpa [#allocation18], 0
    %25 = vsyncpa [#allocation4], 0
    // Predicated region
    $region2: #{tpu_custom_call.1} parent=1 // pred_check
      _
    $region3: #{tpu_custom_call.1} parent=1 // pred_check_branch
      %27 = sbr.rel (0) target = $region5
    $region4: #{tpu_custom_call.1} parent=1 // pred_region
      %s29 = ssub.s32 128, 128
      %30 = vsyncadd [#allocation3], %s29
      %s31 = sshll.u32 [#allocation2], 4
      %s32 = int_to_ptr.vmem [resolvable:$true] %s31
      %37 = dma.hbm_to_vmem [thread:$0]  %s0, 128, %s32, [#allocation3], 64, 64, 4
    $region5: #{tpu_custom_call.1} parent=1 // pred_fallthru
      _
    // Predicated region
    $region6: #{tpu_custom_call.1} parent=1 // pred_check
      _
    $region7: #{tpu_custom_call.1} parent=1 // pred_check_branch
      %39 = sbr.rel (0) target = $region9
    $region8: #{tpu_custom_call.1} parent=1 // pred_region
      %s41 = ssub.s32 1024, 1024
      %42 = vsyncadd [#allocation6], %s41
      %s43 = sshll.u32 [#allocation5], 4
      %s44 = int_to_ptr.vmem [resolvable:$true] %s43
      %49 = dma.hbm_to_vmem [thread:$0]  %s1, 1024, %s44, [#allocation6], 64, 64, 4
    $region9: #{tpu_custom_call.1} parent=1 // pred_fallthru
      _
    // Predicated region
    $region10: #{tpu_custom_call.1} parent=1 // pred_check
      _
    $region11: #{tpu_custom_call.1} parent=1 // pred_check_branch
      %51 = sbr.rel (0) target = $region13
    $region12: #{tpu_custom_call.1} parent=1 // pred_region
      %s53 = ssub.s32 64, 64
      %54 = vsyncadd [#allocation6], %s53
      %s56 = sshll.u32 [#allocation7], 4
      %s57 = int_to_ptr.vmem [resolvable:$true] %s56
      %59 = dma.hbm_to_vmem [thread:$0]  %s2, 64, %s57, [#allocation6]
    $region13: #{tpu_custom_call.1} parent=1 // pred_fallthru
      _
    // Predicated region
    $region14: #{tpu_custom_call.1} parent=1 // pred_check
      _
    $region15: #{tpu_custom_call.1} parent=1 // pred_check_branch
      %61 = sbr.rel (0) target = $region17
    $region16: #{tpu_custom_call.1} parent=1 // pred_region
      %s63 = ssub.s32 2048, 2048
      %64 = vsyncadd [#allocation9], %s63
      %s65 = sshll.u32 [#allocation8], 4
      %s66 = int_to_ptr.vmem [resolvable:$true] %s65
      %71 = dma.hbm_to_vmem [thread:$0]  %s3, 2048, %s66, [#allocation9], 64, 64, 4
    $region17: #{tpu_custom_call.1} parent=1 // pred_fallthru
      _
    // Predicated region
    $region18: #{tpu_custom_call.1} parent=1 // pred_check
      _
    $region19: #{tpu_custom_call.1} parent=1 // pred_check_branch
      %73 = sbr.rel (0) target = $region21
    $region20: #{tpu_custom_call.1} parent=1 // pred_region
      _
    $region21: #{tpu_custom_call.1} parent=1 // pred_fallthru
      _
    // Predicated region
    $region22: #{tpu_custom_call.1} parent=1 // pred_check
      _
    $region23: #{tpu_custom_call.1} parent=1 // pred_check_branch
      %75 = sbr.rel (0) target = $region25
    $region24: #{tpu_custom_call.1} parent=1 // pred_region
      %s77 = ssub.s32 2048, 2048
      %78 = vsyncadd [#allocation9], %s77
      %s79 = sshll.u32 [#allocation10], 4
      %s80 = int_to_ptr.vmem [resolvable:$true] %s79
      %85 = dma.hbm_to_vmem [thread:$0]  %s5, 2048, %s80, [#allocation9], 64, 64, 4
    $region25: #{tpu_custom_call.1} parent=1 // pred_fallthru
      _
    // Predicated region
    $region26: #{tpu_custom_call.1} parent=1 // pred_check
      _
    $region27: #{tpu_custom_call.1} parent=1 // pred_check_branch
      %87 = sbr.rel (0) target = $region29
    $region28: #{tpu_custom_call.1} parent=1 // pred_region
      %s89 = ssub.s32 32, 32
      %90 = vsyncadd [#allocation12], %s89
      %s91 = sshll.u32 [#allocation11], 4
      %s92 = int_to_ptr.vmem [resolvable:$true] %s91
      %97 = dma.hbm_to_vmem [thread:$0]  %s6, 32, %s92, [#allocation12], 16, 16, 1
    $region29: #{tpu_custom_call.1} parent=1 // pred_fallthru
      _
    // Predicated region
    $region30: #{tpu_custom_call.1} parent=1 // pred_check
      _
    $region31: #{tpu_custom_call.1} parent=1 // pred_check_branch
      %99 = sbr.rel (0) target = $region33
    $region32: #{tpu_custom_call.1} parent=1 // pred_region
      %s101 = ssub.s32 2048, 2048
      %102 = vsyncadd [#allocation12], %s101
      %s103 = sshll.u32 [#allocation13], 4
      %s104 = int_to_ptr.vmem [resolvable:$true] %s103
      %109 = dma.hbm_to_vmem [thread:$0]  %s7, 2048, %s104, [#allocation12], 64, 64, 4
    $region33: #{tpu_custom_call.1} parent=1 // pred_fallthru
      _
    // Predicated region
    $region34: #{tpu_custom_call.1} parent=1 // pred_check
      _
    $region35: #{tpu_custom_call.1} parent=1 // pred_check_branch
      %111 = sbr.rel (0) target = $region37
    $region36: #{tpu_custom_call.1} parent=1 // pred_region
      %s113 = ssub.s32 1024, 1024
      %114 = vsyncadd [#allocation15], %s113
      %s115 = sshll.u32 [#allocation14], 4
      %s116 = int_to_ptr.vmem [resolvable:$true] %s115
      %121 = dma.hbm_to_vmem [thread:$0]  %s8, 1024, %s116, [#allocation15], 64, 64, 4
    $region37: #{tpu_custom_call.1} parent=1 // pred_fallthru
      _
    // Predicated region
    $region38: #{tpu_custom_call.1} parent=1 // pred_check
      _
    $region39: #{tpu_custom_call.1} parent=1 // pred_check_branch
      %123 = sbr.rel (0) target = $region41
    $region40: #{tpu_custom_call.1} parent=1 // pred_region
      %s125 = ssub.s32 64, 64
      %126 = vsyncadd [#allocation15], %s125
      %s128 = sshll.u32 [#allocation16], 4
      %s129 = int_to_ptr.vmem [resolvable:$true] %s128
      %131 = dma.hbm_to_vmem [thread:$0]  %s9, 64, %s129, [#allocation15]
    $region41: #{tpu_custom_call.1} parent=1 // pred_fallthru
      _
    // Predicated region
    $region42: #{tpu_custom_call.1} parent=1 // pred_check
      _
    $region43: #{tpu_custom_call.1} parent=1 // pred_check_branch
      %133 = sbr.rel (0) target = $region45
    $region44: #{tpu_custom_call.1} parent=1 // pred_region
      _
    $region45: #{tpu_custom_call.1} parent=1 // pred_fallthru
      _
    // Predicated region
    $region46: #{tpu_custom_call.1} parent=1 // pred_check
      _
    $region47: #{tpu_custom_call.1} parent=1 // pred_check_branch
      %135 = sbr.rel (0) target = $region49
    $region48: #{tpu_custom_call.1} parent=1 // pred_region
      _
    $region49: #{tpu_custom_call.1} parent=1 // pred_fallthru
      _
    // Predicated region
    $region50: #{tpu_custom_call.1} parent=1 // pred_check
      _
    $region51: #{tpu_custom_call.1} parent=1 // pred_check_branch
      %137 = sbr.rel (0) target = $region53
    $region52: #{tpu_custom_call.1} parent=1 // pred_region
      %s139 = ssub.s32 1024, 1024
      %140 = vsyncadd [#allocation18], %s139
      %s141 = sshll.u32 [#allocation17], 4
      %s142 = int_to_ptr.vmem [resolvable:$true] %s141
      %147 = dma.hbm_to_vmem [thread:$0]  %s12, 1024, %s142, [#allocation18], 64, 64, 4
    $region53: #{tpu_custom_call.1} parent=1 // pred_fallthru
      _
    // Predicated region
    $region54: #{tpu_custom_call.1} parent=1 // pred_check
      _
    $region55: #{tpu_custom_call.1} parent=1 // pred_check_branch
      %149 = sbr.rel (0) target = $region57
    $region56: #{tpu_custom_call.1} parent=1 // pred_region
      _
    $region57: #{tpu_custom_call.1} parent=1 // pred_fallthru
      _
    // Predicated region
    $region58: #{tpu_custom_call.1} parent=1 // pred_check
      _
    $region59: #{tpu_custom_call.1} parent=1 // pred_check_branch
      %151 = sbr.rel (0) target = $region61
    $region60: #{tpu_custom_call.1} parent=1 // pred_region
      %152 = dma.done [#allocation3], 128
    $region61: #{tpu_custom_call.1} parent=1 // pred_fallthru
      _
    // Predicated region
    $region62: #{tpu_custom_call.1} parent=1 // pred_check
      _
    $region63: #{tpu_custom_call.1} parent=1 // pred_check_branch
      %154 = sbr.rel (0) target = $region65
    $region64: #{tpu_custom_call.1} parent=1 // pred_region
      %155 = dma.done [#allocation6], 1024
    $region65: #{tpu_custom_call.1} parent=1 // pred_fallthru
      _
    // Predicated region
    $region66: #{tpu_custom_call.1} parent=1 // pred_check
      _
    $region67: #{tpu_custom_call.1} parent=1 // pred_check_branch
      %157 = sbr.rel (0) target = $region69
    $region68: #{tpu_custom_call.1} parent=1 // pred_region
      %158 = dma.done [#allocation6], 64
    $region69: #{tpu_custom_call.1} parent=1 // pred_fallthru
      _
    // Predicated region
    $region70: #{tpu_custom_call.1} parent=1 // pred_check
      _
    $region71: #{tpu_custom_call.1} parent=1 // pred_check_branch
      %160 = sbr.rel (0) target = $region73
    $region72: #{tpu_custom_call.1} parent=1 // pred_region
      %161 = dma.done [#allocation9], 2048
    $region73: #{tpu_custom_call.1} parent=1 // pred_fallthru
      _
    // Predicated region
    $region74: #{tpu_custom_call.1} parent=1 // pred_check
      _
    $region75: #{tpu_custom_call.1} parent=1 // pred_check_branch
      %163 = sbr.rel (0) target = $region77
    $region76: #{tpu_custom_call.1} parent=1 // pred_region
      %164 = dma.done [#allocation9], 2048
    $region77: #{tpu_custom_call.1} parent=1 // pred_fallthru
      _
    // Predicated region
    $region78: #{tpu_custom_call.1} parent=1 // pred_check
      _
    $region79: #{tpu_custom_call.1} parent=1 // pred_check_branch
      %166 = sbr.rel (0) target = $region81
    $region80: #{tpu_custom_call.1} parent=1 // pred_region
      %167 = dma.done [#allocation12], 32
    $region81: #{tpu_custom_call.1} parent=1 // pred_fallthru
      _
    // Predicated region
    $region82: #{tpu_custom_call.1} parent=1 // pred_check
      _
    $region83: #{tpu_custom_call.1} parent=1 // pred_check_branch
      %169 = sbr.rel (0) target = $region85
    $region84: #{tpu_custom_call.1} parent=1 // pred_region
      %170 = dma.done [#allocation12], 2048
    $region85: #{tpu_custom_call.1} parent=1 // pred_fallthru
      _
    // Predicated region
    $region86: #{tpu_custom_call.1} parent=1 // pred_check
      _
    $region87: #{tpu_custom_call.1} parent=1 // pred_check_branch
      %172 = sbr.rel (0) target = $region89
    $region88: #{tpu_custom_call.1} parent=1 // pred_region
      %173 = dma.done [#allocation15], 1024
    $region89: #{tpu_custom_call.1} parent=1 // pred_fallthru
      _
    // Predicated region
    $region90: #{tpu_custom_call.1} parent=1 // pred_check
      _
    $region91: #{tpu_custom_call.1} parent=1 // pred_check_branch
      %175 = sbr.rel (0) target = $region93
    $region92: #{tpu_custom_call.1} parent=1 // pred_region
      %176 = dma.done [#allocation15], 64
    $region93: #{tpu_custom_call.1} parent=1 // pred_fallthru
      _
    // Predicated region
    $region94: #{tpu_custom_call.1} parent=1 // pred_check
      _
    $region95: #{tpu_custom_call.1} parent=1 // pred_check_branch
      %178 = sbr.rel (0) target = $region97
    $region96: #{tpu_custom_call.1} parent=1 // pred_region
      %179 = dma.done [#allocation18], 1024
    $region97: #{tpu_custom_call.1} parent=1 // pred_fallthru
      _
    %v181 = vlaneseq
    %v182 = vand.u32 %v181, 127
    %vm183 = vcmp.lt.s32.totalorder %v182, 32
    %v184 = vsel %vm183, 1, 0
    %v185 = vcvt.s32.f32 %v184
    %vm186 = vcmp.lt.s32.totalorder %v182, 16
    %v187 = vsel %vm186, 1, 0
    %v188 = vcvt.s32.f32 %v187
    %vm189 = vcmp.lt.s32.totalorder %v182, 8
    %v190 = vsel %vm189, 1, 0
    %v191 = vcvt.s32.f32 %v190
    %v192 = vld [vmem:[#allocation7] sm:$0xf]
    %v193 = vld [vmem:[#allocation2] sm:$0xf]
    %v194 = vld [vmem:[#allocation2 + $0x4] sm:$0xf]
    %v195 = vld [vmem:[#allocation5] sm:$0xf]
    %v196 = vld [vmem:[#allocation5 + $0x4] sm:$0xf]
    %v197 = vld [vmem:[#allocation5 + $0x8] sm:$0xf]
    %v198 = vld [vmem:[#allocation5 + $0xc] sm:$0xf]
    %v199 = vld [vmem:[#allocation5 + $0x10] sm:$0xf]
    %v200 = vld [vmem:[#allocation5 + $0x14] sm:$0xf]
    %v201 = vld [vmem:[#allocation5 + $0x18] sm:$0xf]
    %v202 = vld [vmem:[#allocation5 + $0x1c] sm:$0xf]
    %v203 = vld [vmem:[#allocation5 + $0x20] sm:$0xf]
    %v204 = vld [vmem:[#allocation5 + $0x24] sm:$0xf]
    %v205 = vld [vmem:[#allocation5 + $0x28] sm:$0xf]
    %v206 = vld [vmem:[#allocation5 + $0x2c] sm:$0xf]
    %v207 = vld [vmem:[#allocation5 + $0x30] sm:$0xf]
    %v208 = vld [vmem:[#allocation5 + $0x34] sm:$0xf]
    %v209 = vld [vmem:[#allocation5 + $0x38] sm:$0xf]
    %v210 = vld [vmem:[#allocation5 + $0x3c] sm:$0xf]
    %v211 = vlaneseq
    %v212 = vshrl.u32 %v211, 7
    %v213 = vsub.s32 0, %v212
    %v214 = vrot.slane %v192, %v213
    %v217 = vunpack.c.l.b16 %v193
    %v218 = vunpack.c.l.b16 %v194
    %v219 = vpack.c.b16 %v218, %v217
    %v237 = vunpack.c.l.b16 %v195
    %v238 = vunpack.c.l.b16 %v196
    %v239 = vunpack.c.l.b16 %v197
    %v240 = vunpack.c.l.b16 %v198
    %v241 = vunpack.c.l.b16 %v199
    %v242 = vunpack.c.l.b16 %v200
    %v243 = vunpack.c.l.b16 %v201
    %v244 = vunpack.c.l.b16 %v202
    %v245 = vunpack.c.l.b16 %v203
    %v246 = vunpack.c.l.b16 %v204
    %v247 = vunpack.c.l.b16 %v205
    %v248 = vunpack.c.l.b16 %v206
    %v249 = vunpack.c.l.b16 %v207
    %v250 = vunpack.c.l.b16 %v208
    %v251 = vunpack.c.l.b16 %v209
    %v252 = vunpack.c.l.b16 %v210
    %v253 = vpack.c.b16 %v238, %v237
    %v254 = vpack.c.b16 %v240, %v239
    %v255 = vpack.c.b16 %v242, %v241
    %v256 = vpack.c.b16 %v244, %v243
    %v257 = vpack.c.b16 %v246, %v245
    %v258 = vpack.c.b16 %v248, %v247
    %v259 = vpack.c.b16 %v250, %v249
    %v260 = vpack.c.b16 %v252, %v251
    %269 = vmatprep.subr.bf16.mxu0 0
    %270 = vmatpush1.bf16.msra.mxu0 %v253
    %271 = vmatprep.subr.bf16.mxu0 0
    %272 = vmatpush1.bf16.msra.mxu0 %v254
    %273 = vmatprep.subr.bf16.mxu0 0
    %274 = vmatpush1.bf16.msra.mxu0 %v255
    %275 = vmatprep.subr.bf16.mxu0 0
    %276 = vmatpush1.bf16.msra.mxu0 %v256
    %277 = vmatprep.subr.bf16.mxu0 0
    %278 = vmatpush1.bf16.msra.mxu0 %v257
    %279 = vmatprep.subr.bf16.mxu0 0
    %280 = vmatpush1.bf16.msra.mxu0 %v258
    %281 = vmatprep.subr.bf16.mxu0 0
    %282 = vmatpush1.bf16.msra.mxu0 %v259
    %283 = vmatprep.subr.bf16.mxu0 0
    %284 = vmatpush1.bf16.msra.mxu0 %v260
    %285 = vmatprep.subr.bf16.mxu0 0
    %286 = vmatpush1.bf16.msra.mxu0 0
    %287 = vmatprep.subr.bf16.mxu0 0
    %288 = vmatpush1.bf16.msra.mxu0 0
    %289 = vmatprep.subr.bf16.mxu0 0
    %290 = vmatpush1.bf16.msra.mxu0 0
    %291 = vmatprep.subr.bf16.mxu0 0
    %292 = vmatpush1.bf16.msra.mxu0 0
    %293 = vmatprep.subr.bf16.mxu0 0
    %294 = vmatpush1.bf16.msra.mxu0 0
    %295 = vmatprep.subr.bf16.mxu0 0
    %296 = vmatpush1.bf16.msra.mxu0 0
    %297 = vmatprep.subr.bf16.mxu0 0
    %298 = vmatpush1.bf16.msra.mxu0 0
    %299 = vmatprep.subr.bf16.mxu0 0
    %300 = vmatpush1.bf16.msra.mxu0 0
    %301 = vmatprep.mubr.bf16.mxu0 0
    %302 = vmatmul.mubr.bf16.gmra.mrb[0].mxu0 %v219
    %v303 = vpop.f32.mrb[0].mxu0
    %v304 = vadd.f32 %v214, %v303
    %v305 = vpop.f32.mrb[0].mxu0
    %v306 = vpop.f32.mrb[0].mxu0
    %v307 = vadd.f32 %v214, %v306
    %v308 = vpop.f32.mrb[0].mxu0
    %309 = vdwg.mxu0
    %310 = vadd.xlane.f32.xlu0 %v304
    %v311 = vpop.xlane.xlu0 %310
    %312 = vadd.xlane.f32.xlu0 %v307
    %v313 = vpop.xlane.xlu0 %312
    %v314 = vmul.f32 %v311, 0.03125
    %v315 = vmul.f32 %v313, 0.03125
    %v316 = vsub.f32 %v304, %v314
    %v317 = vsub.f32 %v307, %v315
    %v318 = vmul.f32 %v316, %v185
    %v319 = vmul.f32 %v317, %v185
    %v320 = vmul.f32 %v318, %v318
    %v321 = vmul.f32 %v319, %v319
    %322 = vadd.xlane.f32.xlu0 %v320
    %v323 = vpop.xlane.xlu0 %322
    %324 = vadd.xlane.f32.xlu0 %v321
    %v325 = vpop.xlane.xlu0 %324
    %v326 = vmul.f32 %v323, 0.03125
    %v327 = vmul.f32 %v325, 0.03125
    %v328 = vadd.f32 %v326, 1e-05
    %v329 = vadd.f32 %v327, 1e-05
    %v330 = vrsqrt.pop %v328
    %v331 = vrsqrt.pop %v329
    %v332 = vmul.f32 %v318, %v330
    %v333 = vmul.f32 %v319, %v331
    %v334 = vlaneseq
    %v335 = vshrl.u32 %v334, 7
    %v336 = vsub.s32 1, %v335
    %v337 = vrot.slane %v192, %v336
    %v338 = vmul.f32 %v332, %v337
    %v339 = vmul.f32 %v333, %v337
    %v340 = vlaneseq
    %v341 = vshrl.u32 %v340, 7
    %v342 = vsub.s32 2, %v341
    %v343 = vrot.slane %v192, %v342
    %v344 = vadd.f32 %v338, %v343
    %v345 = vadd.f32 %v339, %v343
    %v346 = vlaneseq
    %v347 = vshrl.u32 %v346, 7
    %v348 = vsub.s32 3, %v347
    %v349 = vrot.slane %v192, %v348
    %v350 = vadd.f32 %v344, %v349
    %v351 = vadd.f32 %v345, %v349
    %v352 = vld [vmem:[#allocation8] sm:$0xf]
    %v353 = vld [vmem:[#allocation8 + $0x4] sm:$0xf]
    %v354 = vld [vmem:[#allocation8 + $0x8] sm:$0xf]
    %v355 = vld [vmem:[#allocation8 + $0xc] sm:$0xf]
    %v356 = vld [vmem:[#allocation8 + $0x10] sm:$0xf]
    %v357 = vld [vmem:[#allocation8 + $0x14] sm:$0xf]
    %v358 = vld [vmem:[#allocation8 + $0x18] sm:$0xf]
    %v359 = vld [vmem:[#allocation8 + $0x1c] sm:$0xf]
    %v360 = vld [vmem:[#allocation8 + $0x20] sm:$0xf]
    %v361 = vld [vmem:[#allocation8 + $0x24] sm:$0xf]
    %v362 = vld [vmem:[#allocation8 + $0x28] sm:$0xf]
    %v363 = vld [vmem:[#allocation8 + $0x2c] sm:$0xf]
    %v364 = vld [vmem:[#allocation8 + $0x30] sm:$0xf]
    %v365 = vld [vmem:[#allocation8 + $0x34] sm:$0xf]
    %v366 = vld [vmem:[#allocation8 + $0x38] sm:$0xf]
    %v367 = vld [vmem:[#allocation8 + $0x3c] sm:$0xf]
    %v368 = vld [vmem:[%s4] sm:$0x3f]
    %v369 = vld [vmem:[#allocation10] sm:$0xf]
    %v370 = vld [vmem:[#allocation10 + $0x4] sm:$0xf]
    %v371 = vld [vmem:[#allocation10 + $0x8] sm:$0xf]
    %v372 = vld [vmem:[#allocation10 + $0xc] sm:$0xf]
    %v373 = vld [vmem:[#allocation10 + $0x10] sm:$0xf]
    %v374 = vld [vmem:[#allocation10 + $0x14] sm:$0xf]
    %v375 = vld [vmem:[#allocation10 + $0x18] sm:$0xf]
    %v376 = vld [vmem:[#allocation10 + $0x1c] sm:$0xf]
    %v377 = vld [vmem:[#allocation10 + $0x20] sm:$0xf]
    %v378 = vld [vmem:[#allocation10 + $0x24] sm:$0xf]
    %v379 = vld [vmem:[#allocation10 + $0x28] sm:$0xf]
    %v380 = vld [vmem:[#allocation10 + $0x2c] sm:$0xf]
    %v381 = vld [vmem:[#allocation10 + $0x30] sm:$0xf]
    %v382 = vld [vmem:[#allocation10 + $0x34] sm:$0xf]
    %v383 = vld [vmem:[#allocation10 + $0x38] sm:$0xf]
    %v384 = vld [vmem:[#allocation10 + $0x3c] sm:$0xf]
    %v385 = vld [vmem:[#allocation11] sm:$0x1]
    %v386 = vld [vmem:[#allocation13] sm:$0xf]
    %v387 = vld [vmem:[#allocation13 + $0x4] sm:$0xf]
    %v388 = vld [vmem:[#allocation13 + $0x8] sm:$0xf]
    %v389 = vld [vmem:[#allocation13 + $0xc] sm:$0xf]
    %v390 = vld [vmem:[#allocation13 + $0x10] sm:$0xf]
    %v391 = vld [vmem:[#allocation13 + $0x14] sm:$0xf]
    %v392 = vld [vmem:[#allocation13 + $0x18] sm:$0xf]
    %v393 = vld [vmem:[#allocation13 + $0x1c] sm:$0xf]
    %v394 = vld [vmem:[#allocation13 + $0x20] sm:$0xf]
    %v395 = vld [vmem:[#allocation13 + $0x24] sm:$0xf]
    %v396 = vld [vmem:[#allocation13 + $0x28] sm:$0xf]
    %v397 = vld [vmem:[#allocation13 + $0x2c] sm:$0xf]
    %v398 = vld [vmem:[#allocation13 + $0x30] sm:$0xf]
    %v399 = vld [vmem:[#allocation13 + $0x34] sm:$0xf]
    %v400 = vld [vmem:[#allocation13 + $0x38] sm:$0xf]
    %v401 = vld [vmem:[#allocation13 + $0x3c] sm:$0xf]
    %v402 = vpack.c.bf16 %v351, %v350
    %v403 = vlaneseq
    %v404 = vshrl.u32 %v403, 7
    %v405 = vsub.s32 0, %v404
    %v406 = vrot.slane %v368, %v405
    %v423 = vunpack.c.l.b16 %v352
    %v424 = vunpack.c.l.b16 %v353
    %v425 = vunpack.c.l.b16 %v354
    %v426 = vunpack.c.l.b16 %v355
    %v427 = vunpack.c.l.b16 %v356
    %v428 = vunpack.c.l.b16 %v357
    %v429 = vunpack.c.l.b16 %v358
    %v430 = vunpack.c.l.b16 %v359
    %v431 = vunpack.c.l.b16 %v360
    %v432 = vunpack.c.l.b16 %v361
    %v433 = vunpack.c.l.b16 %v362
    %v434 = vunpack.c.l.b16 %v363
    %v435 = vunpack.c.l.b16 %v364
    %v436 = vunpack.c.l.b16 %v365
    %v437 = vunpack.c.l.b16 %v366
    %v438 = vunpack.c.l.b16 %v367
    %v439 = vpack.c.b16 %v424, %v423
    %v440 = vpack.c.b16 %v426, %v425
    %v441 = vpack.c.b16 %v428, %v427
    %v442 = vpack.c.b16 %v430, %v429
    %v443 = vpack.c.b16 %v432, %v431
    %v444 = vpack.c.b16 %v434, %v433
    %v445 = vpack.c.b16 %v436, %v435
    %v446 = vpack.c.b16 %v438, %v437
    %455 = vmatprep.subr.bf16.mxu0 0
    %456 = vmatpush1.bf16.msra.mxu0 %v439
    %457 = vmatprep.subr.bf16.mxu0 0
    %458 = vmatpush1.bf16.msra.mxu0 %v440
    %459 = vmatprep.subr.bf16.mxu0 0
    %460 = vmatpush1.bf16.msra.mxu0 %v441
    %461 = vmatprep.subr.bf16.mxu0 0
    %462 = vmatpush1.bf16.msra.mxu0 %v442
    %463 = vmatprep.subr.bf16.mxu0 0
    %464 = vmatpush1.bf16.msra.mxu0 %v443
    %465 = vmatprep.subr.bf16.mxu0 0
    %466 = vmatpush1.bf16.msra.mxu0 %v444
    %467 = vmatprep.subr.bf16.mxu0 0
    %468 = vmatpush1.bf16.msra.mxu0 %v445
    %469 = vmatprep.subr.bf16.mxu0 0
    %470 = vmatpush1.bf16.msra.mxu0 %v446
    %471 = vmatprep.subr.bf16.mxu0 0
    %472 = vmatpush1.bf16.msra.mxu0 0
    %473 = vmatprep.subr.bf16.mxu0 0
    %474 = vmatpush1.bf16.msra.mxu0 0
    %475 = vmatprep.subr.bf16.mxu0 0
    %476 = vmatpush1.bf16.msra.mxu0 0
    %477 = vmatprep.subr.bf16.mxu0 0
    %478 = vmatpush1.bf16.msra.mxu0 0
    %479 = vmatprep.subr.bf16.mxu0 0
    %480 = vmatpush1.bf16.msra.mxu0 0
    %481 = vmatprep.subr.bf16.mxu0 0
    %482 = vmatpush1.bf16.msra.mxu0 0
    %483 = vmatprep.subr.bf16.mxu0 0
    %484 = vmatpush1.bf16.msra.mxu0 0
    %485 = vmatprep.subr.bf16.mxu0 0
    %486 = vmatpush1.bf16.msra.mxu0 0
    %487 = vmatprep.mubr.bf16.mxu0 0
    %488 = vmatmul.mubr.bf16.gmra.mrb[0].mxu0 %v402
    %v489 = vpop.f32.mrb[0].mxu0
    %v490 = vadd.f32 %v406, %v489
    %v491 = vpop.f32.mrb[0].mxu0
    %v492 = vpop.f32.mrb[0].mxu0
    %v493 = vadd.f32 %v406, %v492
    %v494 = vpop.f32.mrb[0].mxu0
    %495 = vdwg.mxu0
    %v496 = vadd.f32 %v350, %v490
    %v497 = vadd.f32 %v351, %v493
    %498 = vadd.xlane.f32.xlu0 %v496
    %v499 = vpop.xlane.xlu0 %498
    %500 = vadd.xlane.f32.xlu0 %v497
    %v501 = vpop.xlane.xlu0 %500
    %v502 = vmul.f32 %v499, 0.03125
    %v503 = vmul.f32 %v501, 0.03125
    %v504 = vsub.f32 %v496, %v502
    %v505 = vsub.f32 %v497, %v503
    %v506 = vmul.f32 %v504, %v185
    %v507 = vmul.f32 %v505, %v185
    %v508 = vmul.f32 %v506, %v506
    %v509 = vmul.f32 %v507, %v507
    %510 = vadd.xlane.f32.xlu0 %v508
    %v511 = vpop.xlane.xlu0 %510
    %512 = vadd.xlane.f32.xlu0 %v509
    %v513 = vpop.xlane.xlu0 %512
    %v514 = vmul.f32 %v511, 0.03125
    %v515 = vmul.f32 %v513, 0.03125
    %v516 = vadd.f32 %v514, 1e-05
    %v517 = vadd.f32 %v515, 1e-05
    %v518 = vrsqrt.pop %v516
    %v519 = vrsqrt.pop %v517
    %v520 = vmul.f32 %v506, %v518
    %v521 = vmul.f32 %v507, %v519
    %v522 = vlaneseq
    %v523 = vshrl.u32 %v522, 7
    %v524 = vsub.s32 1, %v523
    %v525 = vrot.slane %v368, %v524
    %v526 = vmul.f32 %v520, %v525
    %v527 = vmul.f32 %v521, %v525
    %v528 = vlaneseq
    %v529 = vshrl.u32 %v528, 7
    %v530 = vsub.s32 2, %v529
    %v531 = vrot.slane %v368, %v530
    %v532 = vadd.f32 %v526, %v531
    %v533 = vadd.f32 %v527, %v531
    %v534 = vpack.c.bf16 %v533, %v532
    %v536 = vlaneseq
    %v537 = vshrl.u32 %v536, 7
    %v538 = vsub.s32 0, %v537
    %v539 = vrot.slane %v385, %v538
    %v557 = vunpack.c.l.b16 %v369
    %v558 = vunpack.c.l.b16 %v370
    %v559 = vunpack.c.l.b16 %v371
    %v560 = vunpack.c.l.b16 %v372
    %v561 = vunpack.c.l.b16 %v373
    %v562 = vunpack.c.l.b16 %v374
    %v563 = vunpack.c.l.b16 %v375
    %v564 = vunpack.c.l.b16 %v376
    %v565 = vunpack.c.l.b16 %v377
    %v566 = vunpack.c.l.b16 %v378
    %v567 = vunpack.c.l.b16 %v379
    %v568 = vunpack.c.l.b16 %v380
    %v569 = vunpack.c.l.b16 %v381
    %v570 = vunpack.c.l.b16 %v382
    %v571 = vunpack.c.l.b16 %v383
    %v572 = vunpack.c.l.b16 %v384
    %v573 = vpack.c.b16 %v558, %v557
    %v574 = vpack.c.b16 %v560, %v559
    %v575 = vpack.c.b16 %v562, %v561
    %v576 = vpack.c.b16 %v564, %v563
    %v577 = vpack.c.b16 %v566, %v565
    %v578 = vpack.c.b16 %v568, %v567
    %v579 = vpack.c.b16 %v570, %v569
    %v580 = vpack.c.b16 %v572, %v571
    %589 = vmatprep.subr.bf16.mxu0 0
    %590 = vmatpush1.bf16.msra.mxu0 %v573
    %591 = vmatprep.subr.bf16.mxu0 0
    %592 = vmatpush1.bf16.msra.mxu0 %v574
    %593 = vmatprep.subr.bf16.mxu0 0
    %594 = vmatpush1.bf16.msra.mxu0 %v575
    %595 = vmatprep.subr.bf16.mxu0 0
    %596 = vmatpush1.bf16.msra.mxu0 %v576
    %597 = vmatprep.subr.bf16.mxu0 0
    %598 = vmatpush1.bf16.msra.mxu0 %v577
    %599 = vmatprep.subr.bf16.mxu0 0
    %600 = vmatpush1.bf16.msra.mxu0 %v578
    %601 = vmatprep.subr.bf16.mxu0 0
    %602 = vmatpush1.bf16.msra.mxu0 %v579
    %603 = vmatprep.subr.bf16.mxu0 0
    %604 = vmatpush1.bf16.msra.mxu0 %v580
    %605 = vmatprep.subr.bf16.mxu0 0
    %606 = vmatpush1.bf16.msra.mxu0 0
    %607 = vmatprep.subr.bf16.mxu0 0
    %608 = vmatpush1.bf16.msra.mxu0 0
    %609 = vmatprep.subr.bf16.mxu0 0
    %610 = vmatpush1.bf16.msra.mxu0 0
    %611 = vmatprep.subr.bf16.mxu0 0
    %612 = vmatpush1.bf16.msra.mxu0 0
    %613 = vmatprep.subr.bf16.mxu0 0
    %614 = vmatpush1.bf16.msra.mxu0 0
    %615 = vmatprep.subr.bf16.mxu0 0
    %616 = vmatpush1.bf16.msra.mxu0 0
    %617 = vmatprep.subr.bf16.mxu0 0
    %618 = vmatpush1.bf16.msra.mxu0 0
    %619 = vmatprep.subr.bf16.mxu0 0
    %620 = vmatpush1.bf16.msra.mxu0 0
    %621 = vmatprep.mubr.bf16.mxu0 0
    %622 = vmatmul.mubr.bf16.gmra.mrb[0].mxu0 %v534
    %v623 = vpop.f32.mrb[0].mxu0
    %v624 = vadd.f32 %v539, %v623
    %v625 = vpop.f32.mrb[0].mxu0
    %v626 = vpop.f32.mrb[0].mxu0
    %v627 = vadd.f32 %v539, %v626
    %v628 = vpop.f32.mrb[0].mxu0
    %629 = vdwg.mxu0
    %v630 = vmax.f32 %v624, 0.0
    %v631 = vmax.f32 %v627, 0.0
    %v632 = vpack.c.bf16 %v631, %v630
    %v633 = vlaneseq
    %v634 = vshrl.u32 %v633, 7
    %v635 = vsub.s32 3, %v634
    %v636 = vrot.slane %v368, %v635
    %v653 = vunpack.c.l.b16 %v386
    %v654 = vunpack.c.l.b16 %v387
    %v655 = vunpack.c.l.b16 %v388
    %v656 = vunpack.c.l.b16 %v389
    %v657 = vunpack.c.l.b16 %v390
    %v658 = vunpack.c.l.b16 %v391
    %v659 = vunpack.c.l.b16 %v392
    %v660 = vunpack.c.l.b16 %v393
    %v661 = vunpack.c.l.b16 %v394
    %v662 = vunpack.c.l.b16 %v395
    %v663 = vunpack.c.l.b16 %v396
    %v664 = vunpack.c.l.b16 %v397
    %v665 = vunpack.c.l.b16 %v398
    %v666 = vunpack.c.l.b16 %v399
    %v667 = vunpack.c.l.b16 %v400
    %v668 = vunpack.c.l.b16 %v401
    %v669 = vpack.c.b16 %v654, %v653
    %v670 = vpack.c.b16 %v656, %v655
    %v671 = vpack.c.b16 %v658, %v657
    %v672 = vpack.c.b16 %v660, %v659
    %v673 = vpack.c.b16 %v662, %v661
    %v674 = vpack.c.b16 %v664, %v663
    %v675 = vpack.c.b16 %v666, %v665
    %v676 = vpack.c.b16 %v668, %v667
    %685 = vmatprep.subr.bf16.mxu0 0
    %686 = vmatpush1.bf16.msra.mxu0 %v669
    %687 = vmatprep.subr.bf16.mxu0 0
    %688 = vmatpush1.bf16.msra.mxu0 %v670
    %689 = vmatprep.subr.bf16.mxu0 0
    %690 = vmatpush1.bf16.msra.mxu0 %v671
    %691 = vmatprep.subr.bf16.mxu0 0
    %692 = vmatpush1.bf16.msra.mxu0 %v672
    %693 = vmatprep.subr.bf16.mxu0 0
    %694 = vmatpush1.bf16.msra.mxu0 %v673
    %695 = vmatprep.subr.bf16.mxu0 0
    %696 = vmatpush1.bf16.msra.mxu0 %v674
    %697 = vmatprep.subr.bf16.mxu0 0
    %698 = vmatpush1.bf16.msra.mxu0 %v675
    %699 = vmatprep.subr.bf16.mxu0 0
    %700 = vmatpush1.bf16.msra.mxu0 %v676
    %701 = vmatprep.subr.bf16.mxu0 0
    %702 = vmatpush1.bf16.msra.mxu0 0
    %703 = vmatprep.subr.bf16.mxu0 0
    %704 = vmatpush1.bf16.msra.mxu0 0
    %705 = vmatprep.subr.bf16.mxu0 0
    %706 = vmatpush1.bf16.msra.mxu0 0
    %707 = vmatprep.subr.bf16.mxu0 0
    %708 = vmatpush1.bf16.msra.mxu0 0
    %709 = vmatprep.subr.bf16.mxu0 0
    %710 = vmatpush1.bf16.msra.mxu0 0
    %711 = vmatprep.subr.bf16.mxu0 0
    %712 = vmatpush1.bf16.msra.mxu0 0
    %713 = vmatprep.subr.bf16.mxu0 0
    %714 = vmatpush1.bf16.msra.mxu0 0
    %715 = vmatprep.subr.bf16.mxu0 0
    %716 = vmatpush1.bf16.msra.mxu0 0
    %717 = vmatprep.mubr.bf16.mxu0 0
    %718 = vmatmul.mubr.bf16.gmra.mrb[0].mxu0 %v632
    %v719 = vpop.f32.mrb[0].mxu0
    %v720 = vadd.f32 %v636, %v719
    %v721 = vpop.f32.mrb[0].mxu0
    %v722 = vpop.f32.mrb[0].mxu0
    %v723 = vadd.f32 %v636, %v722
    %v724 = vpop.f32.mrb[0].mxu0
    %725 = vdwg.mxu0
    %v726 = vadd.f32 %v532, %v720
    %v727 = vadd.f32 %v533, %v723
    %728 = vadd.xlane.f32.xlu0 %v726
    %v729 = vpop.xlane.xlu0 %728
    %730 = vadd.xlane.f32.xlu0 %v727
    %v731 = vpop.xlane.xlu0 %730
    %v732 = vmul.f32 %v729, 0.03125
    %v733 = vmul.f32 %v731, 0.03125
    %v734 = vsub.f32 %v726, %v732
    %v735 = vsub.f32 %v727, %v733
    %v736 = vmul.f32 %v734, %v185
    %v737 = vmul.f32 %v735, %v185
    %v738 = vmul.f32 %v736, %v736
    %v739 = vmul.f32 %v737, %v737
    %740 = vadd.xlane.f32.xlu0 %v738
    %v741 = vpop.xlane.xlu0 %740
    %742 = vadd.xlane.f32.xlu0 %v739
    %v743 = vpop.xlane.xlu0 %742
    %v744 = vmul.f32 %v741, 0.03125
    %v745 = vmul.f32 %v743, 0.03125
    %v746 = vadd.f32 %v744, 1e-05
    %v747 = vadd.f32 %v745, 1e-05
    %v748 = vrsqrt.pop %v746
    %v749 = vrsqrt.pop %v747
    %v750 = vmul.f32 %v736, %v748
    %v751 = vmul.f32 %v737, %v749
    %v752 = vlaneseq
    %v753 = vshrl.u32 %v752, 7
    %v754 = vsub.s32 4, %v753
    %v755 = vrot.slane %v368, %v754
    %v756 = vmul.f32 %v750, %v755
    %v757 = vmul.f32 %v751, %v755
    %v758 = vlaneseq
    %v759 = vshrl.u32 %v758, 7
    %v760 = vsub.s32 5, %v759
    %v761 = vrot.slane %v368, %v760
    %v762 = vadd.f32 %v756, %v761
    %v763 = vadd.f32 %v757, %v761
    %s764 = scalar_lea.vmem [#allocation8], 64
    %v765 = vld [vmem:[%s764] sm:$0xf]
    %v766 = vld [vmem:[%s764 + $0x4] sm:$0xf]
    %v767 = vld [vmem:[%s764 + $0x8] sm:$0xf]
    %v768 = vld [vmem:[%s764 + $0xc] sm:$0xf]
    %v769 = vld [vmem:[%s764 + $0x10] sm:$0xf]
    %v770 = vld [vmem:[%s764 + $0x14] sm:$0xf]
    %v771 = vld [vmem:[%s764 + $0x18] sm:$0xf]
    %v772 = vld [vmem:[%s764 + $0x1c] sm:$0xf]
    %v773 = vld [vmem:[%s764 + $0x20] sm:$0xf]
    %v774 = vld [vmem:[%s764 + $0x24] sm:$0xf]
    %v775 = vld [vmem:[%s764 + $0x28] sm:$0xf]
    %v776 = vld [vmem:[%s764 + $0x2c] sm:$0xf]
    %v777 = vld [vmem:[%s764 + $0x30] sm:$0xf]
    %v778 = vld [vmem:[%s764 + $0x34] sm:$0xf]
    %v779 = vld [vmem:[%s764 + $0x38] sm:$0xf]
    %v780 = vld [vmem:[%s764 + $0x3c] sm:$0xf]
    %s781 = scalar_lea.vmem %s4, 8
    %v782 = vld [vmem:[%s781] sm:$0x3f]
    %s783 = scalar_lea.vmem [#allocation10], 64
    %v784 = vld [vmem:[%s783] sm:$0xf]
    %v785 = vld [vmem:[%s783 + $0x4] sm:$0xf]
    %v786 = vld [vmem:[%s783 + $0x8] sm:$0xf]
    %v787 = vld [vmem:[%s783 + $0xc] sm:$0xf]
    %v788 = vld [vmem:[%s783 + $0x10] sm:$0xf]
    %v789 = vld [vmem:[%s783 + $0x14] sm:$0xf]
    %v790 = vld [vmem:[%s783 + $0x18] sm:$0xf]
    %v791 = vld [vmem:[%s783 + $0x1c] sm:$0xf]
    %v792 = vld [vmem:[%s783 + $0x20] sm:$0xf]
    %v793 = vld [vmem:[%s783 + $0x24] sm:$0xf]
    %v794 = vld [vmem:[%s783 + $0x28] sm:$0xf]
    %v795 = vld [vmem:[%s783 + $0x2c] sm:$0xf]
    %v796 = vld [vmem:[%s783 + $0x30] sm:$0xf]
    %v797 = vld [vmem:[%s783 + $0x34] sm:$0xf]
    %v798 = vld [vmem:[%s783 + $0x38] sm:$0xf]
    %v799 = vld [vmem:[%s783 + $0x3c] sm:$0xf]
    %s800 = scalar_lea.vmem [#allocation11], 1
    %v801 = vld [vmem:[%s800] sm:$0x1]
    %s802 = scalar_lea.vmem [#allocation13], 64
    %v803 = vld [vmem:[%s802] sm:$0xf]
    %v804 = vld [vmem:[%s802 + $0x4] sm:$0xf]
    %v805 = vld [vmem:[%s802 + $0x8] sm:$0xf]
    %v806 = vld [vmem:[%s802 + $0xc] sm:$0xf]
    %v807 = vld [vmem:[%s802 + $0x10] sm:$0xf]
    %v808 = vld [vmem:[%s802 + $0x14] sm:$0xf]
    %v809 = vld [vmem:[%s802 + $0x18] sm:$0xf]
    %v810 = vld [vmem:[%s802 + $0x1c] sm:$0xf]
    %v811 = vld [vmem:[%s802 + $0x20] sm:$0xf]
    %v812 = vld [vmem:[%s802 + $0x24] sm:$0xf]
    %v813 = vld [vmem:[%s802 + $0x28] sm:$0xf]
    %v814 = vld [vmem:[%s802 + $0x2c] sm:$0xf]
    %v815 = vld [vmem:[%s802 + $0x30] sm:$0xf]
    %v816 = vld [vmem:[%s802 + $0x34] sm:$0xf]
    %v817 = vld [vmem:[%s802 + $0x38] sm:$0xf]
    %v818 = vld [vmem:[%s802 + $0x3c] sm:$0xf]
    %v819 = vpack.c.bf16 %v763, %v762
    %v820 = vlaneseq
    %v821 = vshrl.u32 %v820, 7
    %v822 = vsub.s32 0, %v821
    %v823 = vrot.slane %v782, %v822
    %v840 = vunpack.c.l.b16 %v765
    %v841 = vunpack.c.l.b16 %v766
    %v842 = vunpack.c.l.b16 %v767
    %v843 = vunpack.c.l.b16 %v768
    %v844 = vunpack.c.l.b16 %v769
    %v845 = vunpack.c.l.b16 %v770
    %v846 = vunpack.c.l.b16 %v771
    %v847 = vunpack.c.l.b16 %v772
    %v848 = vunpack.c.l.b16 %v773
    %v849 = vunpack.c.l.b16 %v774
    %v850 = vunpack.c.l.b16 %v775
    %v851 = vunpack.c.l.b16 %v776
    %v852 = vunpack.c.l.b16 %v777
    %v853 = vunpack.c.l.b16 %v778
    %v854 = vunpack.c.l.b16 %v779
    %v855 = vunpack.c.l.b16 %v780
    %v856 = vpack.c.b16 %v841, %v840
    %v857 = vpack.c.b16 %v843, %v842
    %v858 = vpack.c.b16 %v845, %v844
    %v859 = vpack.c.b16 %v847, %v846
    %v860 = vpack.c.b16 %v849, %v848
    %v861 = vpack.c.b16 %v851, %v850
    %v862 = vpack.c.b16 %v853, %v852
    %v863 = vpack.c.b16 %v855, %v854
    %872 = vmatprep.subr.bf16.mxu0 0
    %873 = vmatpush1.bf16.msra.mxu0 %v856
    %874 = vmatprep.subr.bf16.mxu0 0
    %875 = vmatpush1.bf16.msra.mxu0 %v857
    %876 = vmatprep.subr.bf16.mxu0 0
    %877 = vmatpush1.bf16.msra.mxu0 %v858
    %878 = vmatprep.subr.bf16.mxu0 0
    %879 = vmatpush1.bf16.msra.mxu0 %v859
    %880 = vmatprep.subr.bf16.mxu0 0
    %881 = vmatpush1.bf16.msra.mxu0 %v860
    %882 = vmatprep.subr.bf16.mxu0 0
    %883 = vmatpush1.bf16.msra.mxu0 %v861
    %884 = vmatprep.subr.bf16.mxu0 0
    %885 = vmatpush1.bf16.msra.mxu0 %v862
    %886 = vmatprep.subr.bf16.mxu0 0
    %887 = vmatpush1.bf16.msra.mxu0 %v863
    %888 = vmatprep.subr.bf16.mxu0 0
    %889 = vmatpush1.bf16.msra.mxu0 0
    %890 = vmatprep.subr.bf16.mxu0 0
    %891 = vmatpush1.bf16.msra.mxu0 0
    %892 = vmatprep.subr.bf16.mxu0 0
    %893 = vmatpush1.bf16.msra.mxu0 0
    %894 = vmatprep.subr.bf16.mxu0 0
    %895 = vmatpush1.bf16.msra.mxu0 0
    %896 = vmatprep.subr.bf16.mxu0 0
    %897 = vmatpush1.bf16.msra.mxu0 0
    %898 = vmatprep.subr.bf16.mxu0 0
    %899 = vmatpush1.bf16.msra.mxu0 0
    %900 = vmatprep.subr.bf16.mxu0 0
    %901 = vmatpush1.bf16.msra.mxu0 0
    %902 = vmatprep.subr.bf16.mxu0 0
    %903 = vmatpush1.bf16.msra.mxu0 0
    %904 = vmatprep.mubr.bf16.mxu0 0
    %905 = vmatmul.mubr.bf16.gmra.mrb[0].mxu0 %v819
    %v906 = vpop.f32.mrb[0].mxu0
    %v907 = vadd.f32 %v823, %v906
    %v908 = vpop.f32.mrb[0].mxu0
    %v909 = vpop.f32.mrb[0].mxu0
    %v910 = vadd.f32 %v823, %v909
    %v911 = vpop.f32.mrb[0].mxu0
    %912 = vdwg.mxu0
    %v913 = vadd.f32 %v762, %v907
    %v914 = vadd.f32 %v763, %v910
    %915 = vadd.xlane.f32.xlu0 %v913
    %v916 = vpop.xlane.xlu0 %915
    %917 = vadd.xlane.f32.xlu0 %v914
    %v918 = vpop.xlane.xlu0 %917
    %v919 = vmul.f32 %v916, 0.03125
    %v920 = vmul.f32 %v918, 0.03125
    %v921 = vsub.f32 %v913, %v919
    %v922 = vsub.f32 %v914, %v920
    %v923 = vmul.f32 %v921, %v185
    %v924 = vmul.f32 %v922, %v185
    %v925 = vmul.f32 %v923, %v923
    %v926 = vmul.f32 %v924, %v924
    %927 = vadd.xlane.f32.xlu0 %v925
    %v928 = vpop.xlane.xlu0 %927
    %929 = vadd.xlane.f32.xlu0 %v926
    %v930 = vpop.xlane.xlu0 %929
    %v931 = vmul.f32 %v928, 0.03125
    %v932 = vmul.f32 %v930, 0.03125
    %v933 = vadd.f32 %v931, 1e-05
    %v934 = vadd.f32 %v932, 1e-05
    %v935 = vrsqrt.pop %v933
    %v936 = vrsqrt.pop %v934
    %v937 = vmul.f32 %v923, %v935
    %v938 = vmul.f32 %v924, %v936
    %v939 = vlaneseq
    %v940 = vshrl.u32 %v939, 7
    %v941 = vsub.s32 1, %v940
    %v942 = vrot.slane %v782, %v941
    %v943 = vmul.f32 %v937, %v942
    %v944 = vmul.f32 %v938, %v942
    %v945 = vlaneseq
    %v946 = vshrl.u32 %v945, 7
    %v947 = vsub.s32 2, %v946
    %v948 = vrot.slane %v782, %v947
    %v949 = vadd.f32 %v943, %v948
    %v950 = vadd.f32 %v944, %v948
    %v951 = vpack.c.bf16 %v950, %v949
    %v953 = vlaneseq
    %v954 = vshrl.u32 %v953, 7
    %v955 = vsub.s32 0, %v954
    %v956 = vrot.slane %v801, %v955
    %v974 = vunpack.c.l.b16 %v784
    %v975 = vunpack.c.l.b16 %v785
    %v976 = vunpack.c.l.b16 %v786
    %v977 = vunpack.c.l.b16 %v787
    %v978 = vunpack.c.l.b16 %v788
    %v979 = vunpack.c.l.b16 %v789
    %v980 = vunpack.c.l.b16 %v790
    %v981 = vunpack.c.l.b16 %v791
    %v982 = vunpack.c.l.b16 %v792
    %v983 = vunpack.c.l.b16 %v793
    %v984 = vunpack.c.l.b16 %v794
    %v985 = vunpack.c.l.b16 %v795
    %v986 = vunpack.c.l.b16 %v796
    %v987 = vunpack.c.l.b16 %v797
    %v988 = vunpack.c.l.b16 %v798
    %v989 = vunpack.c.l.b16 %v799
    %v990 = vpack.c.b16 %v975, %v974
    %v991 = vpack.c.b16 %v977, %v976
    %v992 = vpack.c.b16 %v979, %v978
    %v993 = vpack.c.b16 %v981, %v980
    %v994 = vpack.c.b16 %v983, %v982
    %v995 = vpack.c.b16 %v985, %v984
    %v996 = vpack.c.b16 %v987, %v986
    %v997 = vpack.c.b16 %v989, %v988
    %1006 = vmatprep.subr.bf16.mxu0 0
    %1007 = vmatpush1.bf16.msra.mxu0 %v990
    %1008 = vmatprep.subr.bf16.mxu0 0
    %1009 = vmatpush1.bf16.msra.mxu0 %v991
    %1010 = vmatprep.subr.bf16.mxu0 0
    %1011 = vmatpush1.bf16.msra.mxu0 %v992
    %1012 = vmatprep.subr.bf16.mxu0 0
    %1013 = vmatpush1.bf16.msra.mxu0 %v993
    %1014 = vmatprep.subr.bf16.mxu0 0
    %1015 = vmatpush1.bf16.msra.mxu0 %v994
    %1016 = vmatprep.subr.bf16.mxu0 0
    %1017 = vmatpush1.bf16.msra.mxu0 %v995
    %1018 = vmatprep.subr.bf16.mxu0 0
    %1019 = vmatpush1.bf16.msra.mxu0 %v996
    %1020 = vmatprep.subr.bf16.mxu0 0
    %1021 = vmatpush1.bf16.msra.mxu0 %v997
    %1022 = vmatprep.subr.bf16.mxu0 0
    %1023 = vmatpush1.bf16.msra.mxu0 0
    %1024 = vmatprep.subr.bf16.mxu0 0
    %1025 = vmatpush1.bf16.msra.mxu0 0
    %1026 = vmatprep.subr.bf16.mxu0 0
    %1027 = vmatpush1.bf16.msra.mxu0 0
    %1028 = vmatprep.subr.bf16.mxu0 0
    %1029 = vmatpush1.bf16.msra.mxu0 0
    %1030 = vmatprep.subr.bf16.mxu0 0
    %1031 = vmatpush1.bf16.msra.mxu0 0
    %1032 = vmatprep.subr.bf16.mxu0 0
    %1033 = vmatpush1.bf16.msra.mxu0 0
    %1034 = vmatprep.subr.bf16.mxu0 0
    %1035 = vmatpush1.bf16.msra.mxu0 0
    %1036 = vmatprep.subr.bf16.mxu0 0
    %1037 = vmatpush1.bf16.msra.mxu0 0
    %1038 = vmatprep.mubr.bf16.mxu0 0
    %1039 = vmatmul.mubr.bf16.gmra.mrb[0].mxu0 %v951
    %v1040 = vpop.f32.mrb[0].mxu0
    %v1041 = vadd.f32 %v956, %v1040
    %v1042 = vpop.f32.mrb[0].mxu0
    %v1043 = vpop.f32.mrb[0].mxu0
    %v1044 = vadd.f32 %v956, %v1043
    %v1045 = vpop.f32.mrb[0].mxu0
    %1046 = vdwg.mxu0
    %v1047 = vmax.f32 %v1041, 0.0
    %v1048 = vmax.f32 %v1044, 0.0
    %v1049 = vpack.c.bf16 %v1048, %v1047
    %v1050 = vlaneseq
    %v1051 = vshrl.u32 %v1050, 7
    %v1052 = vsub.s32 3, %v1051
    %v1053 = vrot.slane %v782, %v1052
    %v1070 = vunpack.c.l.b16 %v803
    %v1071 = vunpack.c.l.b16 %v804
    %v1072 = vunpack.c.l.b16 %v805
    %v1073 = vunpack.c.l.b16 %v806
    %v1074 = vunpack.c.l.b16 %v807
    %v1075 = vunpack.c.l.b16 %v808
    %v1076 = vunpack.c.l.b16 %v809
    %v1077 = vunpack.c.l.b16 %v810
    %v1078 = vunpack.c.l.b16 %v811
    %v1079 = vunpack.c.l.b16 %v812
    %v1080 = vunpack.c.l.b16 %v813
    %v1081 = vunpack.c.l.b16 %v814
    %v1082 = vunpack.c.l.b16 %v815
    %v1083 = vunpack.c.l.b16 %v816
    %v1084 = vunpack.c.l.b16 %v817
    %v1085 = vunpack.c.l.b16 %v818
    %v1086 = vpack.c.b16 %v1071, %v1070
    %v1087 = vpack.c.b16 %v1073, %v1072
    %v1088 = vpack.c.b16 %v1075, %v1074
    %v1089 = vpack.c.b16 %v1077, %v1076
    %v1090 = vpack.c.b16 %v1079, %v1078
    %v1091 = vpack.c.b16 %v1081, %v1080
    %v1092 = vpack.c.b16 %v1083, %v1082
    %v1093 = vpack.c.b16 %v1085, %v1084
    %1102 = vmatprep.subr.bf16.mxu0 0
    %1103 = vmatpush1.bf16.msra.mxu0 %v1086
    %1104 = vmatprep.subr.bf16.mxu0 0
    %1105 = vmatpush1.bf16.msra.mxu0 %v1087
    %1106 = vmatprep.subr.bf16.mxu0 0
    %1107 = vmatpush1.bf16.msra.mxu0 %v1088
    %1108 = vmatprep.subr.bf16.mxu0 0
    %1109 = vmatpush1.bf16.msra.mxu0 %v1089
    %1110 = vmatprep.subr.bf16.mxu0 0
    %1111 = vmatpush1.bf16.msra.mxu0 %v1090
    %1112 = vmatprep.subr.bf16.mxu0 0
    %1113 = vmatpush1.bf16.msra.mxu0 %v1091
    %1114 = vmatprep.subr.bf16.mxu0 0
    %1115 = vmatpush1.bf16.msra.mxu0 %v1092
    %1116 = vmatprep.subr.bf16.mxu0 0
    %1117 = vmatpush1.bf16.msra.mxu0 %v1093
    %1118 = vmatprep.subr.bf16.mxu0 0
    %1119 = vmatpush1.bf16.msra.mxu0 0
    %1120 = vmatprep.subr.bf16.mxu0 0
    %1121 = vmatpush1.bf16.msra.mxu0 0
    %1122 = vmatprep.subr.bf16.mxu0 0
    %1123 = vmatpush1.bf16.msra.mxu0 0
    %1124 = vmatprep.subr.bf16.mxu0 0
    %1125 = vmatpush1.bf16.msra.mxu0 0
    %1126 = vmatprep.subr.bf16.mxu0 0
    %1127 = vmatpush1.bf16.msra.mxu0 0
    %1128 = vmatprep.subr.bf16.mxu0 0
    %1129 = vmatpush1.bf16.msra.mxu0 0
    %1130 = vmatprep.subr.bf16.mxu0 0
    %1131 = vmatpush1.bf16.msra.mxu0 0
    %1132 = vmatprep.subr.bf16.mxu0 0
    %1133 = vmatpush1.bf16.msra.mxu0 0
    %1134 = vmatprep.mubr.bf16.mxu0 0
    %1135 = vmatmul.mubr.bf16.gmra.mrb[0].mxu0 %v1049
    %v1136 = vpop.f32.mrb[0].mxu0
    %v1137 = vadd.f32 %v1053, %v1136
    %v1138 = vpop.f32.mrb[0].mxu0
    %v1139 = vpop.f32.mrb[0].mxu0
    %v1140 = vadd.f32 %v1053, %v1139
    %v1141 = vpop.f32.mrb[0].mxu0
    %1142 = vdwg.mxu0
    %v1143 = vadd.f32 %v949, %v1137
    %v1144 = vadd.f32 %v950, %v1140
    %1145 = vadd.xlane.f32.xlu0 %v1143
    %v1146 = vpop.xlane.xlu0 %1145
    %1147 = vadd.xlane.f32.xlu0 %v1144
    %v1148 = vpop.xlane.xlu0 %1147
    %v1149 = vmul.f32 %v1146, 0.03125
    %v1150 = vmul.f32 %v1148, 0.03125
    %v1151 = vsub.f32 %v1143, %v1149
    %v1152 = vsub.f32 %v1144, %v1150
    %v1153 = vmul.f32 %v1151, %v185
    %v1154 = vmul.f32 %v1152, %v185
    %v1155 = vmul.f32 %v1153, %v1153
    %v1156 = vmul.f32 %v1154, %v1154
    %1157 = vadd.xlane.f32.xlu0 %v1155
    %v1158 = vpop.xlane.xlu0 %1157
    %1159 = vadd.xlane.f32.xlu0 %v1156
    %v1160 = vpop.xlane.xlu0 %1159
    %v1161 = vmul.f32 %v1158, 0.03125
    %v1162 = vmul.f32 %v1160, 0.03125
    %v1163 = vadd.f32 %v1161, 1e-05
    %v1164 = vadd.f32 %v1162, 1e-05
    %v1165 = vrsqrt.pop %v1163
    %v1166 = vrsqrt.pop %v1164
    %v1167 = vmul.f32 %v1153, %v1165
    %v1168 = vmul.f32 %v1154, %v1166
    %v1169 = vlaneseq
    %v1170 = vshrl.u32 %v1169, 7
    %v1171 = vsub.s32 4, %v1170
    %v1172 = vrot.slane %v782, %v1171
    %v1173 = vmul.f32 %v1167, %v1172
    %v1174 = vmul.f32 %v1168, %v1172
    %v1175 = vlaneseq
    %v1176 = vshrl.u32 %v1175, 7
    %v1177 = vsub.s32 5, %v1176
    %v1178 = vrot.slane %v782, %v1177
    %v1179 = vadd.f32 %v1173, %v1178
    %v1180 = vadd.f32 %v1174, %v1178
    %v1181 = vld [vmem:[#allocation16] sm:$0x7]
    %v1182 = vld [vmem:[%s11] sm:$0x7]
    %v1183 = vpack.c.bf16 %v1180, %v1179
    %v1184 = vld [vmem:[#allocation14] sm:$0xf]
    %v1185 = vld [vmem:[#allocation14 + $0x4] sm:$0xf]
    %v1186 = vld [vmem:[#allocation14 + $0x8] sm:$0xf]
    %v1187 = vld [vmem:[#allocation14 + $0xc] sm:$0xf]
    %v1188 = vld [vmem:[#allocation14 + $0x10] sm:$0xf]
    %v1189 = vld [vmem:[#allocation14 + $0x14] sm:$0xf]
    %v1190 = vld [vmem:[#allocation14 + $0x18] sm:$0xf]
    %v1191 = vld [vmem:[#allocation14 + $0x1c] sm:$0xf]
    %v1192 = vld [vmem:[#allocation14 + $0x20] sm:$0xf]
    %v1193 = vld [vmem:[#allocation14 + $0x24] sm:$0xf]
    %v1194 = vld [vmem:[#allocation14 + $0x28] sm:$0xf]
    %v1195 = vld [vmem:[#allocation14 + $0x2c] sm:$0xf]
    %v1196 = vld [vmem:[#allocation14 + $0x30] sm:$0xf]
    %v1197 = vld [vmem:[#allocation14 + $0x34] sm:$0xf]
    %v1198 = vld [vmem:[#allocation14 + $0x38] sm:$0xf]
    %v1199 = vld [vmem:[#allocation14 + $0x3c] sm:$0xf]
    %v1200 = vlaneseq
    %v1201 = vshrl.u32 %v1200, 7
    %v1202 = vsub.s32 0, %v1201
    %v1203 = vrot.slane %v1181, %v1202
    %v1220 = vunpack.c.l.b16 %v1184
    %v1221 = vunpack.c.l.b16 %v1185
    %v1222 = vunpack.c.l.b16 %v1186
    %v1223 = vunpack.c.l.b16 %v1187
    %v1224 = vunpack.c.l.b16 %v1188
    %v1225 = vunpack.c.l.b16 %v1189
    %v1226 = vunpack.c.l.b16 %v1190
    %v1227 = vunpack.c.l.b16 %v1191
    %v1228 = vunpack.c.l.b16 %v1192
    %v1229 = vunpack.c.l.b16 %v1193
    %v1230 = vunpack.c.l.b16 %v1194
    %v1231 = vunpack.c.l.b16 %v1195
    %v1232 = vunpack.c.l.b16 %v1196
    %v1233 = vunpack.c.l.b16 %v1197
    %v1234 = vunpack.c.l.b16 %v1198
    %v1235 = vunpack.c.l.b16 %v1199
    %v1236 = vpack.c.b16 %v1221, %v1220
    %v1237 = vpack.c.b16 %v1223, %v1222
    %v1238 = vpack.c.b16 %v1225, %v1224
    %v1239 = vpack.c.b16 %v1227, %v1226
    %v1240 = vpack.c.b16 %v1229, %v1228
    %v1241 = vpack.c.b16 %v1231, %v1230
    %v1242 = vpack.c.b16 %v1233, %v1232
    %v1243 = vpack.c.b16 %v1235, %v1234
    %1252 = vmatprep.subr.bf16.mxu0 0
    %1253 = vmatpush1.bf16.msra.mxu0 %v1236
    %1254 = vmatprep.subr.bf16.mxu0 0
    %1255 = vmatpush1.bf16.msra.mxu0 %v1237
    %1256 = vmatprep.subr.bf16.mxu0 0
    %1257 = vmatpush1.bf16.msra.mxu0 %v1238
    %1258 = vmatprep.subr.bf16.mxu0 0
    %1259 = vmatpush1.bf16.msra.mxu0 %v1239
    %1260 = vmatprep.subr.bf16.mxu0 0
    %1261 = vmatpush1.bf16.msra.mxu0 %v1240
    %1262 = vmatprep.subr.bf16.mxu0 0
    %1263 = vmatpush1.bf16.msra.mxu0 %v1241
    %1264 = vmatprep.subr.bf16.mxu0 0
    %1265 = vmatpush1.bf16.msra.mxu0 %v1242
    %1266 = vmatprep.subr.bf16.mxu0 0
    %1267 = vmatpush1.bf16.msra.mxu0 %v1243
    %1268 = vmatprep.subr.bf16.mxu0 0
    %1269 = vmatpush1.bf16.msra.mxu0 0
    %1270 = vmatprep.subr.bf16.mxu0 0
    %1271 = vmatpush1.bf16.msra.mxu0 0
    %1272 = vmatprep.subr.bf16.mxu0 0
    %1273 = vmatpush1.bf16.msra.mxu0 0
    %1274 = vmatprep.subr.bf16.mxu0 0
    %1275 = vmatpush1.bf16.msra.mxu0 0
    %1276 = vmatprep.subr.bf16.mxu0 0
    %1277 = vmatpush1.bf16.msra.mxu0 0
    %1278 = vmatprep.subr.bf16.mxu0 0
    %1279 = vmatpush1.bf16.msra.mxu0 0
    %1280 = vmatprep.subr.bf16.mxu0 0
    %1281 = vmatpush1.bf16.msra.mxu0 0
    %1282 = vmatprep.subr.bf16.mxu0 0
    %1283 = vmatpush1.bf16.msra.mxu0 0
    %1284 = vmatprep.mubr.bf16.mxu0 0
    %1285 = vmatmul.mubr.bf16.gmra.mrb[0].mxu0 %v1183
    %v1286 = vpop.f32.mrb[0].mxu0
    %v1287 = vadd.f32 %v1203, %v1286
    %v1288 = vpop.f32.mrb[0].mxu0
    %v1289 = vpop.f32.mrb[0].mxu0
    %v1290 = vadd.f32 %v1203, %v1289
    %v1291 = vpop.f32.mrb[0].mxu0
    %1292 = vdwg.mxu0
    %1293 = vadd.xlane.f32.xlu0 %v1287
    %v1294 = vpop.xlane.xlu0 %1293
    %1295 = vadd.xlane.f32.xlu0 %v1290
    %v1296 = vpop.xlane.xlu0 %1295
    %v1297 = vmul.f32 %v1294, 0.0625
    %v1298 = vmul.f32 %v1296, 0.0625
    %v1299 = vsub.f32 %v1287, %v1297
    %v1300 = vsub.f32 %v1290, %v1298
    %v1301 = vmul.f32 %v1299, %v188
    %v1302 = vmul.f32 %v1300, %v188
    %v1303 = vmul.f32 %v1301, %v1301
    %v1304 = vmul.f32 %v1302, %v1302
    %1305 = vadd.xlane.f32.xlu0 %v1303
    %v1306 = vpop.xlane.xlu0 %1305
    %1307 = vadd.xlane.f32.xlu0 %v1304
    %v1308 = vpop.xlane.xlu0 %1307
    %v1309 = vmul.f32 %v1306, 0.0625
    %v1310 = vmul.f32 %v1308, 0.0625
    %v1311 = vadd.f32 %v1309, 1e-05
    %v1312 = vadd.f32 %v1310, 1e-05
    %v1313 = vrsqrt.pop %v1311
    %v1314 = vrsqrt.pop %v1312
    %v1315 = vmul.f32 %v1301, %v1313
    %v1316 = vmul.f32 %v1302, %v1314
    %v1317 = vlaneseq
    %v1318 = vshrl.u32 %v1317, 7
    %v1319 = vsub.s32 1, %v1318
    %v1320 = vrot.slane %v1181, %v1319
    %v1321 = vmul.f32 %v1315, %v1320
    %v1322 = vmul.f32 %v1316, %v1320
    %v1323 = vlaneseq
    %v1324 = vshrl.u32 %v1323, 7
    %v1325 = vsub.s32 2, %v1324
    %v1326 = vrot.slane %v1181, %v1325
    %v1327 = vadd.f32 %v1321, %v1326
    %v1328 = vadd.f32 %v1322, %v1326
    %v1329 = vmax.f32 %v1327, 0.0
    %v1330 = vmax.f32 %v1328, 0.0
    %v1331 = vpack.c.bf16 %v1330, %v1329
    %v1332 = vld [vmem:[%s10] sm:$0xf]
    %v1333 = vld [vmem:[%s10 + $0x4] sm:$0xf]
    %v1334 = vld [vmem:[%s10 + $0x8] sm:$0xf]
    %v1335 = vld [vmem:[%s10 + $0xc] sm:$0xf]
    %v1336 = vld [vmem:[%s10 + $0x10] sm:$0xf]
    %v1337 = vld [vmem:[%s10 + $0x14] sm:$0xf]
    %v1338 = vld [vmem:[%s10 + $0x18] sm:$0xf]
    %v1339 = vld [vmem:[%s10 + $0x1c] sm:$0xf]
    %v1340 = vld [vmem:[%s10 + $0x20] sm:$0xf]
    %v1341 = vld [vmem:[%s10 + $0x24] sm:$0xf]
    %v1342 = vld [vmem:[%s10 + $0x28] sm:$0xf]
    %v1343 = vld [vmem:[%s10 + $0x2c] sm:$0xf]
    %v1344 = vld [vmem:[%s10 + $0x30] sm:$0xf]
    %v1345 = vld [vmem:[%s10 + $0x34] sm:$0xf]
    %v1346 = vld [vmem:[%s10 + $0x38] sm:$0xf]
    %v1347 = vld [vmem:[%s10 + $0x3c] sm:$0xf]
    %v1348 = vlaneseq
    %v1349 = vshrl.u32 %v1348, 7
    %v1350 = vsub.s32 0, %v1349
    %v1351 = vrot.slane %v1182, %v1350
    %v1368 = vunpack.c.l.b16 %v1332
    %v1369 = vunpack.c.l.b16 %v1333
    %v1370 = vunpack.c.l.b16 %v1334
    %v1371 = vunpack.c.l.b16 %v1335
    %v1372 = vunpack.c.l.b16 %v1336
    %v1373 = vunpack.c.l.b16 %v1337
    %v1374 = vunpack.c.l.b16 %v1338
    %v1375 = vunpack.c.l.b16 %v1339
    %v1376 = vunpack.c.l.b16 %v1340
    %v1377 = vunpack.c.l.b16 %v1341
    %v1378 = vunpack.c.l.b16 %v1342
    %v1379 = vunpack.c.l.b16 %v1343
    %v1380 = vunpack.c.l.b16 %v1344
    %v1381 = vunpack.c.l.b16 %v1345
    %v1382 = vunpack.c.l.b16 %v1346
    %v1383 = vunpack.c.l.b16 %v1347
    %v1384 = vpack.c.b16 %v1369, %v1368
    %v1385 = vpack.c.b16 %v1371, %v1370
    %v1386 = vpack.c.b16 %v1373, %v1372
    %v1387 = vpack.c.b16 %v1375, %v1374
    %v1388 = vpack.c.b16 %v1377, %v1376
    %v1389 = vpack.c.b16 %v1379, %v1378
    %v1390 = vpack.c.b16 %v1381, %v1380
    %v1391 = vpack.c.b16 %v1383, %v1382
    %1400 = vmatprep.subr.bf16.mxu0 0
    %1401 = vmatpush1.bf16.msra.mxu0 %v1384
    %1402 = vmatprep.subr.bf16.mxu0 0
    %1403 = vmatpush1.bf16.msra.mxu0 %v1385
    %1404 = vmatprep.subr.bf16.mxu0 0
    %1405 = vmatpush1.bf16.msra.mxu0 %v1386
    %1406 = vmatprep.subr.bf16.mxu0 0
    %1407 = vmatpush1.bf16.msra.mxu0 %v1387
    %1408 = vmatprep.subr.bf16.mxu0 0
    %1409 = vmatpush1.bf16.msra.mxu0 %v1388
    %1410 = vmatprep.subr.bf16.mxu0 0
    %1411 = vmatpush1.bf16.msra.mxu0 %v1389
    %1412 = vmatprep.subr.bf16.mxu0 0
    %1413 = vmatpush1.bf16.msra.mxu0 %v1390
    %1414 = vmatprep.subr.bf16.mxu0 0
    %1415 = vmatpush1.bf16.msra.mxu0 %v1391
    %1416 = vmatprep.subr.bf16.mxu0 0
    %1417 = vmatpush1.bf16.msra.mxu0 0
    %1418 = vmatprep.subr.bf16.mxu0 0
    %1419 = vmatpush1.bf16.msra.mxu0 0
    %1420 = vmatprep.subr.bf16.mxu0 0
    %1421 = vmatpush1.bf16.msra.mxu0 0
    %1422 = vmatprep.subr.bf16.mxu0 0
    %1423 = vmatpush1.bf16.msra.mxu0 0
    %1424 = vmatprep.subr.bf16.mxu0 0
    %1425 = vmatpush1.bf16.msra.mxu0 0
    %1426 = vmatprep.subr.bf16.mxu0 0
    %1427 = vmatpush1.bf16.msra.mxu0 0
    %1428 = vmatprep.subr.bf16.mxu0 0
    %1429 = vmatpush1.bf16.msra.mxu0 0
    %1430 = vmatprep.subr.bf16.mxu0 0
    %1431 = vmatpush1.bf16.msra.mxu0 0
    %1432 = vmatprep.mubr.bf16.mxu0 0
    %1433 = vmatmul.mubr.bf16.gmra.mrb[0].mxu0 %v1331
    %v1434 = vpop.f32.mrb[0].mxu0
    %v1435 = vadd.f32 %v1351, %v1434
    %v1436 = vpop.f32.mrb[0].mxu0
    %v1437 = vpop.f32.mrb[0].mxu0
    %v1438 = vadd.f32 %v1351, %v1437
    %v1439 = vpop.f32.mrb[0].mxu0
    %1440 = vdwg.mxu0
    %1441 = vadd.xlane.f32.xlu0 %v1435
    %v1442 = vpop.xlane.xlu0 %1441
    %1443 = vadd.xlane.f32.xlu0 %v1438
    %v1444 = vpop.xlane.xlu0 %1443
    %v1445 = vmul.f32 %v1442, 0.125
    %v1446 = vmul.f32 %v1444, 0.125
    %v1447 = vsub.f32 %v1435, %v1445
    %v1448 = vsub.f32 %v1438, %v1446
    %v1449 = vmul.f32 %v1447, %v191
    %v1450 = vmul.f32 %v1448, %v191
    %v1451 = vmul.f32 %v1449, %v1449
    %v1452 = vmul.f32 %v1450, %v1450
    %1453 = vadd.xlane.f32.xlu0 %v1451
    %v1454 = vpop.xlane.xlu0 %1453
    %1455 = vadd.xlane.f32.xlu0 %v1452
    %v1456 = vpop.xlane.xlu0 %1455
    %v1457 = vmul.f32 %v1454, 0.125
    %v1458 = vmul.f32 %v1456, 0.125
    %v1459 = vadd.f32 %v1457, 1e-05
    %v1460 = vadd.f32 %v1458, 1e-05
    %v1461 = vrsqrt.pop %v1459
    %v1462 = vrsqrt.pop %v1460
    %v1463 = vmul.f32 %v1449, %v1461
    %v1464 = vmul.f32 %v1450, %v1462
    %v1465 = vlaneseq
    %v1466 = vshrl.u32 %v1465, 7
    %v1467 = vsub.s32 1, %v1466
    %v1468 = vrot.slane %v1182, %v1467
    %v1469 = vmul.f32 %v1463, %v1468
    %v1470 = vmul.f32 %v1464, %v1468
    %v1471 = vlaneseq
    %v1472 = vshrl.u32 %v1471, 7
    %v1473 = vsub.s32 2, %v1472
    %v1474 = vrot.slane %v1182, %v1473
    %v1475 = vadd.f32 %v1469, %v1474
    %v1476 = vadd.f32 %v1470, %v1474
    %v1477 = vmax.f32 %v1475, 0.0
    %v1478 = vmax.f32 %v1476, 0.0
    %v1479 = vpack.c.bf16 %v1478, %v1477
    %v1480 = vld [vmem:[#allocation17] sm:$0xf]
    %v1481 = vld [vmem:[#allocation17 + $0x4] sm:$0xf]
    %v1482 = vld [vmem:[#allocation17 + $0x8] sm:$0xf]
    %v1483 = vld [vmem:[#allocation17 + $0xc] sm:$0xf]
    %v1484 = vld [vmem:[#allocation17 + $0x10] sm:$0xf]
    %v1485 = vld [vmem:[#allocation17 + $0x14] sm:$0xf]
    %v1486 = vld [vmem:[#allocation17 + $0x18] sm:$0xf]
    %v1487 = vld [vmem:[#allocation17 + $0x1c] sm:$0xf]
    %v1488 = vld [vmem:[#allocation17 + $0x20] sm:$0xf]
    %v1489 = vld [vmem:[#allocation17 + $0x24] sm:$0xf]
    %v1490 = vld [vmem:[#allocation17 + $0x28] sm:$0xf]
    %v1491 = vld [vmem:[#allocation17 + $0x2c] sm:$0xf]
    %v1492 = vld [vmem:[#allocation17 + $0x30] sm:$0xf]
    %v1493 = vld [vmem:[#allocation17 + $0x34] sm:$0xf]
    %v1494 = vld [vmem:[#allocation17 + $0x38] sm:$0xf]
    %v1495 = vld [vmem:[#allocation17 + $0x3c] sm:$0xf]
    %v1496 = vld [vmem:[%s13] sm:$0x1]
    %v1498 = vlaneseq
    %v1499 = vshrl.u32 %v1498, 7
    %v1500 = vsub.s32 0, %v1499
    %v1501 = vrot.slane %v1496, %v1500
    %v1519 = vunpack.c.l.b16 %v1480
    %v1520 = vunpack.c.l.b16 %v1481
    %v1521 = vunpack.c.l.b16 %v1482
    %v1522 = vunpack.c.l.b16 %v1483
    %v1523 = vunpack.c.l.b16 %v1484
    %v1524 = vunpack.c.l.b16 %v1485
    %v1525 = vunpack.c.l.b16 %v1486
    %v1526 = vunpack.c.l.b16 %v1487
    %v1527 = vunpack.c.l.b16 %v1488
    %v1528 = vunpack.c.l.b16 %v1489
    %v1529 = vunpack.c.l.b16 %v1490
    %v1530 = vunpack.c.l.b16 %v1491
    %v1531 = vunpack.c.l.b16 %v1492
    %v1532 = vunpack.c.l.b16 %v1493
    %v1533 = vunpack.c.l.b16 %v1494
    %v1534 = vunpack.c.l.b16 %v1495
    %v1535 = vpack.c.b16 %v1520, %v1519
    %v1536 = vpack.c.b16 %v1522, %v1521
    %v1537 = vpack.c.b16 %v1524, %v1523
    %v1538 = vpack.c.b16 %v1526, %v1525
    %v1539 = vpack.c.b16 %v1528, %v1527
    %v1540 = vpack.c.b16 %v1530, %v1529
    %v1541 = vpack.c.b16 %v1532, %v1531
    %v1542 = vpack.c.b16 %v1534, %v1533
    %1551 = vmatprep.subr.bf16.mxu0 0
    %1552 = vmatpush1.bf16.msra.mxu0 %v1535
    %1553 = vmatprep.subr.bf16.mxu0 0
    %1554 = vmatpush1.bf16.msra.mxu0 %v1536
    %1555 = vmatprep.subr.bf16.mxu0 0
    %1556 = vmatpush1.bf16.msra.mxu0 %v1537
    %1557 = vmatprep.subr.bf16.mxu0 0
    %1558 = vmatpush1.bf16.msra.mxu0 %v1538
    %1559 = vmatprep.subr.bf16.mxu0 0
    %1560 = vmatpush1.bf16.msra.mxu0 %v1539
    %1561 = vmatprep.subr.bf16.mxu0 0
    %1562 = vmatpush1.bf16.msra.mxu0 %v1540
    %1563 = vmatprep.subr.bf16.mxu0 0
    %1564 = vmatpush1.bf16.msra.mxu0 %v1541
    %1565 = vmatprep.subr.bf16.mxu0 0
    %1566 = vmatpush1.bf16.msra.mxu0 %v1542
    %1567 = vmatprep.subr.bf16.mxu0 0
    %1568 = vmatpush1.bf16.msra.mxu0 0
    %1569 = vmatprep.subr.bf16.mxu0 0
    %1570 = vmatpush1.bf16.msra.mxu0 0
    %1571 = vmatprep.subr.bf16.mxu0 0
    %1572 = vmatpush1.bf16.msra.mxu0 0
    %1573 = vmatprep.subr.bf16.mxu0 0
    %1574 = vmatpush1.bf16.msra.mxu0 0
    %1575 = vmatprep.subr.bf16.mxu0 0
    %1576 = vmatpush1.bf16.msra.mxu0 0
    %1577 = vmatprep.subr.bf16.mxu0 0
    %1578 = vmatpush1.bf16.msra.mxu0 0
    %1579 = vmatprep.subr.bf16.mxu0 0
    %1580 = vmatpush1.bf16.msra.mxu0 0
    %1581 = vmatprep.subr.bf16.mxu0 0
    %1582 = vmatpush1.bf16.msra.mxu0 0
    %1583 = vmatprep.mubr.bf16.mxu0 0
    %1584 = vmatmul.mubr.bf16.gmra.mrb[0].mxu0 %v1479
    %v1585 = vpop.f32.mrb[0].mxu0
    %v1586 = vadd.f32 %v1501, %v1585
    %v1587 = vpop.f32.mrb[0].mxu0
    %v1588 = vpop.f32.mrb[0].mxu0
    %v1589 = vadd.f32 %v1501, %v1588
    %v1590 = vpop.f32.mrb[0].mxu0
    %1591 = vdwg.mxu0
    %1592 = vst [vmem:[#allocation19] sm:$0xff] %v1586
    %1593 = vst [vmem:[#allocation19 + $0x8] sm:$0xff] %v1589
    // Predicated region
    $region98: #{tpu_custom_call.1} parent=1 // pred_check
      _
    $region99: #{tpu_custom_call.1} parent=1 // pred_check_branch
      %1595 = sbr.rel (0) target = $region101
    $region100: #{tpu_custom_call.1} parent=1 // pred_region
      %s1597 = ssub.s32 256, 256
      %1598 = vsyncadd [#allocation4], %s1597
      %s1599 = sshll.u32 [#allocation19], 4
      %s1600 = int_to_ptr.vmem [resolvable:$true] %s1599
      %1605 = dma.vmem_to_hbm [thread:$0]  %s1600, 256, %s14, [#allocation4], 128, 128, 8
    $region101: #{tpu_custom_call.1} parent=1 // pred_fallthru
      _
    // Predicated region
    $region102: #{tpu_custom_call.1} parent=1 // pred_check
      _
    $region103: #{tpu_custom_call.1} parent=1 // pred_check_branch
      %1607 = sbr.rel (0) target = $region105
    $region104: #{tpu_custom_call.1} parent=1 // pred_region
      %1608 = dma.done [#allocation4], 256
    $region105: #{tpu_custom_call.1} parent=1 // pred_fallthru
      _
    %1609 = vsyncpa [#allocation3], 1
    %1610 = vsyncpa [#allocation6], 1
    %1611 = vsyncpa [#allocation9], 1
    %1612 = vsyncpa [#allocation12], 1
    %1613 = vsyncpa [#allocation15], 1
    %1614 = vsyncpa [#allocation18], 1
    %1615 = vsyncpa [#allocation4], 1

// kernel: tpu_custom_call.1
$region0: #{tpu_custom_call.1}
  #allocation0 [shape = 'u32[]', space=smem, size = 0x4, offset = 0x4, fixed_abs, tag = 'smem constant byte address 0x4 - core index']
  #allocation1 [shape = 'u32[144,128]{1,0:T(1,128)}', space=vmem, size = 0x12000, scoped, tag = 'internal scratch']
  %s0 = inlined_call_operand.hbm [shape: bf16[16,128], index: 0, kind: input, shape index: {}]
  %s1 = inlined_call_operand.hbm [shape: bf16[128,128], index: 1, kind: input, shape index: {}]
  %s2 = inlined_call_operand.hbm [shape: f32[4,128], index: 2, kind: input, shape index: {}]
  %s3 = inlined_call_operand.hbm [shape: bf16[2,128,128], index: 3, kind: input, shape index: {}]
  %s4 = inlined_call_operand.vmem [shape: f32[2,6,128], index: 4, kind: input, shape index: {}]
  %s5 = inlined_call_operand.hbm [shape: bf16[2,128,128], index: 5, kind: input, shape index: {}]
  %s6 = inlined_call_operand.hbm [shape: f32[2,1,128], index: 6, kind: input, shape index: {}]
  %s7 = inlined_call_operand.hbm [shape: bf16[2,128,128], index: 7, kind: input, shape index: {}]
  %s8 = inlined_call_operand.hbm [shape: bf16[128,128], index: 8, kind: input, shape index: {}]
  %s9 = inlined_call_operand.hbm [shape: f32[3,128], index: 9, kind: input, shape index: {}]
  %s10 = inlined_call_operand.vmem [shape: bf16[128,128], index: 10, kind: input, shape index: {}]
  %s11 = inlined_call_operand.vmem [shape: f32[3,128], index: 11, kind: input, shape index: {}]
  %s12 = inlined_call_operand.hbm [shape: bf16[128,128], index: 12, kind: input, shape index: {}]
  %s13 = inlined_call_operand.vmem [shape: f32[1,128], index: 13, kind: input, shape index: {}]
  %s14 = inlined_call_operand.hbm [shape: f32[16,128], index: 14, kind: output, shape index: {}]
  %s15 = sld [smem:[#allocation0]]
  $region106: #{tpu_custom_call.1} parent=0
    _
  %s17 = ssub.s32 1, %s15
  %s18 = scalar_select 0, %s17, %s15
  $region1: #{tpu_custom_call.1} parent=0
    #allocation2 [shape = 'u8[4096]{0}', space=vmem, size = 0x1000, scoped, tag = 'input window, operand 0, single buffered']
    #allocation3 [shape = 's32[1]{0}', space=sflag, size = 0x4, scoped, tag = 'scoped memory for tpu_custom_call.1']
    #allocation4 [shape = 's32[1]{0}', space=sflag, size = 0x4, scoped, tag = 'scoped memory for tpu_custom_call.1']
    #allocation5 [shape = 'u8[32768]{0}', space=vmem, size = 0x8000, scoped, tag = 'input window, operand 1, single buffered']
    #allocation6 [shape = 's32[1]{0}', space=sflag, size = 0x4, scoped, tag = 'scoped memory for tpu_custom_call.1']
    #allocation7 [shape = 'u8[2048]{0}', space=vmem, size = 0x800, scoped, tag = 'input window, operand 2, single buffered']
    #allocation8 [shape = 'u8[65536]{0}', space=vmem, size = 0x10000, scoped, tag = 'input window, operand 3, single buffered']
    #allocation9 [shape = 's32[1]{0}', space=sflag, size = 0x4, scoped, tag = 'scoped memory for tpu_custom_call.1']
    #allocation10 [shape = 'u8[65536]{0}', space=vmem, size = 0x10000, scoped, tag = 'input window, operand 5, single buffered']
    #allocation11 [shape = 'u8[1024]{0}', space=vmem, size = 0x400, scoped, tag = 'input window, operand 6, single buffered']
    #allocation12 [shape = 's32[1]{0}', space=sflag, size = 0x4, scoped, tag = 'scoped memory for tpu_custom_call.1']
    #allocation13 [shape = 'u8[65536]{0}', space=vmem, size = 0x10000, scoped, tag = 'input window, operand 7, single buffered']
    #allocation14 [shape = 'u8[32768]{0}', space=vmem, size = 0x8000, scoped, tag = 'input window, operand 8, single buffered']
    #allocation15 [shape = 's32[1]{0}', space=sflag, size = 0x4, scoped, tag = 'scoped memory for tpu_custom_call.1']
    #allocation16 [shape = 'u8[2048]{0}', space=vmem, size = 0x800, scoped, tag = 'input window, operand 9, single buffered']
    #allocation17 [shape = 'u8[32768]{0}', space=vmem, size = 0x8000, scoped, tag = 'input window, operand 12, single buffered']
    #allocation18 [shape = 's32[1]{0}', space=sflag, size = 0x4, scoped, tag = 'scoped memory for tpu_custom_call.1']
    #allocation19 [shape = 'u8[8192]{0}', space=vmem, size = 0x2000, scoped, tag = 'output window, operand 0, single buffered']
    %19 = vsyncpa [#allocation3], 0
    %20 = vsyncpa [#allocation6], 0
    %21 = vsyncpa [#allocation9], 0
    %22 = vsyncpa [#allocation12], 0
    %23 = vsyncpa [#allocation15], 0
    %24 = vsyncpa [#allocation18], 0
    %25 = vsyncpa [#allocation4], 0
    // Predicated region
    $region2: #{tpu_custom_call.1} parent=1 // pred_check
      _
    $region3: #{tpu_custom_call.1} parent=1 // pred_check_branch
      %27 = sbr.rel (0) target = $region5
    $region4: #{tpu_custom_call.1} parent=1 // pred_region
      %s29 = ssub.s32 128, 128
      %30 = vsyncadd [#allocation3], %s29
      %s31 = sshll.u32 [#allocation2], 4
      %s32 = int_to_ptr.vmem [resolvable:$true] %s31
      %37 = dma.hbm_to_vmem [thread:$0]  %s0, 128, %s32, [#allocation3], 64, 64, 4
    $region5: #{tpu_custom_call.1} parent=1 // pred_fallthru
      _
    // Predicated region
    $region6: #{tpu_custom_call.1} parent=1 // pred_check
      _
    $region7: #{tpu_custom_call.1} parent=1 // pred_check_branch
      %39 = sbr.rel (0) target = $region9
    $region8: #{tpu_custom_call.1} parent=1 // pred_region
      %s41 = ssub.s32 1024, 1024
      %42 = vsyncadd [#allocation6], %s41
      %s43 = sshll.u32 [#allocation5], 4
      %s44 = int_to_ptr.vmem [resolvable:$true] %s43
      %49 = dma.hbm_to_vmem [thread:$0]  %s1, 1024, %s44, [#allocation6], 64, 64, 4
    $region9: #{tpu_custom_call.1} parent=1 // pred_fallthru
      _
    // Predicated region
    $region10: #{tpu_custom_call.1} parent=1 // pred_check
      _
    $region11: #{tpu_custom_call.1} parent=1 // pred_check_branch
      %51 = sbr.rel (0) target = $region13
    $region12: #{tpu_custom_call.1} parent=1 // pred_region
      %s53 = ssub.s32 64, 64
      %54 = vsyncadd [#allocation6], %s53
      %s56 = sshll.u32 [#allocation7], 4
      %s57 = int_to_ptr.vmem [resolvable:$true] %s56
      %59 = dma.hbm_to_vmem [thread:$0]  %s2, 64, %s57, [#allocation6]
    $region13: #{tpu_custom_call.1} parent=1 // pred_fallthru
      _
    // Predicated region
    $region14: #{tpu_custom_call.1} parent=1 // pred_check
      _
    $region15: #{tpu_custom_call.1} parent=1 // pred_check_branch
      %61 = sbr.rel (0) target = $region17
    $region16: #{tpu_custom_call.1} parent=1 // pred_region
      %s63 = ssub.s32 2048, 2048
      %64 = vsyncadd [#allocation9], %s63
      %s65 = sshll.u32 [#allocation8], 4
      %s66 = int_to_ptr.vmem [resolvable:$true] %s65
      %71 = dma.hbm_to_vmem [thread:$0]  %s3, 2048, %s66, [#allocation9], 64, 64, 4
    $region17: #{tpu_custom_call.1} parent=1 // pred_fallthru
      _
    // Predicated region
    $region18: #{tpu_custom_call.1} parent=1 // pred_check
      _
    $region19: #{tpu_custom_call.1} parent=1 // pred_check_branch
      %73 = sbr.rel (0) target = $region21
    $region20: #{tpu_custom_call.1} parent=1 // pred_region
      _
    $region21: #{tpu_custom_call.1} parent=1 // pred_fallthru
      _
    // Predicated region
    $region22: #{tpu_custom_call.1} parent=1 // pred_check
      _
    $region23: #{tpu_custom_call.1} parent=1 // pred_check_branch
      %75 = sbr.rel (0) target = $region25
    $region24: #{tpu_custom_call.1} parent=1 // pred_region
      %s77 = ssub.s32 2048, 2048
      %78 = vsyncadd [#allocation9], %s77
      %s79 = sshll.u32 [#allocation10], 4
      %s80 = int_to_ptr.vmem [resolvable:$true] %s79
      %85 = dma.hbm_to_vmem [thread:$0]  %s5, 2048, %s80, [#allocation9], 64, 64, 4
    $region25: #{tpu_custom_call.1} parent=1 // pred_fallthru
      _
    // Predicated region
    $region26: #{tpu_custom_call.1} parent=1 // pred_check
      _
    $region27: #{tpu_custom_call.1} parent=1 // pred_check_branch
      %87 = sbr.rel (0) target = $region29
    $region28: #{tpu_custom_call.1} parent=1 // pred_region
      %s89 = ssub.s32 32, 32
      %90 = vsyncadd [#allocation12], %s89
      %s91 = sshll.u32 [#allocation11], 4
      %s92 = int_to_ptr.vmem [resolvable:$true] %s91
      %97 = dma.hbm_to_vmem [thread:$0]  %s6, 32, %s92, [#allocation12], 16, 16, 1
    $region29: #{tpu_custom_call.1} parent=1 // pred_fallthru
      _
    // Predicated region
    $region30: #{tpu_custom_call.1} parent=1 // pred_check
      _
    $region31: #{tpu_custom_call.1} parent=1 // pred_check_branch
      %99 = sbr.rel (0) target = $region33
    $region32: #{tpu_custom_call.1} parent=1 // pred_region
      %s101 = ssub.s32 2048, 2048
      %102 = vsyncadd [#allocation12], %s101
      %s103 = sshll.u32 [#allocation13], 4
      %s104 = int_to_ptr.vmem [resolvable:$true] %s103
      %109 = dma.hbm_to_vmem [thread:$0]  %s7, 2048, %s104, [#allocation12], 64, 64, 4
    $region33: #{tpu_custom_call.1} parent=1 // pred_fallthru
      _
    // Predicated region
    $region34: #{tpu_custom_call.1} parent=1 // pred_check
      _
    $region35: #{tpu_custom_call.1} parent=1 // pred_check_branch
      %111 = sbr.rel (0) target = $region37
    $region36: #{tpu_custom_call.1} parent=1 // pred_region
      %s113 = ssub.s32 1024, 1024
      %114 = vsyncadd [#allocation15], %s113
      %s115 = sshll.u32 [#allocation14], 4
      %s116 = int_to_ptr.vmem [resolvable:$true] %s115
      %121 = dma.hbm_to_vmem [thread:$0]  %s8, 1024, %s116, [#allocation15], 64, 64, 4
    $region37: #{tpu_custom_call.1} parent=1 // pred_fallthru
      _
    // Predicated region
    $region38: #{tpu_custom_call.1} parent=1 // pred_check
      _
    $region39: #{tpu_custom_call.1} parent=1 // pred_check_branch
      %123 = sbr.rel (0) target = $region41
    $region40: #{tpu_custom_call.1} parent=1 // pred_region
      %s125 = ssub.s32 64, 64
      %126 = vsyncadd [#allocation15], %s125
      %s128 = sshll.u32 [#allocation16], 4
      %s129 = int_to_ptr.vmem [resolvable:$true] %s128
      %131 = dma.hbm_to_vmem [thread:$0]  %s9, 64, %s129, [#allocation15]
    $region41: #{tpu_custom_call.1} parent=1 // pred_fallthru
      _
    // Predicated region
    $region42: #{tpu_custom_call.1} parent=1 // pred_check
      _
    $region43: #{tpu_custom_call.1} parent=1 // pred_check_branch
      %133 = sbr.rel (0) target = $region45
    $region44: #{tpu_custom_call.1} parent=1 // pred_region
      _
    $region45: #{tpu_custom_call.1} parent=1 // pred_fallthru
      _
    // Predicated region
    $region46: #{tpu_custom_call.1} parent=1 // pred_check
      _
    $region47: #{tpu_custom_call.1} parent=1 // pred_check_branch
      %135 = sbr.rel (0) target = $region49
    $region48: #{tpu_custom_call.1} parent=1 // pred_region
      _
    $region49: #{tpu_custom_call.1} parent=1 // pred_fallthru
      _
    // Predicated region
    $region50: #{tpu_custom_call.1} parent=1 // pred_check
      _
    $region51: #{tpu_custom_call.1} parent=1 // pred_check_branch
      %137 = sbr.rel (0) target = $region53
    $region52: #{tpu_custom_call.1} parent=1 // pred_region
      %s139 = ssub.s32 1024, 1024
      %140 = vsyncadd [#allocation18], %s139
      %s141 = sshll.u32 [#allocation17], 4
      %s142 = int_to_ptr.vmem [resolvable:$true] %s141
      %147 = dma.hbm_to_vmem [thread:$0]  %s12, 1024, %s142, [#allocation18], 64, 64, 4
    $region53: #{tpu_custom_call.1} parent=1 // pred_fallthru
      _
    // Predicated region
    $region54: #{tpu_custom_call.1} parent=1 // pred_check
      _
    $region55: #{tpu_custom_call.1} parent=1 // pred_check_branch
      %149 = sbr.rel (0) target = $region57
    $region56: #{tpu_custom_call.1} parent=1 // pred_region
      _
    $region57: #{tpu_custom_call.1} parent=1 // pred_fallthru
      _
    // Predicated region
    $region58: #{tpu_custom_call.1} parent=1 // pred_check
      _
    $region59: #{tpu_custom_call.1} parent=1 // pred_check_branch
      %151 = sbr.rel (0) target = $region61
    $region60: #{tpu_custom_call.1} parent=1 // pred_region
      %152 = dma.done [#allocation3], 128
    $region61: #{tpu_custom_call.1} parent=1 // pred_fallthru
      _
    // Predicated region
    $region62: #{tpu_custom_call.1} parent=1 // pred_check
      _
    $region63: #{tpu_custom_call.1} parent=1 // pred_check_branch
      %154 = sbr.rel (0) target = $region65
    $region64: #{tpu_custom_call.1} parent=1 // pred_region
      %155 = dma.done [#allocation6], 1024
    $region65: #{tpu_custom_call.1} parent=1 // pred_fallthru
      _
    // Predicated region
    $region66: #{tpu_custom_call.1} parent=1 // pred_check
      _
    $region67: #{tpu_custom_call.1} parent=1 // pred_check_branch
      %157 = sbr.rel (0) target = $region69
    $region68: #{tpu_custom_call.1} parent=1 // pred_region
      %158 = dma.done [#allocation6], 64
    $region69: #{tpu_custom_call.1} parent=1 // pred_fallthru
      _
    // Predicated region
    $region70: #{tpu_custom_call.1} parent=1 // pred_check
      _
    $region71: #{tpu_custom_call.1} parent=1 // pred_check_branch
      %160 = sbr.rel (0) target = $region73
    $region72: #{tpu_custom_call.1} parent=1 // pred_region
      %161 = dma.done [#allocation9], 2048
    $region73: #{tpu_custom_call.1} parent=1 // pred_fallthru
      _
    // Predicated region
    $region74: #{tpu_custom_call.1} parent=1 // pred_check
      _
    $region75: #{tpu_custom_call.1} parent=1 // pred_check_branch
      %163 = sbr.rel (0) target = $region77
    $region76: #{tpu_custom_call.1} parent=1 // pred_region
      %164 = dma.done [#allocation9], 2048
    $region77: #{tpu_custom_call.1} parent=1 // pred_fallthru
      _
    // Predicated region
    $region78: #{tpu_custom_call.1} parent=1 // pred_check
      _
    $region79: #{tpu_custom_call.1} parent=1 // pred_check_branch
      %166 = sbr.rel (0) target = $region81
    $region80: #{tpu_custom_call.1} parent=1 // pred_region
      %167 = dma.done [#allocation12], 32
    $region81: #{tpu_custom_call.1} parent=1 // pred_fallthru
      _
    // Predicated region
    $region82: #{tpu_custom_call.1} parent=1 // pred_check
      _
    $region83: #{tpu_custom_call.1} parent=1 // pred_check_branch
      %169 = sbr.rel (0) target = $region85
    $region84: #{tpu_custom_call.1} parent=1 // pred_region
      %170 = dma.done [#allocation12], 2048
    $region85: #{tpu_custom_call.1} parent=1 // pred_fallthru
      _
    // Predicated region
    $region86: #{tpu_custom_call.1} parent=1 // pred_check
      _
    $region87: #{tpu_custom_call.1} parent=1 // pred_check_branch
      %172 = sbr.rel (0) target = $region89
    $region88: #{tpu_custom_call.1} parent=1 // pred_region
      %173 = dma.done [#allocation15], 1024
    $region89: #{tpu_custom_call.1} parent=1 // pred_fallthru
      _
    // Predicated region
    $region90: #{tpu_custom_call.1} parent=1 // pred_check
      _
    $region91: #{tpu_custom_call.1} parent=1 // pred_check_branch
      %175 = sbr.rel (0) target = $region93
    $region92: #{tpu_custom_call.1} parent=1 // pred_region
      %176 = dma.done [#allocation15], 64
    $region93: #{tpu_custom_call.1} parent=1 // pred_fallthru
      _
    // Predicated region
    $region94: #{tpu_custom_call.1} parent=1 // pred_check
      _
    $region95: #{tpu_custom_call.1} parent=1 // pred_check_branch
      %178 = sbr.rel (0) target = $region97
    $region96: #{tpu_custom_call.1} parent=1 // pred_region
      %179 = dma.done [#allocation18], 1024
    $region97: #{tpu_custom_call.1} parent=1 // pred_fallthru
      _
    %v181 = vlaneseq
    %v182 = vand.u32 %v181, 127
    %vm183 = vcmp.lt.s32.totalorder %v182, 32
    %v184 = vsel %vm183, 1, 0
    %v185 = vcvt.s32.f32 %v184
    %vm186 = vcmp.lt.s32.totalorder %v182, 16
    %v187 = vsel %vm186, 1, 0
    %v188 = vcvt.s32.f32 %v187
    %vm189 = vcmp.lt.s32.totalorder %v182, 8
    %v190 = vsel %vm189, 1, 0
    %v191 = vcvt.s32.f32 %v190
    %v192 = vld [vmem:[#allocation7] sm:$0xf]
    %v193 = vld [vmem:[#allocation2] sm:$0xf]
    %v194 = vld [vmem:[#allocation2 + $0x4] sm:$0xf]
    %v195 = vld [vmem:[#allocation5] sm:$0xf]
    %v196 = vld [vmem:[#allocation5 + $0x4] sm:$0xf]
    %v197 = vld [vmem:[#allocation5 + $0x8] sm:$0xf]
    %v198 = vld [vmem:[#allocation5 + $0xc] sm:$0xf]
    %v199 = vld [vmem:[#allocation5 + $0x10] sm:$0xf]
    %v200 = vld [vmem:[#allocation5 + $0x14] sm:$0xf]
    %v201 = vld [vmem:[#allocation5 + $0x18] sm:$0xf]
    %v202 = vld [vmem:[#allocation5 + $0x1c] sm:$0xf]
    %v203 = vld [vmem:[#allocation5 + $0x20] sm:$0xf]
    %v204 = vld [vmem:[#allocation5 + $0x24] sm:$0xf]
    %v205 = vld [vmem:[#allocation5 + $0x28] sm:$0xf]
    %v206 = vld [vmem:[#allocation5 + $0x2c] sm:$0xf]
    %v207 = vld [vmem:[#allocation5 + $0x30] sm:$0xf]
    %v208 = vld [vmem:[#allocation5 + $0x34] sm:$0xf]
    %v209 = vld [vmem:[#allocation5 + $0x38] sm:$0xf]
    %v210 = vld [vmem:[#allocation5 + $0x3c] sm:$0xf]
    %v211 = vlaneseq
    %v212 = vshrl.u32 %v211, 7
    %v213 = vsub.s32 0, %v212
    %v214 = vrot.slane %v192, %v213
    %v217 = vunpack.c.l.b16 %v193
    %v218 = vunpack.c.l.b16 %v194
    %v219 = vpack.c.b16 %v218, %v217
    %v237 = vunpack.c.l.b16 %v195
    %v238 = vunpack.c.l.b16 %v196
    %v239 = vunpack.c.l.b16 %v197
    %v240 = vunpack.c.l.b16 %v198
    %v241 = vunpack.c.l.b16 %v199
    %v242 = vunpack.c.l.b16 %v200
    %v243 = vunpack.c.l.b16 %v201
    %v244 = vunpack.c.l.b16 %v202
    %v245 = vunpack.c.l.b16 %v203
    %v246 = vunpack.c.l.b16 %v204
    %v247 = vunpack.c.l.b16 %v205
    %v248 = vunpack.c.l.b16 %v206
    %v249 = vunpack.c.l.b16 %v207
    %v250 = vunpack.c.l.b16 %v208
    %v251 = vunpack.c.l.b16 %v209
    %v252 = vunpack.c.l.b16 %v210
    %v253 = vpack.c.b16 %v238, %v237
    %v254 = vpack.c.b16 %v240, %v239
    %v255 = vpack.c.b16 %v242, %v241
    %v256 = vpack.c.b16 %v244, %v243
    %v257 = vpack.c.b16 %v246, %v245
    %v258 = vpack.c.b16 %v248, %v247
    %v259 = vpack.c.b16 %v250, %v249
    %v260 = vpack.c.b16 %v252, %v251
    %269 = vmatprep.subr.bf16.mxu0 0
    %270 = vmatpush1.bf16.msra.mxu0 %v253
    %271 = vmatprep.subr.bf16.mxu0 0
    %272 = vmatpush1.bf16.msra.mxu0 %v254
    %273 = vmatprep.subr.bf16.mxu0 0
    %274 = vmatpush1.bf16.msra.mxu0 %v255
    %275 = vmatprep.subr.bf16.mxu0 0
    %276 = vmatpush1.bf16.msra.mxu0 %v256
    %277 = vmatprep.subr.bf16.mxu0 0
    %278 = vmatpush1.bf16.msra.mxu0 %v257
    %279 = vmatprep.subr.bf16.mxu0 0
    %280 = vmatpush1.bf16.msra.mxu0 %v258
    %281 = vmatprep.subr.bf16.mxu0 0
    %282 = vmatpush1.bf16.msra.mxu0 %v259
    %283 = vmatprep.subr.bf16.mxu0 0
    %284 = vmatpush1.bf16.msra.mxu0 %v260
    %285 = vmatprep.subr.bf16.mxu0 0
    %286 = vmatpush1.bf16.msra.mxu0 0
    %287 = vmatprep.subr.bf16.mxu0 0
    %288 = vmatpush1.bf16.msra.mxu0 0
    %289 = vmatprep.subr.bf16.mxu0 0
    %290 = vmatpush1.bf16.msra.mxu0 0
    %291 = vmatprep.subr.bf16.mxu0 0
    %292 = vmatpush1.bf16.msra.mxu0 0
    %293 = vmatprep.subr.bf16.mxu0 0
    %294 = vmatpush1.bf16.msra.mxu0 0
    %295 = vmatprep.subr.bf16.mxu0 0
    %296 = vmatpush1.bf16.msra.mxu0 0
    %297 = vmatprep.subr.bf16.mxu0 0
    %298 = vmatpush1.bf16.msra.mxu0 0
    %299 = vmatprep.subr.bf16.mxu0 0
    %300 = vmatpush1.bf16.msra.mxu0 0
    %301 = vmatprep.mubr.bf16.mxu0 0
    %302 = vmatmul.mubr.bf16.gmra.mrb[0].mxu0 %v219
    %v303 = vpop.f32.mrb[0].mxu0
    %v304 = vadd.f32 %v214, %v303
    %v305 = vpop.f32.mrb[0].mxu0
    %v306 = vpop.f32.mrb[0].mxu0
    %v307 = vadd.f32 %v214, %v306
    %v308 = vpop.f32.mrb[0].mxu0
    %309 = vdwg.mxu0
    %310 = vadd.xlane.f32.xlu0 %v304
    %v311 = vpop.xlane.xlu0 %310
    %312 = vadd.xlane.f32.xlu0 %v307
    %v313 = vpop.xlane.xlu0 %312
    %v314 = vmul.f32 %v311, 0.03125
    %v315 = vmul.f32 %v313, 0.03125
    %v316 = vsub.f32 %v304, %v314
    %v317 = vsub.f32 %v307, %v315
    %v318 = vmul.f32 %v316, %v185
    %v319 = vmul.f32 %v317, %v185
    %v320 = vmul.f32 %v318, %v318
    %v321 = vmul.f32 %v319, %v319
    %322 = vadd.xlane.f32.xlu0 %v320
    %v323 = vpop.xlane.xlu0 %322
    %324 = vadd.xlane.f32.xlu0 %v321
    %v325 = vpop.xlane.xlu0 %324
    %v326 = vmul.f32 %v323, 0.03125
    %v327 = vmul.f32 %v325, 0.03125
    %v328 = vadd.f32 %v326, 1e-05
    %v329 = vadd.f32 %v327, 1e-05
    %v330 = vrsqrt.pop %v328
    %v331 = vrsqrt.pop %v329
    %v332 = vmul.f32 %v318, %v330
    %v333 = vmul.f32 %v319, %v331
    %v334 = vlaneseq
    %v335 = vshrl.u32 %v334, 7
    %v336 = vsub.s32 1, %v335
    %v337 = vrot.slane %v192, %v336
    %v338 = vmul.f32 %v332, %v337
    %v339 = vmul.f32 %v333, %v337
    %v340 = vlaneseq
    %v341 = vshrl.u32 %v340, 7
    %v342 = vsub.s32 2, %v341
    %v343 = vrot.slane %v192, %v342
    %v344 = vadd.f32 %v338, %v343
    %v345 = vadd.f32 %v339, %v343
    %v346 = vlaneseq
    %v347 = vshrl.u32 %v346, 7
    %v348 = vsub.s32 3, %v347
    %v349 = vrot.slane %v192, %v348
    %v350 = vadd.f32 %v344, %v349
    %v351 = vadd.f32 %v345, %v349
    %v352 = vld [vmem:[#allocation8] sm:$0xf]
    %v353 = vld [vmem:[#allocation8 + $0x4] sm:$0xf]
    %v354 = vld [vmem:[#allocation8 + $0x8] sm:$0xf]
    %v355 = vld [vmem:[#allocation8 + $0xc] sm:$0xf]
    %v356 = vld [vmem:[#allocation8 + $0x10] sm:$0xf]
    %v357 = vld [vmem:[#allocation8 + $0x14] sm:$0xf]
    %v358 = vld [vmem:[#allocation8 + $0x18] sm:$0xf]
    %v359 = vld [vmem:[#allocation8 + $0x1c] sm:$0xf]
    %v360 = vld [vmem:[#allocation8 + $0x20] sm:$0xf]
    %v361 = vld [vmem:[#allocation8 + $0x24] sm:$0xf]
    %v362 = vld [vmem:[#allocation8 + $0x28] sm:$0xf]
    %v363 = vld [vmem:[#allocation8 + $0x2c] sm:$0xf]
    %v364 = vld [vmem:[#allocation8 + $0x30] sm:$0xf]
    %v365 = vld [vmem:[#allocation8 + $0x34] sm:$0xf]
    %v366 = vld [vmem:[#allocation8 + $0x38] sm:$0xf]
    %v367 = vld [vmem:[#allocation8 + $0x3c] sm:$0xf]
    %v368 = vld [vmem:[%s4] sm:$0x3f]
    %v369 = vld [vmem:[#allocation10] sm:$0xf]
    %v370 = vld [vmem:[#allocation10 + $0x4] sm:$0xf]
    %v371 = vld [vmem:[#allocation10 + $0x8] sm:$0xf]
    %v372 = vld [vmem:[#allocation10 + $0xc] sm:$0xf]
    %v373 = vld [vmem:[#allocation10 + $0x10] sm:$0xf]
    %v374 = vld [vmem:[#allocation10 + $0x14] sm:$0xf]
    %v375 = vld [vmem:[#allocation10 + $0x18] sm:$0xf]
    %v376 = vld [vmem:[#allocation10 + $0x1c] sm:$0xf]
    %v377 = vld [vmem:[#allocation10 + $0x20] sm:$0xf]
    %v378 = vld [vmem:[#allocation10 + $0x24] sm:$0xf]
    %v379 = vld [vmem:[#allocation10 + $0x28] sm:$0xf]
    %v380 = vld [vmem:[#allocation10 + $0x2c] sm:$0xf]
    %v381 = vld [vmem:[#allocation10 + $0x30] sm:$0xf]
    %v382 = vld [vmem:[#allocation10 + $0x34] sm:$0xf]
    %v383 = vld [vmem:[#allocation10 + $0x38] sm:$0xf]
    %v384 = vld [vmem:[#allocation10 + $0x3c] sm:$0xf]
    %v385 = vld [vmem:[#allocation11] sm:$0x1]
    %v386 = vld [vmem:[#allocation13] sm:$0xf]
    %v387 = vld [vmem:[#allocation13 + $0x4] sm:$0xf]
    %v388 = vld [vmem:[#allocation13 + $0x8] sm:$0xf]
    %v389 = vld [vmem:[#allocation13 + $0xc] sm:$0xf]
    %v390 = vld [vmem:[#allocation13 + $0x10] sm:$0xf]
    %v391 = vld [vmem:[#allocation13 + $0x14] sm:$0xf]
    %v392 = vld [vmem:[#allocation13 + $0x18] sm:$0xf]
    %v393 = vld [vmem:[#allocation13 + $0x1c] sm:$0xf]
    %v394 = vld [vmem:[#allocation13 + $0x20] sm:$0xf]
    %v395 = vld [vmem:[#allocation13 + $0x24] sm:$0xf]
    %v396 = vld [vmem:[#allocation13 + $0x28] sm:$0xf]
    %v397 = vld [vmem:[#allocation13 + $0x2c] sm:$0xf]
    %v398 = vld [vmem:[#allocation13 + $0x30] sm:$0xf]
    %v399 = vld [vmem:[#allocation13 + $0x34] sm:$0xf]
    %v400 = vld [vmem:[#allocation13 + $0x38] sm:$0xf]
    %v401 = vld [vmem:[#allocation13 + $0x3c] sm:$0xf]
    %v402 = vpack.c.bf16 %v351, %v350
    %v403 = vlaneseq
    %v404 = vshrl.u32 %v403, 7
    %v405 = vsub.s32 0, %v404
    %v406 = vrot.slane %v368, %v405
    %v423 = vunpack.c.l.b16 %v352
    %v424 = vunpack.c.l.b16 %v353
    %v425 = vunpack.c.l.b16 %v354
    %v426 = vunpack.c.l.b16 %v355
    %v427 = vunpack.c.l.b16 %v356
    %v428 = vunpack.c.l.b16 %v357
    %v429 = vunpack.c.l.b16 %v358
    %v430 = vunpack.c.l.b16 %v359
    %v431 = vunpack.c.l.b16 %v360
    %v432 = vunpack.c.l.b16 %v361
    %v433 = vunpack.c.l.b16 %v362
    %v434 = vunpack.c.l.b16 %v363
    %v435 = vunpack.c.l.b16 %v364
    %v436 = vunpack.c.l.b16 %v365
    %v437 = vunpack.c.l.b16 %v366
    %v438 = vunpack.c.l.b16 %v367
    %v439 = vpack.c.b16 %v424, %v423
    %v440 = vpack.c.b16 %v426, %v425
    %v441 = vpack.c.b16 %v428, %v427
    %v442 = vpack.c.b16 %v430, %v429
    %v443 = vpack.c.b16 %v432, %v431
    %v444 = vpack.c.b16 %v434, %v433
    %v445 = vpack.c.b16 %v436, %v435
    %v446 = vpack.c.b16 %v438, %v437
    %455 = vmatprep.subr.bf16.mxu0 0
    %456 = vmatpush1.bf16.msra.mxu0 %v439
    %457 = vmatprep.subr.bf16.mxu0 0
    %458 = vmatpush1.bf16.msra.mxu0 %v440
    %459 = vmatprep.subr.bf16.mxu0 0
    %460 = vmatpush1.bf16.msra.mxu0 %v441
    %461 = vmatprep.subr.bf16.mxu0 0
    %462 = vmatpush1.bf16.msra.mxu0 %v442
    %463 = vmatprep.subr.bf16.mxu0 0
    %464 = vmatpush1.bf16.msra.mxu0 %v443
    %465 = vmatprep.subr.bf16.mxu0 0
    %466 = vmatpush1.bf16.msra.mxu0 %v444
    %467 = vmatprep.subr.bf16.mxu0 0
    %468 = vmatpush1.bf16.msra.mxu0 %v445
    %469 = vmatprep.subr.bf16.mxu0 0
    %470 = vmatpush1.bf16.msra.mxu0 %v446
    %471 = vmatprep.subr.bf16.mxu0 0
    %472 = vmatpush1.bf16.msra.mxu0 0
    %473 = vmatprep.subr.bf16.mxu0 0
    %474 = vmatpush1.bf16.msra.mxu0 0
    %475 = vmatprep.subr.bf16.mxu0 0
    %476 = vmatpush1.bf16.msra.mxu0 0
    %477 = vmatprep.subr.bf16.mxu0 0
    %478 = vmatpush1.bf16.msra.mxu0 0
    %479 = vmatprep.subr.bf16.mxu0 0
    %480 = vmatpush1.bf16.msra.mxu0 0
    %481 = vmatprep.subr.bf16.mxu0 0
    %482 = vmatpush1.bf16.msra.mxu0 0
    %483 = vmatprep.subr.bf16.mxu0 0
    %484 = vmatpush1.bf16.msra.mxu0 0
    %485 = vmatprep.subr.bf16.mxu0 0
    %486 = vmatpush1.bf16.msra.mxu0 0
    %487 = vmatprep.mubr.bf16.mxu0 0
    %488 = vmatmul.mubr.bf16.gmra.mrb[0].mxu0 %v402
    %v489 = vpop.f32.mrb[0].mxu0
    %v490 = vadd.f32 %v406, %v489
    %v491 = vpop.f32.mrb[0].mxu0
    %v492 = vpop.f32.mrb[0].mxu0
    %v493 = vadd.f32 %v406, %v492
    %v494 = vpop.f32.mrb[0].mxu0
    %495 = vdwg.mxu0
    %v496 = vadd.f32 %v350, %v490
    %v497 = vadd.f32 %v351, %v493
    %498 = vadd.xlane.f32.xlu0 %v496
    %v499 = vpop.xlane.xlu0 %498
    %500 = vadd.xlane.f32.xlu0 %v497
    %v501 = vpop.xlane.xlu0 %500
    %v502 = vmul.f32 %v499, 0.03125
    %v503 = vmul.f32 %v501, 0.03125
    %v504 = vsub.f32 %v496, %v502
    %v505 = vsub.f32 %v497, %v503
    %v506 = vmul.f32 %v504, %v185
    %v507 = vmul.f32 %v505, %v185
    %v508 = vmul.f32 %v506, %v506
    %v509 = vmul.f32 %v507, %v507
    %510 = vadd.xlane.f32.xlu0 %v508
    %v511 = vpop.xlane.xlu0 %510
    %512 = vadd.xlane.f32.xlu0 %v509
    %v513 = vpop.xlane.xlu0 %512
    %v514 = vmul.f32 %v511, 0.03125
    %v515 = vmul.f32 %v513, 0.03125
    %v516 = vadd.f32 %v514, 1e-05
    %v517 = vadd.f32 %v515, 1e-05
    %v518 = vrsqrt.pop %v516
    %v519 = vrsqrt.pop %v517
    %v520 = vmul.f32 %v506, %v518
    %v521 = vmul.f32 %v507, %v519
    %v522 = vlaneseq
    %v523 = vshrl.u32 %v522, 7
    %v524 = vsub.s32 1, %v523
    %v525 = vrot.slane %v368, %v524
    %v526 = vmul.f32 %v520, %v525
    %v527 = vmul.f32 %v521, %v525
    %v528 = vlaneseq
    %v529 = vshrl.u32 %v528, 7
    %v530 = vsub.s32 2, %v529
    %v531 = vrot.slane %v368, %v530
    %v532 = vadd.f32 %v526, %v531
    %v533 = vadd.f32 %v527, %v531
    %v534 = vpack.c.bf16 %v533, %v532
    %v536 = vlaneseq
    %v537 = vshrl.u32 %v536, 7
    %v538 = vsub.s32 0, %v537
    %v539 = vrot.slane %v385, %v538
    %v557 = vunpack.c.l.b16 %v369
    %v558 = vunpack.c.l.b16 %v370
    %v559 = vunpack.c.l.b16 %v371
    %v560 = vunpack.c.l.b16 %v372
    %v561 = vunpack.c.l.b16 %v373
    %v562 = vunpack.c.l.b16 %v374
    %v563 = vunpack.c.l.b16 %v375
    %v564 = vunpack.c.l.b16 %v376
    %v565 = vunpack.c.l.b16 %v377
    %v566 = vunpack.c.l.b16 %v378
    %v567 = vunpack.c.l.b16 %v379
    %v568 = vunpack.c.l.b16 %v380
    %v569 = vunpack.c.l.b16 %v381
    %v570 = vunpack.c.l.b16 %v382
    %v571 = vunpack.c.l.b16 %v383
    %v572 = vunpack.c.l.b16 %v384
    %v573 = vpack.c.b16 %v558, %v557
    %v574 = vpack.c.b16 %v560, %v559
    %v575 = vpack.c.b16 %v562, %v561
    %v576 = vpack.c.b16 %v564, %v563
    %v577 = vpack.c.b16 %v566, %v565
    %v578 = vpack.c.b16 %v568, %v567
    %v579 = vpack.c.b16 %v570, %v569
    %v580 = vpack.c.b16 %v572, %v571
    %589 = vmatprep.subr.bf16.mxu0 0
    %590 = vmatpush1.bf16.msra.mxu0 %v573
    %591 = vmatprep.subr.bf16.mxu0 0
    %592 = vmatpush1.bf16.msra.mxu0 %v574
    %593 = vmatprep.subr.bf16.mxu0 0
    %594 = vmatpush1.bf16.msra.mxu0 %v575
    %595 = vmatprep.subr.bf16.mxu0 0
    %596 = vmatpush1.bf16.msra.mxu0 %v576
    %597 = vmatprep.subr.bf16.mxu0 0
    %598 = vmatpush1.bf16.msra.mxu0 %v577
    %599 = vmatprep.subr.bf16.mxu0 0
    %600 = vmatpush1.bf16.msra.mxu0 %v578
    %601 = vmatprep.subr.bf16.mxu0 0
    %602 = vmatpush1.bf16.msra.mxu0 %v579
    %603 = vmatprep.subr.bf16.mxu0 0
    %604 = vmatpush1.bf16.msra.mxu0 %v580
    %605 = vmatprep.subr.bf16.mxu0 0
    %606 = vmatpush1.bf16.msra.mxu0 0
    %607 = vmatprep.subr.bf16.mxu0 0
    %608 = vmatpush1.bf16.msra.mxu0 0
    %609 = vmatprep.subr.bf16.mxu0 0
    %610 = vmatpush1.bf16.msra.mxu0 0
    %611 = vmatprep.subr.bf16.mxu0 0
    %612 = vmatpush1.bf16.msra.mxu0 0
    %613 = vmatprep.subr.bf16.mxu0 0
    %614 = vmatpush1.bf16.msra.mxu0 0
    %615 = vmatprep.subr.bf16.mxu0 0
    %616 = vmatpush1.bf16.msra.mxu0 0
    %617 = vmatprep.subr.bf16.mxu0 0
    %618 = vmatpush1.bf16.msra.mxu0 0
    %619 = vmatprep.subr.bf16.mxu0 0
    %620 = vmatpush1.bf16.msra.mxu0 0
    %621 = vmatprep.mubr.bf16.mxu0 0
    %622 = vmatmul.mubr.bf16.gmra.mrb[0].mxu0 %v534
    %v623 = vpop.f32.mrb[0].mxu0
    %v624 = vadd.f32 %v539, %v623
    %v625 = vpop.f32.mrb[0].mxu0
    %v626 = vpop.f32.mrb[0].mxu0
    %v627 = vadd.f32 %v539, %v626
    %v628 = vpop.f32.mrb[0].mxu0
    %629 = vdwg.mxu0
    %v630 = vmax.f32 %v624, 0.0
    %v631 = vmax.f32 %v627, 0.0
    %v632 = vpack.c.bf16 %v631, %v630
    %v633 = vlaneseq
    %v634 = vshrl.u32 %v633, 7
    %v635 = vsub.s32 3, %v634
    %v636 = vrot.slane %v368, %v635
    %v653 = vunpack.c.l.b16 %v386
    %v654 = vunpack.c.l.b16 %v387
    %v655 = vunpack.c.l.b16 %v388
    %v656 = vunpack.c.l.b16 %v389
    %v657 = vunpack.c.l.b16 %v390
    %v658 = vunpack.c.l.b16 %v391
    %v659 = vunpack.c.l.b16 %v392
    %v660 = vunpack.c.l.b16 %v393
    %v661 = vunpack.c.l.b16 %v394
    %v662 = vunpack.c.l.b16 %v395
    %v663 = vunpack.c.l.b16 %v396
    %v664 = vunpack.c.l.b16 %v397
    %v665 = vunpack.c.l.b16 %v398
    %v666 = vunpack.c.l.b16 %v399
    %v667 = vunpack.c.l.b16 %v400
    %v668 = vunpack.c.l.b16 %v401
    %v669 = vpack.c.b16 %v654, %v653
    %v670 = vpack.c.b16 %v656, %v655
    %v671 = vpack.c.b16 %v658, %v657
    %v672 = vpack.c.b16 %v660, %v659
    %v673 = vpack.c.b16 %v662, %v661
    %v674 = vpack.c.b16 %v664, %v663
    %v675 = vpack.c.b16 %v666, %v665
    %v676 = vpack.c.b16 %v668, %v667
    %685 = vmatprep.subr.bf16.mxu0 0
    %686 = vmatpush1.bf16.msra.mxu0 %v669
    %687 = vmatprep.subr.bf16.mxu0 0
    %688 = vmatpush1.bf16.msra.mxu0 %v670
    %689 = vmatprep.subr.bf16.mxu0 0
    %690 = vmatpush1.bf16.msra.mxu0 %v671
    %691 = vmatprep.subr.bf16.mxu0 0
    %692 = vmatpush1.bf16.msra.mxu0 %v672
    %693 = vmatprep.subr.bf16.mxu0 0
    %694 = vmatpush1.bf16.msra.mxu0 %v673
    %695 = vmatprep.subr.bf16.mxu0 0
    %696 = vmatpush1.bf16.msra.mxu0 %v674
    %697 = vmatprep.subr.bf16.mxu0 0
    %698 = vmatpush1.bf16.msra.mxu0 %v675
    %699 = vmatprep.subr.bf16.mxu0 0
    %700 = vmatpush1.bf16.msra.mxu0 %v676
    %701 = vmatprep.subr.bf16.mxu0 0
    %702 = vmatpush1.bf16.msra.mxu0 0
    %703 = vmatprep.subr.bf16.mxu0 0
    %704 = vmatpush1.bf16.msra.mxu0 0
    %705 = vmatprep.subr.bf16.mxu0 0
    %706 = vmatpush1.bf16.msra.mxu0 0
    %707 = vmatprep.subr.bf16.mxu0 0
    %708 = vmatpush1.bf16.msra.mxu0 0
    %709 = vmatprep.subr.bf16.mxu0 0
    %710 = vmatpush1.bf16.msra.mxu0 0
    %711 = vmatprep.subr.bf16.mxu0 0
    %712 = vmatpush1.bf16.msra.mxu0 0
    %713 = vmatprep.subr.bf16.mxu0 0
    %714 = vmatpush1.bf16.msra.mxu0 0
    %715 = vmatprep.subr.bf16.mxu0 0
    %716 = vmatpush1.bf16.msra.mxu0 0
    %717 = vmatprep.mubr.bf16.mxu0 0
    %718 = vmatmul.mubr.bf16.gmra.mrb[0].mxu0 %v632
    %v719 = vpop.f32.mrb[0].mxu0
    %v720 = vadd.f32 %v636, %v719
    %v721 = vpop.f32.mrb[0].mxu0
    %v722 = vpop.f32.mrb[0].mxu0
    %v723 = vadd.f32 %v636, %v722
    %v724 = vpop.f32.mrb[0].mxu0
    %725 = vdwg.mxu0
    %v726 = vadd.f32 %v532, %v720
    %v727 = vadd.f32 %v533, %v723
    %728 = vadd.xlane.f32.xlu0 %v726
    %v729 = vpop.xlane.xlu0 %728
    %730 = vadd.xlane.f32.xlu0 %v727
    %v731 = vpop.xlane.xlu0 %730
    %v732 = vmul.f32 %v729, 0.03125
    %v733 = vmul.f32 %v731, 0.03125
    %v734 = vsub.f32 %v726, %v732
    %v735 = vsub.f32 %v727, %v733
    %v736 = vmul.f32 %v734, %v185
    %v737 = vmul.f32 %v735, %v185
    %v738 = vmul.f32 %v736, %v736
    %v739 = vmul.f32 %v737, %v737
    %740 = vadd.xlane.f32.xlu0 %v738
    %v741 = vpop.xlane.xlu0 %740
    %742 = vadd.xlane.f32.xlu0 %v739
    %v743 = vpop.xlane.xlu0 %742
    %v744 = vmul.f32 %v741, 0.03125
    %v745 = vmul.f32 %v743, 0.03125
    %v746 = vadd.f32 %v744, 1e-05
    %v747 = vadd.f32 %v745, 1e-05
    %v748 = vrsqrt.pop %v746
    %v749 = vrsqrt.pop %v747
    %v750 = vmul.f32 %v736, %v748
    %v751 = vmul.f32 %v737, %v749
    %v752 = vlaneseq
    %v753 = vshrl.u32 %v752, 7
    %v754 = vsub.s32 4, %v753
    %v755 = vrot.slane %v368, %v754
    %v756 = vmul.f32 %v750, %v755
    %v757 = vmul.f32 %v751, %v755
    %v758 = vlaneseq
    %v759 = vshrl.u32 %v758, 7
    %v760 = vsub.s32 5, %v759
    %v761 = vrot.slane %v368, %v760
    %v762 = vadd.f32 %v756, %v761
    %v763 = vadd.f32 %v757, %v761
    %s764 = scalar_lea.vmem [#allocation8], 64
    %v765 = vld [vmem:[%s764] sm:$0xf]
    %v766 = vld [vmem:[%s764 + $0x4] sm:$0xf]
    %v767 = vld [vmem:[%s764 + $0x8] sm:$0xf]
    %v768 = vld [vmem:[%s764 + $0xc] sm:$0xf]
    %v769 = vld [vmem:[%s764 + $0x10] sm:$0xf]
    %v770 = vld [vmem:[%s764 + $0x14] sm:$0xf]
    %v771 = vld [vmem:[%s764 + $0x18] sm:$0xf]
    %v772 = vld [vmem:[%s764 + $0x1c] sm:$0xf]
    %v773 = vld [vmem:[%s764 + $0x20] sm:$0xf]
    %v774 = vld [vmem:[%s764 + $0x24] sm:$0xf]
    %v775 = vld [vmem:[%s764 + $0x28] sm:$0xf]
    %v776 = vld [vmem:[%s764 + $0x2c] sm:$0xf]
    %v777 = vld [vmem:[%s764 + $0x30] sm:$0xf]
    %v778 = vld [vmem:[%s764 + $0x34] sm:$0xf]
    %v779 = vld [vmem:[%s764 + $0x38] sm:$0xf]
    %v780 = vld [vmem:[%s764 + $0x3c] sm:$0xf]
    %s781 = scalar_lea.vmem %s4, 8
    %v782 = vld [vmem:[%s781] sm:$0x3f]
    %s783 = scalar_lea.vmem [#allocation10], 64
    %v784 = vld [vmem:[%s783] sm:$0xf]
    %v785 = vld [vmem:[%s783 + $0x4] sm:$0xf]
    %v786 = vld [vmem:[%s783 + $0x8] sm:$0xf]
    %v787 = vld [vmem:[%s783 + $0xc] sm:$0xf]
    %v788 = vld [vmem:[%s783 + $0x10] sm:$0xf]
    %v789 = vld [vmem:[%s783 + $0x14] sm:$0xf]
    %v790 = vld [vmem:[%s783 + $0x18] sm:$0xf]
    %v791 = vld [vmem:[%s783 + $0x1c] sm:$0xf]
    %v792 = vld [vmem:[%s783 + $0x20] sm:$0xf]
    %v793 = vld [vmem:[%s783 + $0x24] sm:$0xf]
    %v794 = vld [vmem:[%s783 + $0x28] sm:$0xf]
    %v795 = vld [vmem:[%s783 + $0x2c] sm:$0xf]
    %v796 = vld [vmem:[%s783 + $0x30] sm:$0xf]
    %v797 = vld [vmem:[%s783 + $0x34] sm:$0xf]
    %v798 = vld [vmem:[%s783 + $0x38] sm:$0xf]
    %v799 = vld [vmem:[%s783 + $0x3c] sm:$0xf]
    %s800 = scalar_lea.vmem [#allocation11], 1
    %v801 = vld [vmem:[%s800] sm:$0x1]
    %s802 = scalar_lea.vmem [#allocation13], 64
    %v803 = vld [vmem:[%s802] sm:$0xf]
    %v804 = vld [vmem:[%s802 + $0x4] sm:$0xf]
    %v805 = vld [vmem:[%s802 + $0x8] sm:$0xf]
    %v806 = vld [vmem:[%s802 + $0xc] sm:$0xf]
    %v807 = vld [vmem:[%s802 + $0x10] sm:$0xf]
    %v808 = vld [vmem:[%s802 + $0x14] sm:$0xf]
    %v809 = vld [vmem:[%s802 + $0x18] sm:$0xf]
    %v810 = vld [vmem:[%s802 + $0x1c] sm:$0xf]
    %v811 = vld [vmem:[%s802 + $0x20] sm:$0xf]
    %v812 = vld [vmem:[%s802 + $0x24] sm:$0xf]
    %v813 = vld [vmem:[%s802 + $0x28] sm:$0xf]
    %v814 = vld [vmem:[%s802 + $0x2c] sm:$0xf]
    %v815 = vld [vmem:[%s802 + $0x30] sm:$0xf]
    %v816 = vld [vmem:[%s802 + $0x34] sm:$0xf]
    %v817 = vld [vmem:[%s802 + $0x38] sm:$0xf]
    %v818 = vld [vmem:[%s802 + $0x3c] sm:$0xf]
    %v819 = vpack.c.bf16 %v763, %v762
    %v820 = vlaneseq
    %v821 = vshrl.u32 %v820, 7
    %v822 = vsub.s32 0, %v821
    %v823 = vrot.slane %v782, %v822
    %v840 = vunpack.c.l.b16 %v765
    %v841 = vunpack.c.l.b16 %v766
    %v842 = vunpack.c.l.b16 %v767
    %v843 = vunpack.c.l.b16 %v768
    %v844 = vunpack.c.l.b16 %v769
    %v845 = vunpack.c.l.b16 %v770
    %v846 = vunpack.c.l.b16 %v771
    %v847 = vunpack.c.l.b16 %v772
    %v848 = vunpack.c.l.b16 %v773
    %v849 = vunpack.c.l.b16 %v774
    %v850 = vunpack.c.l.b16 %v775
    %v851 = vunpack.c.l.b16 %v776
    %v852 = vunpack.c.l.b16 %v777
    %v853 = vunpack.c.l.b16 %v778
    %v854 = vunpack.c.l.b16 %v779
    %v855 = vunpack.c.l.b16 %v780
    %v856 = vpack.c.b16 %v841, %v840
    %v857 = vpack.c.b16 %v843, %v842
    %v858 = vpack.c.b16 %v845, %v844
    %v859 = vpack.c.b16 %v847, %v846
    %v860 = vpack.c.b16 %v849, %v848
    %v861 = vpack.c.b16 %v851, %v850
    %v862 = vpack.c.b16 %v853, %v852
    %v863 = vpack.c.b16 %v855, %v854
    %872 = vmatprep.subr.bf16.mxu0 0
    %873 = vmatpush1.bf16.msra.mxu0 %v856
    %874 = vmatprep.subr.bf16.mxu0 0
    %875 = vmatpush1.bf16.msra.mxu0 %v857
    %876 = vmatprep.subr.bf16.mxu0 0
    %877 = vmatpush1.bf16.msra.mxu0 %v858
    %878 = vmatprep.subr.bf16.mxu0 0
    %879 = vmatpush1.bf16.msra.mxu0 %v859
    %880 = vmatprep.subr.bf16.mxu0 0
    %881 = vmatpush1.bf16.msra.mxu0 %v860
    %882 = vmatprep.subr.bf16.mxu0 0
    %883 = vmatpush1.bf16.msra.mxu0 %v861
    %884 = vmatprep.subr.bf16.mxu0 0
    %885 = vmatpush1.bf16.msra.mxu0 %v862
    %886 = vmatprep.subr.bf16.mxu0 0
    %887 = vmatpush1.bf16.msra.mxu0 %v863
    %888 = vmatprep.subr.bf16.mxu0 0
    %889 = vmatpush1.bf16.msra.mxu0 0
    %890 = vmatprep.subr.bf16.mxu0 0
    %891 = vmatpush1.bf16.msra.mxu0 0
    %892 = vmatprep.subr.bf16.mxu0 0
    %893 = vmatpush1.bf16.msra.mxu0 0
    %894 = vmatprep.subr.bf16.mxu0 0
    %895 = vmatpush1.bf16.msra.mxu0 0
    %896 = vmatprep.subr.bf16.mxu0 0
    %897 = vmatpush1.bf16.msra.mxu0 0
    %898 = vmatprep.subr.bf16.mxu0 0
    %899 = vmatpush1.bf16.msra.mxu0 0
    %900 = vmatprep.subr.bf16.mxu0 0
    %901 = vmatpush1.bf16.msra.mxu0 0
    %902 = vmatprep.subr.bf16.mxu0 0
    %903 = vmatpush1.bf16.msra.mxu0 0
    %904 = vmatprep.mubr.bf16.mxu0 0
    %905 = vmatmul.mubr.bf16.gmra.mrb[0].mxu0 %v819
    %v906 = vpop.f32.mrb[0].mxu0
    %v907 = vadd.f32 %v823, %v906
    %v908 = vpop.f32.mrb[0].mxu0
    %v909 = vpop.f32.mrb[0].mxu0
    %v910 = vadd.f32 %v823, %v909
    %v911 = vpop.f32.mrb[0].mxu0
    %912 = vdwg.mxu0
    %v913 = vadd.f32 %v762, %v907
    %v914 = vadd.f32 %v763, %v910
    %915 = vadd.xlane.f32.xlu0 %v913
    %v916 = vpop.xlane.xlu0 %915
    %917 = vadd.xlane.f32.xlu0 %v914
    %v918 = vpop.xlane.xlu0 %917
    %v919 = vmul.f32 %v916, 0.03125
    %v920 = vmul.f32 %v918, 0.03125
    %v921 = vsub.f32 %v913, %v919
    %v922 = vsub.f32 %v914, %v920
    %v923 = vmul.f32 %v921, %v185
    %v924 = vmul.f32 %v922, %v185
    %v925 = vmul.f32 %v923, %v923
    %v926 = vmul.f32 %v924, %v924
    %927 = vadd.xlane.f32.xlu0 %v925
    %v928 = vpop.xlane.xlu0 %927
    %929 = vadd.xlane.f32.xlu0 %v926
    %v930 = vpop.xlane.xlu0 %929
    %v931 = vmul.f32 %v928, 0.03125
    %v932 = vmul.f32 %v930, 0.03125
    %v933 = vadd.f32 %v931, 1e-05
    %v934 = vadd.f32 %v932, 1e-05
    %v935 = vrsqrt.pop %v933
    %v936 = vrsqrt.pop %v934
    %v937 = vmul.f32 %v923, %v935
    %v938 = vmul.f32 %v924, %v936
    %v939 = vlaneseq
    %v940 = vshrl.u32 %v939, 7
    %v941 = vsub.s32 1, %v940
    %v942 = vrot.slane %v782, %v941
    %v943 = vmul.f32 %v937, %v942
    %v944 = vmul.f32 %v938, %v942
    %v945 = vlaneseq
    %v946 = vshrl.u32 %v945, 7
    %v947 = vsub.s32 2, %v946
    %v948 = vrot.slane %v782, %v947
    %v949 = vadd.f32 %v943, %v948
    %v950 = vadd.f32 %v944, %v948
    %v951 = vpack.c.bf16 %v950, %v949
    %v953 = vlaneseq
    %v954 = vshrl.u32 %v953, 7
    %v955 = vsub.s32 0, %v954
    %v956 = vrot.slane %v801, %v955
    %v974 = vunpack.c.l.b16 %v784
    %v975 = vunpack.c.l.b16 %v785
    %v976 = vunpack.c.l.b16 %v786
    %v977 = vunpack.c.l.b16 %v787
    %v978 = vunpack.c.l.b16 %v788
    %v979 = vunpack.c.l.b16 %v789
    %v980 = vunpack.c.l.b16 %v790
    %v981 = vunpack.c.l.b16 %v791
    %v982 = vunpack.c.l.b16 %v792
    %v983 = vunpack.c.l.b16 %v793
    %v984 = vunpack.c.l.b16 %v794
    %v985 = vunpack.c.l.b16 %v795
    %v986 = vunpack.c.l.b16 %v796
    %v987 = vunpack.c.l.b16 %v797
    %v988 = vunpack.c.l.b16 %v798
    %v989 = vunpack.c.l.b16 %v799
    %v990 = vpack.c.b16 %v975, %v974
    %v991 = vpack.c.b16 %v977, %v976
    %v992 = vpack.c.b16 %v979, %v978
    %v993 = vpack.c.b16 %v981, %v980
    %v994 = vpack.c.b16 %v983, %v982
    %v995 = vpack.c.b16 %v985, %v984
    %v996 = vpack.c.b16 %v987, %v986
    %v997 = vpack.c.b16 %v989, %v988
    %1006 = vmatprep.subr.bf16.mxu0 0
    %1007 = vmatpush1.bf16.msra.mxu0 %v990
    %1008 = vmatprep.subr.bf16.mxu0 0
    %1009 = vmatpush1.bf16.msra.mxu0 %v991
    %1010 = vmatprep.subr.bf16.mxu0 0
    %1011 = vmatpush1.bf16.msra.mxu0 %v992
    %1012 = vmatprep.subr.bf16.mxu0 0
    %1013 = vmatpush1.bf16.msra.mxu0 %v993
    %1014 = vmatprep.subr.bf16.mxu0 0
    %1015 = vmatpush1.bf16.msra.mxu0 %v994
    %1016 = vmatprep.subr.bf16.mxu0 0
    %1017 = vmatpush1.bf16.msra.mxu0 %v995
    %1018 = vmatprep.subr.bf16.mxu0 0
    %1019 = vmatpush1.bf16.msra.mxu0 %v996
    %1020 = vmatprep.subr.bf16.mxu0 0
    %1021 = vmatpush1.bf16.msra.mxu0 %v997
    %1022 = vmatprep.subr.bf16.mxu0 0
    %1023 = vmatpush1.bf16.msra.mxu0 0
    %1024 = vmatprep.subr.bf16.mxu0 0
    %1025 = vmatpush1.bf16.msra.mxu0 0
    %1026 = vmatprep.subr.bf16.mxu0 0
    %1027 = vmatpush1.bf16.msra.mxu0 0
    %1028 = vmatprep.subr.bf16.mxu0 0
    %1029 = vmatpush1.bf16.msra.mxu0 0
    %1030 = vmatprep.subr.bf16.mxu0 0
    %1031 = vmatpush1.bf16.msra.mxu0 0
    %1032 = vmatprep.subr.bf16.mxu0 0
    %1033 = vmatpush1.bf16.msra.mxu0 0
    %1034 = vmatprep.subr.bf16.mxu0 0
    %1035 = vmatpush1.bf16.msra.mxu0 0
    %1036 = vmatprep.subr.bf16.mxu0 0
    %1037 = vmatpush1.bf16.msra.mxu0 0
    %1038 = vmatprep.mubr.bf16.mxu0 0
    %1039 = vmatmul.mubr.bf16.gmra.mrb[0].mxu0 %v951
    %v1040 = vpop.f32.mrb[0].mxu0
    %v1041 = vadd.f32 %v956, %v1040
    %v1042 = vpop.f32.mrb[0].mxu0
    %v1043 = vpop.f32.mrb[0].mxu0
    %v1044 = vadd.f32 %v956, %v1043
    %v1045 = vpop.f32.mrb[0].mxu0
    %1046 = vdwg.mxu0
    %v1047 = vmax.f32 %v1041, 0.0
    %v1048 = vmax.f32 %v1044, 0.0
    %v1049 = vpack.c.bf16 %v1048, %v1047
    %v1050 = vlaneseq
    %v1051 = vshrl.u32 %v1050, 7
    %v1052 = vsub.s32 3, %v1051
    %v1053 = vrot.slane %v782, %v1052
    %v1070 = vunpack.c.l.b16 %v803
    %v1071 = vunpack.c.l.b16 %v804
    %v1072 = vunpack.c.l.b16 %v805
    %v1073 = vunpack.c.l.b16 %v806
    %v1074 = vunpack.c.l.b16 %v807
    %v1075 = vunpack.c.l.b16 %v808
    %v1076 = vunpack.c.l.b16 %v809
    %v1077 = vunpack.c.l.b16 %v810
    %v1078 = vunpack.c.l.b16 %v811
    %v1079 = vunpack.c.l.b16 %v812
    %v1080 = vunpack.c.l.b16 %v813
    %v1081 = vunpack.c.l.b16 %v814
    %v1082 = vunpack.c.l.b16 %v815
    %v1083 = vunpack.c.l.b16 %v816
    %v1084 = vunpack.c.l.b16 %v817
    %v1085 = vunpack.c.l.b16 %v818
    %v1086 = vpack.c.b16 %v1071, %v1070
    %v1087 = vpack.c.b16 %v1073, %v1072
    %v1088 = vpack.c.b16 %v1075, %v1074
    %v1089 = vpack.c.b16 %v1077, %v1076
    %v1090 = vpack.c.b16 %v1079, %v1078
    %v1091 = vpack.c.b16 %v1081, %v1080
    %v1092 = vpack.c.b16 %v1083, %v1082
    %v1093 = vpack.c.b16 %v1085, %v1084
    %1102 = vmatprep.subr.bf16.mxu0 0
    %1103 = vmatpush1.bf16.msra.mxu0 %v1086
    %1104 = vmatprep.subr.bf16.mxu0 0
    %1105 = vmatpush1.bf16.msra.mxu0 %v1087
    %1106 = vmatprep.subr.bf16.mxu0 0
    %1107 = vmatpush1.bf16.msra.mxu0 %v1088
    %1108 = vmatprep.subr.bf16.mxu0 0
    %1109 = vmatpush1.bf16.msra.mxu0 %v1089
    %1110 = vmatprep.subr.bf16.mxu0 0
    %1111 = vmatpush1.bf16.msra.mxu0 %v1090
    %1112 = vmatprep.subr.bf16.mxu0 0
    %1113 = vmatpush1.bf16.msra.mxu0 %v1091
    %1114 = vmatprep.subr.bf16.mxu0 0
    %1115 = vmatpush1.bf16.msra.mxu0 %v1092
    %1116 = vmatprep.subr.bf16.mxu0 0
    %1117 = vmatpush1.bf16.msra.mxu0 %v1093
    %1118 = vmatprep.subr.bf16.mxu0 0
    %1119 = vmatpush1.bf16.msra.mxu0 0
    %1120 = vmatprep.subr.bf16.mxu0 0
    %1121 = vmatpush1.bf16.msra.mxu0 0
    %1122 = vmatprep.subr.bf16.mxu0 0
    %1123 = vmatpush1.bf16.msra.mxu0 0
    %1124 = vmatprep.subr.bf16.mxu0 0
    %1125 = vmatpush1.bf16.msra.mxu0 0
    %1126 = vmatprep.subr.bf16.mxu0 0
    %1127 = vmatpush1.bf16.msra.mxu0 0
    %1128 = vmatprep.subr.bf16.mxu0 0
    %1129 = vmatpush1.bf16.msra.mxu0 0
    %1130 = vmatprep.subr.bf16.mxu0 0
    %1131 = vmatpush1.bf16.msra.mxu0 0
    %1132 = vmatprep.subr.bf16.mxu0 0
    %1133 = vmatpush1.bf16.msra.mxu0 0
    %1134 = vmatprep.mubr.bf16.mxu0 0
    %1135 = vmatmul.mubr.bf16.gmra.mrb[0].mxu0 %v1049
    %v1136 = vpop.f32.mrb[0].mxu0
    %v1137 = vadd.f32 %v1053, %v1136
    %v1138 = vpop.f32.mrb[0].mxu0
    %v1139 = vpop.f32.mrb[0].mxu0
    %v1140 = vadd.f32 %v1053, %v1139
    %v1141 = vpop.f32.mrb[0].mxu0
    %1142 = vdwg.mxu0
    %v1143 = vadd.f32 %v949, %v1137
    %v1144 = vadd.f32 %v950, %v1140
    %1145 = vadd.xlane.f32.xlu0 %v1143
    %v1146 = vpop.xlane.xlu0 %1145
    %1147 = vadd.xlane.f32.xlu0 %v1144
    %v1148 = vpop.xlane.xlu0 %1147
    %v1149 = vmul.f32 %v1146, 0.03125
    %v1150 = vmul.f32 %v1148, 0.03125
    %v1151 = vsub.f32 %v1143, %v1149
    %v1152 = vsub.f32 %v1144, %v1150
    %v1153 = vmul.f32 %v1151, %v185
    %v1154 = vmul.f32 %v1152, %v185
    %v1155 = vmul.f32 %v1153, %v1153
    %v1156 = vmul.f32 %v1154, %v1154
    %1157 = vadd.xlane.f32.xlu0 %v1155
    %v1158 = vpop.xlane.xlu0 %1157
    %1159 = vadd.xlane.f32.xlu0 %v1156
    %v1160 = vpop.xlane.xlu0 %1159
    %v1161 = vmul.f32 %v1158, 0.03125
    %v1162 = vmul.f32 %v1160, 0.03125
    %v1163 = vadd.f32 %v1161, 1e-05
    %v1164 = vadd.f32 %v1162, 1e-05
    %v1165 = vrsqrt.pop %v1163
    %v1166 = vrsqrt.pop %v1164
    %v1167 = vmul.f32 %v1153, %v1165
    %v1168 = vmul.f32 %v1154, %v1166
    %v1169 = vlaneseq
    %v1170 = vshrl.u32 %v1169, 7
    %v1171 = vsub.s32 4, %v1170
    %v1172 = vrot.slane %v782, %v1171
    %v1173 = vmul.f32 %v1167, %v1172
    %v1174 = vmul.f32 %v1168, %v1172
    %v1175 = vlaneseq
    %v1176 = vshrl.u32 %v1175, 7
    %v1177 = vsub.s32 5, %v1176
    %v1178 = vrot.slane %v782, %v1177
    %v1179 = vadd.f32 %v1173, %v1178
    %v1180 = vadd.f32 %v1174, %v1178
    %v1181 = vld [vmem:[#allocation16] sm:$0x7]
    %v1182 = vld [vmem:[%s11] sm:$0x7]
    %v1183 = vpack.c.bf16 %v1180, %v1179
    %v1184 = vld [vmem:[#allocation14] sm:$0xf]
    %v1185 = vld [vmem:[#allocation14 + $0x4] sm:$0xf]
    %v1186 = vld [vmem:[#allocation14 + $0x8] sm:$0xf]
    %v1187 = vld [vmem:[#allocation14 + $0xc] sm:$0xf]
    %v1188 = vld [vmem:[#allocation14 + $0x10] sm:$0xf]
    %v1189 = vld [vmem:[#allocation14 + $0x14] sm:$0xf]
    %v1190 = vld [vmem:[#allocation14 + $0x18] sm:$0xf]
    %v1191 = vld [vmem:[#allocation14 + $0x1c] sm:$0xf]
    %v1192 = vld [vmem:[#allocation14 + $0x20] sm:$0xf]
    %v1193 = vld [vmem:[#allocation14 + $0x24] sm:$0xf]
    %v1194 = vld [vmem:[#allocation14 + $0x28] sm:$0xf]
    %v1195 = vld [vmem:[#allocation14 + $0x2c] sm:$0xf]
    %v1196 = vld [vmem:[#allocation14 + $0x30] sm:$0xf]
    %v1197 = vld [vmem:[#allocation14 + $0x34] sm:$0xf]
    %v1198 = vld [vmem:[#allocation14 + $0x38] sm:$0xf]
    %v1199 = vld [vmem:[#allocation14 + $0x3c] sm:$0xf]
    %v1200 = vlaneseq
    %v1201 = vshrl.u32 %v1200, 7
    %v1202 = vsub.s32 0, %v1201
    %v1203 = vrot.slane %v1181, %v1202
    %v1220 = vunpack.c.l.b16 %v1184
    %v1221 = vunpack.c.l.b16 %v1185
    %v1222 = vunpack.c.l.b16 %v1186
    %v1223 = vunpack.c.l.b16 %v1187
    %v1224 = vunpack.c.l.b16 %v1188
    %v1225 = vunpack.c.l.b16 %v1189
    %v1226 = vunpack.c.l.b16 %v1190
    %v1227 = vunpack.c.l.b16 %v1191
    %v1228 = vunpack.c.l.b16 %v1192
    %v1229 = vunpack.c.l.b16 %v1193
    %v1230 = vunpack.c.l.b16 %v1194
    %v1231 = vunpack.c.l.b16 %v1195
    %v1232 = vunpack.c.l.b16 %v1196
    %v1233 = vunpack.c.l.b16 %v1197
    %v1234 = vunpack.c.l.b16 %v1198
    %v1235 = vunpack.c.l.b16 %v1199
    %v1236 = vpack.c.b16 %v1221, %v1220
    %v1237 = vpack.c.b16 %v1223, %v1222
    %v1238 = vpack.c.b16 %v1225, %v1224
    %v1239 = vpack.c.b16 %v1227, %v1226
    %v1240 = vpack.c.b16 %v1229, %v1228
    %v1241 = vpack.c.b16 %v1231, %v1230
    %v1242 = vpack.c.b16 %v1233, %v1232
    %v1243 = vpack.c.b16 %v1235, %v1234
    %1252 = vmatprep.subr.bf16.mxu0 0
    %1253 = vmatpush1.bf16.msra.mxu0 %v1236
    %1254 = vmatprep.subr.bf16.mxu0 0
    %1255 = vmatpush1.bf16.msra.mxu0 %v1237
    %1256 = vmatprep.subr.bf16.mxu0 0
    %1257 = vmatpush1.bf16.msra.mxu0 %v1238
    %1258 = vmatprep.subr.bf16.mxu0 0
    %1259 = vmatpush1.bf16.msra.mxu0 %v1239
    %1260 = vmatprep.subr.bf16.mxu0 0
    %1261 = vmatpush1.bf16.msra.mxu0 %v1240
    %1262 = vmatprep.subr.bf16.mxu0 0
    %1263 = vmatpush1.bf16.msra.mxu0 %v1241
    %1264 = vmatprep.subr.bf16.mxu0 0
    %1265 = vmatpush1.bf16.msra.mxu0 %v1242
    %1266 = vmatprep.subr.bf16.mxu0 0
    %1267 = vmatpush1.bf16.msra.mxu0 %v1243
    %1268 = vmatprep.subr.bf16.mxu0 0
    %1269 = vmatpush1.bf16.msra.mxu0 0
    %1270 = vmatprep.subr.bf16.mxu0 0
    %1271 = vmatpush1.bf16.msra.mxu0 0
    %1272 = vmatprep.subr.bf16.mxu0 0
    %1273 = vmatpush1.bf16.msra.mxu0 0
    %1274 = vmatprep.subr.bf16.mxu0 0
    %1275 = vmatpush1.bf16.msra.mxu0 0
    %1276 = vmatprep.subr.bf16.mxu0 0
    %1277 = vmatpush1.bf16.msra.mxu0 0
    %1278 = vmatprep.subr.bf16.mxu0 0
    %1279 = vmatpush1.bf16.msra.mxu0 0
    %1280 = vmatprep.subr.bf16.mxu0 0
    %1281 = vmatpush1.bf16.msra.mxu0 0
    %1282 = vmatprep.subr.bf16.mxu0 0
    %1283 = vmatpush1.bf16.msra.mxu0 0
    %1284 = vmatprep.mubr.bf16.mxu0 0
    %1285 = vmatmul.mubr.bf16.gmra.mrb[0].mxu0 %v1183
    %v1286 = vpop.f32.mrb[0].mxu0
    %v1287 = vadd.f32 %v1203, %v1286
    %v1288 = vpop.f32.mrb[0].mxu0
    %v1289 = vpop.f32.mrb[0].mxu0
    %v1290 = vadd.f32 %v1203, %v1289
    %v1291 = vpop.f32.mrb[0].mxu0
    %1292 = vdwg.mxu0
    %1293 = vadd.xlane.f32.xlu0 %v1287
    %v1294 = vpop.xlane.xlu0 %1293
    %1295 = vadd.xlane.f32.xlu0 %v1290
    %v1296 = vpop.xlane.xlu0 %1295
    %v1297 = vmul.f32 %v1294, 0.0625
    %v1298 = vmul.f32 %v1296, 0.0625
    %v1299 = vsub.f32 %v1287, %v1297
    %v1300 = vsub.f32 %v1290, %v1298
    %v1301 = vmul.f32 %v1299, %v188
    %v1302 = vmul.f32 %v1300, %v188
    %v1303 = vmul.f32 %v1301, %v1301
    %v1304 = vmul.f32 %v1302, %v1302
    %1305 = vadd.xlane.f32.xlu0 %v1303
    %v1306 = vpop.xlane.xlu0 %1305
    %1307 = vadd.xlane.f32.xlu0 %v1304
    %v1308 = vpop.xlane.xlu0 %1307
    %v1309 = vmul.f32 %v1306, 0.0625
    %v1310 = vmul.f32 %v1308, 0.0625
    %v1311 = vadd.f32 %v1309, 1e-05
    %v1312 = vadd.f32 %v1310, 1e-05
    %v1313 = vrsqrt.pop %v1311
    %v1314 = vrsqrt.pop %v1312
    %v1315 = vmul.f32 %v1301, %v1313
    %v1316 = vmul.f32 %v1302, %v1314
    %v1317 = vlaneseq
    %v1318 = vshrl.u32 %v1317, 7
    %v1319 = vsub.s32 1, %v1318
    %v1320 = vrot.slane %v1181, %v1319
    %v1321 = vmul.f32 %v1315, %v1320
    %v1322 = vmul.f32 %v1316, %v1320
    %v1323 = vlaneseq
    %v1324 = vshrl.u32 %v1323, 7
    %v1325 = vsub.s32 2, %v1324
    %v1326 = vrot.slane %v1181, %v1325
    %v1327 = vadd.f32 %v1321, %v1326
    %v1328 = vadd.f32 %v1322, %v1326
    %v1329 = vmax.f32 %v1327, 0.0
    %v1330 = vmax.f32 %v1328, 0.0
    %v1331 = vpack.c.bf16 %v1330, %v1329
    %v1332 = vld [vmem:[%s10] sm:$0xf]
    %v1333 = vld [vmem:[%s10 + $0x4] sm:$0xf]
    %v1334 = vld [vmem:[%s10 + $0x8] sm:$0xf]
    %v1335 = vld [vmem:[%s10 + $0xc] sm:$0xf]
    %v1336 = vld [vmem:[%s10 + $0x10] sm:$0xf]
    %v1337 = vld [vmem:[%s10 + $0x14] sm:$0xf]
    %v1338 = vld [vmem:[%s10 + $0x18] sm:$0xf]
    %v1339 = vld [vmem:[%s10 + $0x1c] sm:$0xf]
    %v1340 = vld [vmem:[%s10 + $0x20] sm:$0xf]
    %v1341 = vld [vmem:[%s10 + $0x24] sm:$0xf]
    %v1342 = vld [vmem:[%s10 + $0x28] sm:$0xf]
    %v1343 = vld [vmem:[%s10 + $0x2c] sm:$0xf]
    %v1344 = vld [vmem:[%s10 + $0x30] sm:$0xf]
    %v1345 = vld [vmem:[%s10 + $0x34] sm:$0xf]
    %v1346 = vld [vmem:[%s10 + $0x38] sm:$0xf]
    %v1347 = vld [vmem:[%s10 + $0x3c] sm:$0xf]
    %v1348 = vlaneseq
    %v1349 = vshrl.u32 %v1348, 7
    %v1350 = vsub.s32 0, %v1349
    %v1351 = vrot.slane %v1182, %v1350
    %v1368 = vunpack.c.l.b16 %v1332
    %v1369 = vunpack.c.l.b16 %v1333
    %v1370 = vunpack.c.l.b16 %v1334
    %v1371 = vunpack.c.l.b16 %v1335
    %v1372 = vunpack.c.l.b16 %v1336
    %v1373 = vunpack.c.l.b16 %v1337
    %v1374 = vunpack.c.l.b16 %v1338
    %v1375 = vunpack.c.l.b16 %v1339
    %v1376 = vunpack.c.l.b16 %v1340
    %v1377 = vunpack.c.l.b16 %v1341
    %v1378 = vunpack.c.l.b16 %v1342
    %v1379 = vunpack.c.l.b16 %v1343
    %v1380 = vunpack.c.l.b16 %v1344
    %v1381 = vunpack.c.l.b16 %v1345
    %v1382 = vunpack.c.l.b16 %v1346
    %v1383 = vunpack.c.l.b16 %v1347
    %v1384 = vpack.c.b16 %v1369, %v1368
    %v1385 = vpack.c.b16 %v1371, %v1370
    %v1386 = vpack.c.b16 %v1373, %v1372
    %v1387 = vpack.c.b16 %v1375, %v1374
    %v1388 = vpack.c.b16 %v1377, %v1376
    %v1389 = vpack.c.b16 %v1379, %v1378
    %v1390 = vpack.c.b16 %v1381, %v1380
    %v1391 = vpack.c.b16 %v1383, %v1382
    %1400 = vmatprep.subr.bf16.mxu0 0
    %1401 = vmatpush1.bf16.msra.mxu0 %v1384
    %1402 = vmatprep.subr.bf16.mxu0 0
    %1403 = vmatpush1.bf16.msra.mxu0 %v1385
    %1404 = vmatprep.subr.bf16.mxu0 0
    %1405 = vmatpush1.bf16.msra.mxu0 %v1386
    %1406 = vmatprep.subr.bf16.mxu0 0
    %1407 = vmatpush1.bf16.msra.mxu0 %v1387
    %1408 = vmatprep.subr.bf16.mxu0 0
    %1409 = vmatpush1.bf16.msra.mxu0 %v1388
    %1410 = vmatprep.subr.bf16.mxu0 0
    %1411 = vmatpush1.bf16.msra.mxu0 %v1389
    %1412 = vmatprep.subr.bf16.mxu0 0
    %1413 = vmatpush1.bf16.msra.mxu0 %v1390
    %1414 = vmatprep.subr.bf16.mxu0 0
    %1415 = vmatpush1.bf16.msra.mxu0 %v1391
    %1416 = vmatprep.subr.bf16.mxu0 0
    %1417 = vmatpush1.bf16.msra.mxu0 0
    %1418 = vmatprep.subr.bf16.mxu0 0
    %1419 = vmatpush1.bf16.msra.mxu0 0
    %1420 = vmatprep.subr.bf16.mxu0 0
    %1421 = vmatpush1.bf16.msra.mxu0 0
    %1422 = vmatprep.subr.bf16.mxu0 0
    %1423 = vmatpush1.bf16.msra.mxu0 0
    %1424 = vmatprep.subr.bf16.mxu0 0
    %1425 = vmatpush1.bf16.msra.mxu0 0
    %1426 = vmatprep.subr.bf16.mxu0 0
    %1427 = vmatpush1.bf16.msra.mxu0 0
    %1428 = vmatprep.subr.bf16.mxu0 0
    %1429 = vmatpush1.bf16.msra.mxu0 0
    %1430 = vmatprep.subr.bf16.mxu0 0
    %1431 = vmatpush1.bf16.msra.mxu0 0
    %1432 = vmatprep.mubr.bf16.mxu0 0
    %1433 = vmatmul.mubr.bf16.gmra.mrb[0].mxu0 %v1331
    %v1434 = vpop.f32.mrb[0].mxu0
    %v1435 = vadd.f32 %v1351, %v1434
    %v1436 = vpop.f32.mrb[0].mxu0
    %v1437 = vpop.f32.mrb[0].mxu0
    %v1438 = vadd.f32 %v1351, %v1437
    %v1439 = vpop.f32.mrb[0].mxu0
    %1440 = vdwg.mxu0
    %1441 = vadd.xlane.f32.xlu0 %v1435
    %v1442 = vpop.xlane.xlu0 %1441
    %1443 = vadd.xlane.f32.xlu0 %v1438
    %v1444 = vpop.xlane.xlu0 %1443
    %v1445 = vmul.f32 %v1442, 0.125
    %v1446 = vmul.f32 %v1444, 0.125
    %v1447 = vsub.f32 %v1435, %v1445
    %v1448 = vsub.f32 %v1438, %v1446
    %v1449 = vmul.f32 %v1447, %v191
    %v1450 = vmul.f32 %v1448, %v191
    %v1451 = vmul.f32 %v1449, %v1449
    %v1452 = vmul.f32 %v1450, %v1450
    %1453 = vadd.xlane.f32.xlu0 %v1451
    %v1454 = vpop.xlane.xlu0 %1453
    %1455 = vadd.xlane.f32.xlu0 %v1452
    %v1456 = vpop.xlane.xlu0 %1455
    %v1457 = vmul.f32 %v1454, 0.125
    %v1458 = vmul.f32 %v1456, 0.125
    %v1459 = vadd.f32 %v1457, 1e-05
    %v1460 = vadd.f32 %v1458, 1e-05
    %v1461 = vrsqrt.pop %v1459
    %v1462 = vrsqrt.pop %v1460
    %v1463 = vmul.f32 %v1449, %v1461
    %v1464 = vmul.f32 %v1450, %v1462
    %v1465 = vlaneseq
    %v1466 = vshrl.u32 %v1465, 7
    %v1467 = vsub.s32 1, %v1466
    %v1468 = vrot.slane %v1182, %v1467
    %v1469 = vmul.f32 %v1463, %v1468
    %v1470 = vmul.f32 %v1464, %v1468
    %v1471 = vlaneseq
    %v1472 = vshrl.u32 %v1471, 7
    %v1473 = vsub.s32 2, %v1472
    %v1474 = vrot.slane %v1182, %v1473
    %v1475 = vadd.f32 %v1469, %v1474
    %v1476 = vadd.f32 %v1470, %v1474
    %v1477 = vmax.f32 %v1475, 0.0
    %v1478 = vmax.f32 %v1476, 0.0
    %v1479 = vpack.c.bf16 %v1478, %v1477
    %v1480 = vld [vmem:[#allocation17] sm:$0xf]
    %v1481 = vld [vmem:[#allocation17 + $0x4] sm:$0xf]
    %v1482 = vld [vmem:[#allocation17 + $0x8] sm:$0xf]
    %v1483 = vld [vmem:[#allocation17 + $0xc] sm:$0xf]
    %v1484 = vld [vmem:[#allocation17 + $0x10] sm:$0xf]
    %v1485 = vld [vmem:[#allocation17 + $0x14] sm:$0xf]
    %v1486 = vld [vmem:[#allocation17 + $0x18] sm:$0xf]
    %v1487 = vld [vmem:[#allocation17 + $0x1c] sm:$0xf]
    %v1488 = vld [vmem:[#allocation17 + $0x20] sm:$0xf]
    %v1489 = vld [vmem:[#allocation17 + $0x24] sm:$0xf]
    %v1490 = vld [vmem:[#allocation17 + $0x28] sm:$0xf]
    %v1491 = vld [vmem:[#allocation17 + $0x2c] sm:$0xf]
    %v1492 = vld [vmem:[#allocation17 + $0x30] sm:$0xf]
    %v1493 = vld [vmem:[#allocation17 + $0x34] sm:$0xf]
    %v1494 = vld [vmem:[#allocation17 + $0x38] sm:$0xf]
    %v1495 = vld [vmem:[#allocation17 + $0x3c] sm:$0xf]
    %v1496 = vld [vmem:[%s13] sm:$0x1]
    %v1498 = vlaneseq
    %v1499 = vshrl.u32 %v1498, 7
    %v1500 = vsub.s32 0, %v1499
    %v1501 = vrot.slane %v1496, %v1500
    %v1519 = vunpack.c.l.b16 %v1480
    %v1520 = vunpack.c.l.b16 %v1481
    %v1521 = vunpack.c.l.b16 %v1482
    %v1522 = vunpack.c.l.b16 %v1483
    %v1523 = vunpack.c.l.b16 %v1484
    %v1524 = vunpack.c.l.b16 %v1485
    %v1525 = vunpack.c.l.b16 %v1486
    %v1526 = vunpack.c.l.b16 %v1487
    %v1527 = vunpack.c.l.b16 %v1488
    %v1528 = vunpack.c.l.b16 %v1489
    %v1529 = vunpack.c.l.b16 %v1490
    %v1530 = vunpack.c.l.b16 %v1491
    %v1531 = vunpack.c.l.b16 %v1492
    %v1532 = vunpack.c.l.b16 %v1493
    %v1533 = vunpack.c.l.b16 %v1494
    %v1534 = vunpack.c.l.b16 %v1495
    %v1535 = vpack.c.b16 %v1520, %v1519
    %v1536 = vpack.c.b16 %v1522, %v1521
    %v1537 = vpack.c.b16 %v1524, %v1523
    %v1538 = vpack.c.b16 %v1526, %v1525
    %v1539 = vpack.c.b16 %v1528, %v1527
    %v1540 = vpack.c.b16 %v1530, %v1529
    %v1541 = vpack.c.b16 %v1532, %v1531
    %v1542 = vpack.c.b16 %v1534, %v1533
    %1551 = vmatprep.subr.bf16.mxu0 0
    %1552 = vmatpush1.bf16.msra.mxu0 %v1535
    %1553 = vmatprep.subr.bf16.mxu0 0
    %1554 = vmatpush1.bf16.msra.mxu0 %v1536
    %1555 = vmatprep.subr.bf16.mxu0 0
    %1556 = vmatpush1.bf16.msra.mxu0 %v1537
    %1557 = vmatprep.subr.bf16.mxu0 0
    %1558 = vmatpush1.bf16.msra.mxu0 %v1538
    %1559 = vmatprep.subr.bf16.mxu0 0
    %1560 = vmatpush1.bf16.msra.mxu0 %v1539
    %1561 = vmatprep.subr.bf16.mxu0 0
    %1562 = vmatpush1.bf16.msra.mxu0 %v1540
    %1563 = vmatprep.subr.bf16.mxu0 0
    %1564 = vmatpush1.bf16.msra.mxu0 %v1541
    %1565 = vmatprep.subr.bf16.mxu0 0
    %1566 = vmatpush1.bf16.msra.mxu0 %v1542
    %1567 = vmatprep.subr.bf16.mxu0 0
    %1568 = vmatpush1.bf16.msra.mxu0 0
    %1569 = vmatprep.subr.bf16.mxu0 0
    %1570 = vmatpush1.bf16.msra.mxu0 0
    %1571 = vmatprep.subr.bf16.mxu0 0
    %1572 = vmatpush1.bf16.msra.mxu0 0
    %1573 = vmatprep.subr.bf16.mxu0 0
    %1574 = vmatpush1.bf16.msra.mxu0 0
    %1575 = vmatprep.subr.bf16.mxu0 0
    %1576 = vmatpush1.bf16.msra.mxu0 0
    %1577 = vmatprep.subr.bf16.mxu0 0
    %1578 = vmatpush1.bf16.msra.mxu0 0
    %1579 = vmatprep.subr.bf16.mxu0 0
    %1580 = vmatpush1.bf16.msra.mxu0 0
    %1581 = vmatprep.subr.bf16.mxu0 0
    %1582 = vmatpush1.bf16.msra.mxu0 0
    %1583 = vmatprep.mubr.bf16.mxu0 0
    %1584 = vmatmul.mubr.bf16.gmra.mrb[0].mxu0 %v1479
    %v1585 = vpop.f32.mrb[0].mxu0
    %v1586 = vadd.f32 %v1501, %v1585
    %v1587 = vpop.f32.mrb[0].mxu0
    %v1588 = vpop.f32.mrb[0].mxu0
    %v1589 = vadd.f32 %v1501, %v1588
    %v1590 = vpop.f32.mrb[0].mxu0
    %1591 = vdwg.mxu0
    %1592 = vst [vmem:[#allocation19] sm:$0xff] %v1586
    %1593 = vst [vmem:[#allocation19 + $0x8] sm:$0xff] %v1589
    // Predicated region
    $region98: #{tpu_custom_call.1} parent=1 // pred_check
      _
    $region99: #{tpu_custom_call.1} parent=1 // pred_check_branch
      %1595 = sbr.rel (0) target = $region101
    $region100: #{tpu_custom_call.1} parent=1 // pred_region
      %s1597 = ssub.s32 256, 256
      %1598 = vsyncadd [#allocation4], %s1597
      %s1599 = sshll.u32 [#allocation19], 4
      %s1600 = int_to_ptr.vmem [resolvable:$true] %s1599
      %1605 = dma.vmem_to_hbm [thread:$0]  %s1600, 256, %s14, [#allocation4], 128, 128, 8
    $region101: #{tpu_custom_call.1} parent=1 // pred_fallthru
      _
    // Predicated region
    $region102: #{tpu_custom_call.1} parent=1 // pred_check
      _
    $region103: #{tpu_custom_call.1} parent=1 // pred_check_branch
      %1607 = sbr.rel (0) target = $region105
    $region104: #{tpu_custom_call.1} parent=1 // pred_region
      %1608 = dma.done [#allocation4], 256
    $region105: #{tpu_custom_call.1} parent=1 // pred_fallthru
      _
    %1609 = vsyncpa [#allocation3], 1
    %1610 = vsyncpa [#allocation6], 1
    %1611 = vsyncpa [#allocation9], 1
    %1612 = vsyncpa [#allocation12], 1
    %1613 = vsyncpa [#allocation15], 1
    %1614 = vsyncpa [#allocation18], 1
    %1615 = vsyncpa [#allocation4], 1

</llo_original>
